<compile_context>
chip_gen: v6e
topology: v6e:2x2x1
jax: 0.10.0
libtpu: 0.0.40
codegen_flags: <defaults>
</compile_context>

<pallas_src>
import math
import functools

import jax
import jax.numpy as jnp
from jax import lax
from jax.experimental import pallas as pl
from jax.experimental.pallas import tpu as pltpu


# -----------------------------------------------------------------------------
# Fused encoder kernel: grid = (batch_block, layer).  The hidden state for the
# current batch block lives in a VMEM scratch across layer steps.
# -----------------------------------------------------------------------------
def fused_encoder_kernel(x_ref, pe_ref, mask_ref,
                         wq_ref, bq_ref, wk_ref, bk_ref, wv_ref, bv_ref,
                         wo_ref, bo_ref, ln1_g_ref, ln1_b_ref,
                         w1_ref, b1_ref, w2_ref, b2_ref,
                         ln2_g_ref, ln2_b_ref,
                         out_ref, h_sc, *, num_heads, ln_eps, seq_len, last_only):
    layer = pl.program_id(1)
    num_layers = pl.num_programs(1)

    # --- layer 0: fold in PositionalEncoding (dropout == identity in eval) ---
    # TODO(synk): nn.Dropout(p=0.1) is identity at inference; training-mode
    #             stochastic dropout is not implemented.
    @pl.when(layer == 0)
    def _():
        h0 = x_ref[...] + pe_ref[...]            # (Bt,S,D) + (Bt,1,D) broadcast
        h_sc[...] = h0.reshape(h_sc.shape)       # row-stacked (Bt*S, D)

    h = h_sc[...]                                # (Bt*S, D) f32 hidden state
    R, D = h.shape
    S = seq_len
    Bt = R // S
    dh = D // num_heads
    scale = 1.0 / math.sqrt(dh)

    # Per-layer weights: whole stack is VMEM-resident; dynamic index on layer.
    wq, wk, wv, wo = wq_ref[layer], wk_ref[layer], wv_ref[layer], wo_ref[layer]
    w1, w2 = w1_ref[layer], w2_ref[layer]
    bq, bk, bv, bo = bq_ref[layer], bk_ref[layer], bv_ref[layer], bo_ref[layer]
    b1, b2 = b1_ref[layer], b2_ref[layer]
    ln1_g, ln1_b = ln1_g_ref[layer], ln1_b_ref[layer]
    ln2_g, ln2_b = ln2_g_ref[layer], ln2_b_ref[layer]

    # --- Q / K / V projections: bf16 MXU operands, f32 accumulation ----------
    h_bf = h.astype(jnp.bfloat16)
    q = jnp.dot(h_bf, wq, preferred_element_type=jnp.float32) + bq
    k = jnp.dot(h_bf, wk, preferred_element_type=jnp.float32) + bk
    v = jnp.dot(h_bf, wv, preferred_element_type=jnp.float32) + bv

    # --- per-row, per-head attention; output projection folded per head ------
    row_outs = []
    for r in range(Bt):                          # static; rows are independent
        rs = r * S
        qr = q[rs:rs + S, :]
        kr = k[rs:rs + S, :]
        vr = v[rs:rs + S, :]
        mrow = mask_ref[r]                       # (1, S) additive mask, f32
        acc = jnp.zeros((S, D), jnp.float32)     # lane-dense accumulator
        for hd in range(num_heads):              # accumulator chain bounds live ranges
            lo = hd * dh
            qh = qr[:, lo:lo + dh].astype(jnp.bfloat16)
            kh = kr[:, lo:lo + dh].astype(jnp.bfloat16)
            vh = vr[:, lo:lo + dh].astype(jnp.bfloat16)
            scores = jnp.dot(qh, kh.T, preferred_element_type=jnp.float32) * scale
            scores = scores + mrow               # (S,S) + (1,S) sublane broadcast
            m = jnp.max(scores, axis=-1, keepdims=True)
            p = jnp.exp(scores - m)
            p = p * pl.reciprocal(jnp.sum(p, axis=-1, keepdims=True), approx=True)
            ctx_h = jnp.dot(p.astype(jnp.bfloat16), vh,
                            preferred_element_type=jnp.float32)
            # concat(ctx_h) @ W_o  ==  sum_h ctx_h @ W_o[h*dh:(h+1)*dh, :]
            acc = acc + jnp.dot(ctx_h.astype(jnp.bfloat16), wo[lo:lo + dh, :],
                                preferred_element_type=jnp.float32)
        row_outs.append(acc)
    attn_out = jnp.concatenate(row_outs, axis=0) + bo   # (Bt*S, D), lane-dense

    # --- residual + LayerNorm (f32) ------------------------------------------
    x1 = attn_out + h
    mu = jnp.mean(x1, axis=-1, keepdims=True)
    d1 = x1 - mu
    var = jnp.mean(d1 * d1, axis=-1, keepdims=True)
    h1 = d1 * lax.rsqrt(var + ln_eps) * ln1_g + ln1_b

    # --- FFN (exact BERT erf-GELU, f32) + residual + LayerNorm ----------------
    inter = jnp.dot(h1.astype(jnp.bfloat16), w1,
                    preferred_element_type=jnp.float32) + b1
    inter = inter * 0.5 * (1.0 + lax.erf(inter * (1.0 / math.sqrt(2.0))))
    ffn = jnp.dot(inter.astype(jnp.bfloat16), w2,
                  preferred_element_type=jnp.float32) + b2
    y = ffn + h1
    mu2 = jnp.mean(y, axis=-1, keepdims=True)
    d2 = y - mu2
    var2 = jnp.mean(d2 * d2, axis=-1, keepdims=True)
    h_new = d2 * lax.rsqrt(var2 + ln_eps) * ln2_g + ln2_b

    # Carry to the next layer step; emit encoded output.
    h_sc[...] = h_new
    if last_only:
        @pl.when(layer == num_layers - 1)
        def _():
            out_ref[...] = h_new.reshape(out_ref.shape)
    else:
        out_ref[...] = h_new.reshape(out_ref.shape)


# -----------------------------------------------------------------------------
# Wrapper: one pallas_call for the whole encoder (PE add + all layers).
# -----------------------------------------------------------------------------
def image_encoder_forward(input_, attention_mask, layer_params, pe, *,
                          num_heads, ln_eps=1e-12, output_all_encoded_layers=True,
                          batch_block=None):
    B, S, D = input_.shape
    L = len(layer_params)
    assert D % num_heads == 0, "embed_dim must be divisible by num_heads"

    # Batch-row blocking: largest divisor of B whose stacked rows fit one MXU pass.
    if batch_block is None:
        batch_block = 1
        for bt in range(1, B + 1):
            if B % bt == 0 and bt * S <= 256:
                batch_block = bt
    Bt = batch_block
    assert B % Bt == 0
    nb = B // Bt

    # Exact PyTorch PositionalEncoding semantics: pe[:x.size(0)] -> (B, 1, D),
    # broadcast over the sequence dim inside the kernel (per-batch-row PE).
    pe_b = pe[:B].astype(jnp.float32)
    # Extended additive mask (B,1,1,S) -> (B,1,S) for the kernel.
    mask3 = attention_mask.reshape(B, 1, attention_mask.shape[-1]).astype(jnp.float32)

    mm_names = {"wq", "wk", "wv", "wo", "w1", "w2"}
    names = ("wq", "bq", "wk", "bk", "wv", "bv", "wo", "bo",
             "ln1_g", "ln1_b", "w1", "b1", "w2", "b2", "ln2_g", "ln2_b")
    # Stack per-layer weights along a leading layer axis.  Matmul weights go to
    # bf16 (MXU-native, half the DMA); biases / LayerNorm params stay f32.
    stacked = []
    for n in names:
        arr = jnp.stack([p[n] for p in layer_params], axis=0)
        arr = arr.astype(jnp.bfloat16) if n in mm_names else arr.astype(jnp.float32)
        stacked.append(arr)

    def _resident_spec(arr):
        # Full-array block + grid-invariant index map: the whole weight stack is
        # DMA'd to VMEM once for the entire kernel (no per-batch-row re-fetch).
        return pl.BlockSpec(arr.shape, lambda bb, l, _n=arr.ndim: (0,) * _n)

    in_specs = [
        pl.BlockSpec((Bt, S, D), lambda bb, l: (bb, 0, 0)),   # hidden-state input
        pl.BlockSpec((Bt, 1, D), lambda bb, l: (bb, 0, 0)),   # positional encoding
        pl.BlockSpec((Bt, 1, S), lambda bb, l: (bb, 0, 0)),   # additive mask
    ] + [_resident_spec(w) for w in stacked]

    if output_all_encoded_layers:
        out_shape = jax.ShapeDtypeStruct((L, B, S, D), jnp.float32)
        out_specs = pl.BlockSpec((1, Bt, S, D), lambda bb, l: (l, bb, 0, 0))
    else:
        # Only the final layer is written back (guarded by pl.when in-kernel).
        out_shape = jax.ShapeDtypeStruct((B, S, D), jnp.float32)
        out_specs = pl.BlockSpec((Bt, S, D), lambda bb, l: (bb, 0, 0))

    # Chip-aware VMEM budget: ~3/4 of physical, capped at 100 MiB
    # (v7x: 64 MiB physical -> 48 MiB; v5e/v6e: 128 MiB -> 96 MiB).
    try:
        vmem_cap = pltpu.get_tpu_info().vmem_capacity_bytes
    except Exception:
        vmem_cap = 64 * 1024 * 1024
    vmem_limit = min(int(vmem_cap * 3 // 4), 100 * 1024 * 1024)

    kernel = functools.partial(fused_encoder_kernel,
                               num_heads=num_heads, ln_eps=ln_eps, seq_len=S,
                               last_only=not output_all_encoded_layers)

    out = pl.pallas_call(
        kernel,
        out_shape=out_shape,
        grid_spec=pltpu.PrefetchScalarGridSpec(
            num_scalar_prefetch=0,
            grid=(nb, L),                   # layer axis innermost (sequential carry)
            in_specs=in_specs,
            out_specs=out_specs,
            scratch_shapes=[pltpu.VMEM((Bt * S, D), jnp.float32)],  # hidden carry
        ),
        compiler_params=pltpu.CompilerParams(
            dimension_semantics=("parallel", "arbitrary"),
            vmem_limit_bytes=vmem_limit,
        ),
    )(input_.astype(jnp.float32), pe_b, mask3, *stacked)

    if output_all_encoded_layers:
        return [out[i] for i in range(L)]
    return [out]


# -----------------------------------------------------------------------------
# PositionalEncoding buffer (exact replica of the PyTorch construction).
# -----------------------------------------------------------------------------
def make_positional_encoding(d_model, max_len=100):
    position = jnp.arange(max_len, dtype=jnp.float32)[:, None]
    div_term = jnp.exp(jnp.arange(0, d_model, 2, dtype=jnp.float32)
                       * (-math.log(10000.0) / d_model))
    pe = jnp.zeros((max_len, 1, d_model), jnp.float32)
    pe = pe.at[:, 0, 0::2].set(jnp.sin(position * div_term))
    pe = pe.at[:, 0, 1::2].set(jnp.cos(position * div_term))
    return pe


# -----------------------------------------------------------------------------
# Deterministic parameter initialization (synthetic; no checkpoint load).
# -----------------------------------------------------------------------------
def init_bert_layer_params(key, d_model, d_inter):
    ks = jax.random.split(key, 6)
    std = 0.02
    z = lambda n: jnp.zeros((1, n), jnp.float32)
    return {
        "wq": std * jax.random.normal(ks[0], (d_model, d_model), jnp.float32), "bq": z(d_model),
        "wk": std * jax.random.normal(ks[1], (d_model, d_model), jnp.float32), "bk": z(d_model),
        "wv": std * jax.random.normal(ks[2], (d_model, d_model), jnp.float32), "bv": z(d_model),
        "wo": std * jax.random.normal(ks[3], (d_model, d_model), jnp.float32), "bo": z(d_model),
        "ln1_g": jnp.ones((1, d_model), jnp.float32), "ln1_b": z(d_model),
        "w1": std * jax.random.normal(ks[4], (d_model, d_inter), jnp.float32), "b1": z(d_inter),
        "w2": std * jax.random.normal(ks[5], (d_inter, d_model), jnp.float32), "b2": z(d_model),
        "ln2_g": jnp.ones((1, d_model), jnp.float32), "ln2_b": z(d_model),
    }


if __name__ == "__main__":
    # Small config consistent with the module's forward.
    B, S, D = 2, 8, 32          # batch, seq (image regions), embed_dim
    NUM_HEADS = 4
    D_INTER = 64
    NUM_LAYERS = 2

    key = jax.random.PRNGKey(0)
    k_x, k_p = jax.random.split(key)

    x = jax.random.normal(k_x, (B, S, D), jnp.float32)

    # Additive extended attention mask (B,1,1,S): batch 1 has last 2 positions masked.
    attn_mask = jnp.zeros((B, 1, 1, S), jnp.float32)
    attn_mask = attn_mask.at[1, 0, 0, -2:].set(-10000.0)

    pe = make_positional_encoding(D, max_len=100)

    # copy.deepcopy(layer) => all layers start with identical weights.
    shared_params = init_bert_layer_params(k_p, D, D_INTER)
    layer_params = [shared_params for _ in range(NUM_LAYERS)]

    # Path 1: all encoded layers.
    outs = image_encoder_forward(x, attn_mask, layer_params, pe,
                                 num_heads=NUM_HEADS,
                                 output_all_encoded_layers=True)
    for o in outs:
        jax.block_until_ready(o)
    assert len(outs) == NUM_LAYERS and outs[-1].shape == (B, S, D)

    # Path 2: final layer only (skips (L-1)/L of the HBM writeback).
    last = image_encoder_forward(x, attn_mask, layer_params, pe,
                                 num_heads=NUM_HEADS,
                                 output_all_encoded_layers=False)
    jax.block_until_ready(last[0])
    assert last[0].shape == (B, S, D)
    assert jnp.allclose(last[0], outs[-1], atol=1e-5, rtol=1e-5)

    print("KERNEL_OK")
</pallas_src>

<mosaic_0001>
module attributes {stable_mosaic.version = 11 : i64} {
  func.func @fused_encoder_kernel(%arg0: i32, %arg1: i32, %arg2: memref<2x8x32xf32, #tpu.memory_space<vmem>>, %arg3: memref<2x1x32xf32, #tpu.memory_space<vmem>>, %arg4: memref<2x1x8xf32, #tpu.memory_space<vmem>>, %arg5: memref<2x32x32xbf16, #tpu.memory_space<vmem>>, %arg6: memref<2x1x32xf32, #tpu.memory_space<vmem>>, %arg7: memref<2x32x32xbf16, #tpu.memory_space<vmem>>, %arg8: memref<2x1x32xf32, #tpu.memory_space<vmem>>, %arg9: memref<2x32x32xbf16, #tpu.memory_space<vmem>>, %arg10: memref<2x1x32xf32, #tpu.memory_space<vmem>>, %arg11: memref<2x32x32xbf16, #tpu.memory_space<vmem>>, %arg12: memref<2x1x32xf32, #tpu.memory_space<vmem>>, %arg13: memref<2x1x32xf32, #tpu.memory_space<vmem>>, %arg14: memref<2x1x32xf32, #tpu.memory_space<vmem>>, %arg15: memref<2x32x64xbf16, #tpu.memory_space<vmem>>, %arg16: memref<2x1x64xf32, #tpu.memory_space<vmem>>, %arg17: memref<2x64x32xbf16, #tpu.memory_space<vmem>>, %arg18: memref<2x1x32xf32, #tpu.memory_space<vmem>>, %arg19: memref<2x1x32xf32, #tpu.memory_space<vmem>>, %arg20: memref<2x1x32xf32, #tpu.memory_space<vmem>>, %arg21: memref<1x2x8x32xf32, #tpu.memory_space<vmem>>, %arg22: memref<16x32xf32, #tpu.memory_space<vmem>>) attributes {dimension_semantics = [#tpu.dimension_semantics<parallel>, #tpu.dimension_semantics<arbitrary>], iteration_bounds = array<i64: 1, 2>, scalar_prefetch = 0 : i64, scratch_operands = 1 : i64, tpu.core_type = #tpu.core_type<tc>, window_params = [{transform_indices = @transform_0, window_bounds = array<i64: 2, 8, 32>}, {transform_indices = @transform_1, window_bounds = array<i64: 2, 1, 32>}, {transform_indices = @transform_2, window_bounds = array<i64: 2, 1, 8>}, {pipeline_mode = #tpu.pipeline_mode<synchronous>, transform_indices = @transform_3, window_bounds = array<i64: 2, 32, 32>}, {pipeline_mode = #tpu.pipeline_mode<synchronous>, transform_indices = @transform_4, window_bounds = array<i64: 2, 1, 32>}, {pipeline_mode = #tpu.pipeline_mode<synchronous>, transform_indices = @transform_5, window_bounds = array<i64: 2, 32, 32>}, {pipeline_mode = #tpu.pipeline_mode<synchronous>, transform_indices = @transform_6, window_bounds = array<i64: 2, 1, 32>}, {pipeline_mode = #tpu.pipeline_mode<synchronous>, transform_indices = @transform_7, window_bounds = array<i64: 2, 32, 32>}, {pipeline_mode = #tpu.pipeline_mode<synchronous>, transform_indices = @transform_8, window_bounds = array<i64: 2, 1, 32>}, {pipeline_mode = #tpu.pipeline_mode<synchronous>, transform_indices = @transform_9, window_bounds = array<i64: 2, 32, 32>}, {pipeline_mode = #tpu.pipeline_mode<synchronous>, transform_indices = @transform_10, window_bounds = array<i64: 2, 1, 32>}, {pipeline_mode = #tpu.pipeline_mode<synchronous>, transform_indices = @transform_11, window_bounds = array<i64: 2, 1, 32>}, {pipeline_mode = #tpu.pipeline_mode<synchronous>, transform_indices = @transform_12, window_bounds = array<i64: 2, 1, 32>}, {pipeline_mode = #tpu.pipeline_mode<synchronous>, transform_indices = @transform_13, window_bounds = array<i64: 2, 32, 64>}, {pipeline_mode = #tpu.pipeline_mode<synchronous>, transform_indices = @transform_14, window_bounds = array<i64: 2, 1, 64>}, {pipeline_mode = #tpu.pipeline_mode<synchronous>, transform_indices = @transform_15, window_bounds = array<i64: 2, 64, 32>}, {pipeline_mode = #tpu.pipeline_mode<synchronous>, transform_indices = @transform_16, window_bounds = array<i64: 2, 1, 32>}, {pipeline_mode = #tpu.pipeline_mode<synchronous>, transform_indices = @transform_17, window_bounds = array<i64: 2, 1, 32>}, {pipeline_mode = #tpu.pipeline_mode<synchronous>, transform_indices = @transform_18, window_bounds = array<i64: 2, 1, 32>}, {transform_indices = @transform_19, window_bounds = array<i64: 1, 2, 8, 32>}]} {
    %c0_i32 = arith.constant 0 : i32
    %0 = arith.cmpi eq, %arg1, %c0_i32 : i32
    %1 = arith.extui %0 : i1 to i32
    %c0_i32_0 = arith.constant 0 : i32
    %2 = arith.cmpi ne, %1, %c0_i32_0 : i32
    scf.if %2 {
      %c0_112 = arith.constant 0 : index
      %c0_113 = arith.constant 0 : index
      %c0_114 = arith.constant 0 : index
      %362 = vector.load %arg2[%c0_112, %c0_113, %c0_114] : memref<2x8x32xf32, #tpu.memory_space<vmem>>, vector<2x8x32xf32>
      %c0_115 = arith.constant 0 : index
      %c0_116 = arith.constant 0 : index
      %c0_117 = arith.constant 0 : index
      %363 = vector.load %arg3[%c0_115, %c0_116, %c0_117] : memref<2x1x32xf32, #tpu.memory_space<vmem>>, vector<2x1x32xf32>
      %364 = vector.broadcast %363 : vector<2x1x32xf32> to vector<2x8x32xf32>
      %365 = arith.addf %362, %364 : vector<2x8x32xf32>
      %366 = vector.shape_cast %365 : vector<2x8x32xf32> to vector<16x32xf32>
      %c0_118 = arith.constant 0 : index
      %c0_119 = arith.constant 0 : index
      %367 = vector.load %arg22[%c0_118, %c0_119] : memref<16x32xf32, #tpu.memory_space<vmem>>, vector<16x32xf32>
      tpu.vector_store %arg22[%c0_118, %c0_119], %366 {strides = array<i32>} : memref<16x32xf32, #tpu.memory_space<vmem>>, vector<16x32xf32>,
    } else {
    }
    %c0 = arith.constant 0 : index
    %c0_1 = arith.constant 0 : index
    %3 = vector.load %arg22[%c0, %c0_1] : memref<16x32xf32, #tpu.memory_space<vmem>>, vector<16x32xf32>
    %4 = arith.index_cast %arg1 : i32 to index
    %c0_2 = arith.constant 0 : index
    %c0_3 = arith.constant 0 : index
    %5 = vector.load %arg5[%4, %c0_2, %c0_3] : memref<2x32x32xbf16, #tpu.memory_space<vmem>>, vector<1x32x32xbf16>
    %6 = vector.shape_cast %5 : vector<1x32x32xbf16> to vector<32x32xbf16>
    %7 = arith.index_cast %arg1 : i32 to index
    %c0_4 = arith.constant 0 : index
    %c0_5 = arith.constant 0 : index
    %8 = vector.load %arg7[%7, %c0_4, %c0_5] : memref<2x32x32xbf16, #tpu.memory_space<vmem>>, vector<1x32x32xbf16>
    %9 = vector.shape_cast %8 : vector<1x32x32xbf16> to vector<32x32xbf16>
    %10 = arith.index_cast %arg1 : i32 to index
    %c0_6 = arith.constant 0 : index
    %c0_7 = arith.constant 0 : index
    %11 = vector.load %arg9[%10, %c0_6, %c0_7] : memref<2x32x32xbf16, #tpu.memory_space<vmem>>, vector<1x32x32xbf16>
    %12 = vector.shape_cast %11 : vector<1x32x32xbf16> to vector<32x32xbf16>
    %13 = arith.index_cast %arg1 : i32 to index
    %c0_8 = arith.constant 0 : index
    %c0_9 = arith.constant 0 : index
    %14 = vector.load %arg11[%13, %c0_8, %c0_9] : memref<2x32x32xbf16, #tpu.memory_space<vmem>>, vector<1x32x32xbf16>
    %15 = vector.shape_cast %14 : vector<1x32x32xbf16> to vector<32x32xbf16>
    %16 = arith.index_cast %arg1 : i32 to index
    %c0_10 = arith.constant 0 : index
    %c0_11 = arith.constant 0 : index
    %17 = vector.load %arg15[%16, %c0_10, %c0_11] : memref<2x32x64xbf16, #tpu.memory_space<vmem>>, vector<1x32x64xbf16>
    %18 = vector.shape_cast %17 : vector<1x32x64xbf16> to vector<32x64xbf16>
    %19 = arith.index_cast %arg1 : i32 to index
    %c0_12 = arith.constant 0 : index
    %c0_13 = arith.constant 0 : index
    %20 = vector.load %arg17[%19, %c0_12, %c0_13] : memref<2x64x32xbf16, #tpu.memory_space<vmem>>, vector<1x64x32xbf16>
    %21 = vector.shape_cast %20 : vector<1x64x32xbf16> to vector<64x32xbf16>
    %22 = arith.index_cast %arg1 : i32 to index
    %c0_14 = arith.constant 0 : index
    %c0_15 = arith.constant 0 : index
    %23 = vector.load %arg6[%22, %c0_14, %c0_15] : memref<2x1x32xf32, #tpu.memory_space<vmem>>, vector<1x1x32xf32>
    %24 = vector.shape_cast %23 : vector<1x1x32xf32> to vector<1x32xf32>
    %25 = arith.index_cast %arg1 : i32 to index
    %c0_16 = arith.constant 0 : index
    %c0_17 = arith.constant 0 : index
    %26 = vector.load %arg8[%25, %c0_16, %c0_17] : memref<2x1x32xf32, #tpu.memory_space<vmem>>, vector<1x1x32xf32>
    %27 = vector.shape_cast %26 : vector<1x1x32xf32> to vector<1x32xf32>
    %28 = arith.index_cast %arg1 : i32 to index
    %c0_18 = arith.constant 0 : index
    %c0_19 = arith.constant 0 : index
    %29 = vector.load %arg10[%28, %c0_18, %c0_19] : memref<2x1x32xf32, #tpu.memory_space<vmem>>, vector<1x1x32xf32>
    %30 = vector.shape_cast %29 : vector<1x1x32xf32> to vector<1x32xf32>
    %31 = arith.index_cast %arg1 : i32 to index
    %c0_20 = arith.constant 0 : index
    %c0_21 = arith.constant 0 : index
    %32 = vector.load %arg12[%31, %c0_20, %c0_21] : memref<2x1x32xf32, #tpu.memory_space<vmem>>, vector<1x1x32xf32>
    %33 = vector.shape_cast %32 : vector<1x1x32xf32> to vector<1x32xf32>
    %34 = arith.index_cast %arg1 : i32 to index
    %c0_22 = arith.constant 0 : index
    %c0_23 = arith.constant 0 : index
    %35 = vector.load %arg16[%34, %c0_22, %c0_23] : memref<2x1x64xf32, #tpu.memory_space<vmem>>, vector<1x1x64xf32>
    %36 = vector.shape_cast %35 : vector<1x1x64xf32> to vector<1x64xf32>
    %37 = arith.index_cast %arg1 : i32 to index
    %c0_24 = arith.constant 0 : index
    %c0_25 = arith.constant 0 : index
    %38 = vector.load %arg18[%37, %c0_24, %c0_25] : memref<2x1x32xf32, #tpu.memory_space<vmem>>, vector<1x1x32xf32>
    %39 = vector.shape_cast %38 : vector<1x1x32xf32> to vector<1x32xf32>
    %40 = arith.index_cast %arg1 : i32 to index
    %c0_26 = arith.constant 0 : index
    %c0_27 = arith.constant 0 : index
    %41 = vector.load %arg13[%40, %c0_26, %c0_27] : memref<2x1x32xf32, #tpu.memory_space<vmem>>, vector<1x1x32xf32>
    %42 = vector.shape_cast %41 : vector<1x1x32xf32> to vector<1x32xf32>
    %43 = arith.index_cast %arg1 : i32 to index
    %c0_28 = arith.constant 0 : index
    %c0_29 = arith.constant 0 : index
    %44 = vector.load %arg14[%43, %c0_28, %c0_29] : memref<2x1x32xf32, #tpu.memory_space<vmem>>, vector<1x1x32xf32>
    %45 = vector.shape_cast %44 : vector<1x1x32xf32> to vector<1x32xf32>
    %46 = arith.index_cast %arg1 : i32 to index
    %c0_30 = arith.constant 0 : index
    %c0_31 = arith.constant 0 : index
    %47 = vector.load %arg19[%46, %c0_30, %c0_31] : memref<2x1x32xf32, #tpu.memory_space<vmem>>, vector<1x1x32xf32>
    %48 = vector.shape_cast %47 : vector<1x1x32xf32> to vector<1x32xf32>
    %49 = arith.index_cast %arg1 : i32 to index
    %c0_32 = arith.constant 0 : index
    %c0_33 = arith.constant 0 : index
    %50 = vector.load %arg20[%49, %c0_32, %c0_33] : memref<2x1x32xf32, #tpu.memory_space<vmem>>, vector<1x1x32xf32>
    %51 = vector.shape_cast %50 : vector<1x1x32xf32> to vector<1x32xf32>
    %52 = arith.truncf %3 : vector<16x32xf32> to vector<16x32xbf16>
    %cst = arith.constant dense<0.000000e+00> : vector<16x32xf32>
    %53 = tpu.matmul %52, %6, %cst {dimension_numbers = #tpu.dot_dimension_numbers<[1], [0], [0], [1], [0, 0, 1, 1], [], []>} : vector<16x32xbf16>, vector<32x32xbf16>, vector<16x32xf32> -> vector<16x32xf32>
    %54 = vector.broadcast %24 : vector<1x32xf32> to vector<16x32xf32>
    %55 = arith.addf %53, %54 : vector<16x32xf32>
    %cst_34 = arith.constant dense<0.000000e+00> : vector<16x32xf32>
    %56 = tpu.matmul %52, %9, %cst_34 {dimension_numbers = #tpu.dot_dimension_numbers<[1], [0], [0], [1], [0, 0, 1, 1], [], []>} : vector<16x32xbf16>, vector<32x32xbf16>, vector<16x32xf32> -> vector<16x32xf32>
    %57 = vector.broadcast %27 : vector<1x32xf32> to vector<16x32xf32>
    %58 = arith.addf %56, %57 : vector<16x32xf32>
    %cst_35 = arith.constant dense<0.000000e+00> : vector<16x32xf32>
    %59 = tpu.matmul %52, %12, %cst_35 {dimension_numbers = #tpu.dot_dimension_numbers<[1], [0], [0], [1], [0, 0, 1, 1], [], []>} : vector<16x32xbf16>, vector<32x32xbf16>, vector<16x32xf32> -> vector<16x32xf32>
    %60 = vector.broadcast %30 : vector<1x32xf32> to vector<16x32xf32>
    %61 = arith.addf %59, %60 : vector<16x32xf32>
    %62 = vector.extract_strided_slice %55 {offsets = [0, 0], sizes = [8, 32], strides = [1, 1]} : vector<16x32xf32> to vector<8x32xf32>
    %63 = vector.extract_strided_slice %58 {offsets = [0, 0], sizes = [8, 32], strides = [1, 1]} : vector<16x32xf32> to vector<8x32xf32>
    %64 = vector.extract_strided_slice %61 {offsets = [0, 0], sizes = [8, 32], strides = [1, 1]} : vector<16x32xf32> to vector<8x32xf32>
    %c0_36 = arith.constant 0 : index
    %c0_37 = arith.constant 0 : index
    %c0_38 = arith.constant 0 : index
    %65 = vector.load %arg4[%c0_36, %c0_37, %c0_38] : memref<2x1x8xf32, #tpu.memory_space<vmem>>, vector<1x1x8xf32>
    %66 = vector.shape_cast %65 : vector<1x1x8xf32> to vector<1x8xf32>
    %cst_39 = arith.constant 0.000000e+00 : f32
    %67 = vector.broadcast %cst_39 : f32 to vector<8x32xf32>
    %68 = vector.extract_strided_slice %62 {offsets = [0, 0], sizes = [8, 8], strides = [1, 1]} : vector<8x32xf32> to vector<8x8xf32>
    %69 = arith.truncf %68 : vector<8x8xf32> to vector<8x8xbf16>
    %70 = vector.extract_strided_slice %63 {offsets = [0, 0], sizes = [8, 8], strides = [1, 1]} : vector<8x32xf32> to vector<8x8xf32>
    %71 = arith.truncf %70 : vector<8x8xf32> to vector<8x8xbf16>
    %72 = vector.extract_strided_slice %64 {offsets = [0, 0], sizes = [8, 8], strides = [1, 1]} : vector<8x32xf32> to vector<8x8xf32>
    %73 = arith.truncf %72 : vector<8x8xf32> to vector<8x8xbf16>
    %74 = tpu.transpose %71, [1, 0] : vector<8x8xbf16> -> vector<8x8xbf16>
    %cst_40 = arith.constant dense<0.000000e+00> : vector<8x8xf32>
    %75 = tpu.matmul %69, %74, %cst_40 {dimension_numbers = #tpu.dot_dimension_numbers<[1], [0], [0], [1], [0, 0, 1, 1], [], []>} : vector<8x8xbf16>, vector<8x8xbf16>, vector<8x8xf32> -> vector<8x8xf32>
    %cst_41 = arith.constant 0.353553385 : f32
    %76 = vector.broadcast %cst_41 : f32 to vector<8x8xf32>
    %77 = arith.mulf %75, %76 : vector<8x8xf32>
    %78 = vector.broadcast %66 : vector<1x8xf32> to vector<8x8xf32>
    %79 = arith.addf %77, %78 : vector<8x8xf32>
    %cst_42 = arith.constant dense<0xFF800000> : vector<8xf32>
    %80 = vector.multi_reduction <maximumf>, %79, %cst_42 [1] : vector<8x8xf32> to vector<8xf32>
    %81 = vector.shape_cast %80 : vector<8xf32> to vector<8x1xf32>
    %82 = vector.broadcast %81 : vector<8x1xf32> to vector<8x8xf32>
    %83 = arith.subf %79, %82 : vector<8x8xf32>
    %84 = math.exp %83 : vector<8x8xf32>
    %cst_43 = arith.constant dense<0.000000e+00> : vector<8xf32>
    %85 = vector.multi_reduction <add>, %84, %cst_43 [1] : vector<8x8xf32> to vector<8xf32>
    %86 = vector.shape_cast %85 : vector<8xf32> to vector<8x1xf32>
    %87 = tpu.reciprocal %86 {approx = true} : vector<8x1xf32> -> vector<8x1xf32>
    %88 = vector.broadcast %87 : vector<8x1xf32> to vector<8x8xf32>
    %89 = arith.mulf %84, %88 : vector<8x8xf32>
    %90 = arith.truncf %89 : vector<8x8xf32> to vector<8x8xbf16>
    %cst_44 = arith.constant dense<0.000000e+00> : vector<8x8xf32>
    %91 = tpu.matmul %90, %73, %cst_44 {dimension_numbers = #tpu.dot_dimension_numbers<[1], [0], [0], [1], [0, 0, 1, 1], [], []>} : vector<8x8xbf16>, vector<8x8xbf16>, vector<8x8xf32> -> vector<8x8xf32>
    %92 = arith.truncf %91 : vector<8x8xf32> to vector<8x8xbf16>
    %93 = vector.extract_strided_slice %15 {offsets = [0, 0], sizes = [8, 32], strides = [1, 1]} : vector<32x32xbf16> to vector<8x32xbf16>
    %cst_45 = arith.constant dense<0.000000e+00> : vector<8x32xf32>
    %94 = tpu.matmul %92, %93, %cst_45 {dimension_numbers = #tpu.dot_dimension_numbers<[1], [0], [0], [1], [0, 0, 1, 1], [], []>} : vector<8x8xbf16>, vector<8x32xbf16>, vector<8x32xf32> -> vector<8x32xf32>
    %95 = arith.addf %67, %94 : vector<8x32xf32>
    %96 = vector.extract_strided_slice %62 {offsets = [0, 8], sizes = [8, 8], strides = [1, 1]} : vector<8x32xf32> to vector<8x8xf32>
    %97 = arith.truncf %96 : vector<8x8xf32> to vector<8x8xbf16>
    %98 = vector.extract_strided_slice %63 {offsets = [0, 8], sizes = [8, 8], strides = [1, 1]} : vector<8x32xf32> to vector<8x8xf32>
    %99 = arith.truncf %98 : vector<8x8xf32> to vector<8x8xbf16>
    %100 = vector.extract_strided_slice %64 {offsets = [0, 8], sizes = [8, 8], strides = [1, 1]} : vector<8x32xf32> to vector<8x8xf32>
    %101 = arith.truncf %100 : vector<8x8xf32> to vector<8x8xbf16>
    %102 = tpu.transpose %99, [1, 0] : vector<8x8xbf16> -> vector<8x8xbf16>
    %cst_46 = arith.constant dense<0.000000e+00> : vector<8x8xf32>
    %103 = tpu.matmul %97, %102, %cst_46 {dimension_numbers = #tpu.dot_dimension_numbers<[1], [0], [0], [1], [0, 0, 1, 1], [], []>} : vector<8x8xbf16>, vector<8x8xbf16>, vector<8x8xf32> -> vector<8x8xf32>
    %cst_47 = arith.constant 0.353553385 : f32
    %104 = vector.broadcast %cst_47 : f32 to vector<8x8xf32>
    %105 = arith.mulf %103, %104 : vector<8x8xf32>
    %106 = vector.broadcast %66 : vector<1x8xf32> to vector<8x8xf32>
    %107 = arith.addf %105, %106 : vector<8x8xf32>
    %cst_48 = arith.constant dense<0xFF800000> : vector<8xf32>
    %108 = vector.multi_reduction <maximumf>, %107, %cst_48 [1] : vector<8x8xf32> to vector<8xf32>
    %109 = vector.shape_cast %108 : vector<8xf32> to vector<8x1xf32>
    %110 = vector.broadcast %109 : vector<8x1xf32> to vector<8x8xf32>
    %111 = arith.subf %107, %110 : vector<8x8xf32>
    %112 = math.exp %111 : vector<8x8xf32>
    %cst_49 = arith.constant dense<0.000000e+00> : vector<8xf32>
    %113 = vector.multi_reduction <add>, %112, %cst_49 [1] : vector<8x8xf32> to vector<8xf32>
    %114 = vector.shape_cast %113 : vector<8xf32> to vector<8x1xf32>
    %115 = tpu.reciprocal %114 {approx = true} : vector<8x1xf32> -> vector<8x1xf32>
    %116 = vector.broadcast %115 : vector<8x1xf32> to vector<8x8xf32>
    %117 = arith.mulf %112, %116 : vector<8x8xf32>
    %118 = arith.truncf %117 : vector<8x8xf32> to vector<8x8xbf16>
    %cst_50 = arith.constant dense<0.000000e+00> : vector<8x8xf32>
    %119 = tpu.matmul %118, %101, %cst_50 {dimension_numbers = #tpu.dot_dimension_numbers<[1], [0], [0], [1], [0, 0, 1, 1], [], []>} : vector<8x8xbf16>, vector<8x8xbf16>, vector<8x8xf32> -> vector<8x8xf32>
    %120 = arith.truncf %119 : vector<8x8xf32> to vector<8x8xbf16>
    %121 = vector.extract_strided_slice %15 {offsets = [8, 0], sizes = [8, 32], strides = [1, 1]} : vector<32x32xbf16> to vector<8x32xbf16>
    %cst_51 = arith.constant dense<0.000000e+00> : vector<8x32xf32>
    %122 = tpu.matmul %120, %121, %cst_51 {dimension_numbers = #tpu.dot_dimension_numbers<[1], [0], [0], [1], [0, 0, 1, 1], [], []>} : vector<8x8xbf16>, vector<8x32xbf16>, vector<8x32xf32> -> vector<8x32xf32>
    %123 = arith.addf %95, %122 : vector<8x32xf32>
    %124 = vector.extract_strided_slice %62 {offsets = [0, 16], sizes = [8, 8], strides = [1, 1]} : vector<8x32xf32> to vector<8x8xf32>
    %125 = arith.truncf %124 : vector<8x8xf32> to vector<8x8xbf16>
    %126 = vector.extract_strided_slice %63 {offsets = [0, 16], sizes = [8, 8], strides = [1, 1]} : vector<8x32xf32> to vector<8x8xf32>
    %127 = arith.truncf %126 : vector<8x8xf32> to vector<8x8xbf16>
    %128 = vector.extract_strided_slice %64 {offsets = [0, 16], sizes = [8, 8], strides = [1, 1]} : vector<8x32xf32> to vector<8x8xf32>
    %129 = arith.truncf %128 : vector<8x8xf32> to vector<8x8xbf16>
    %130 = tpu.transpose %127, [1, 0] : vector<8x8xbf16> -> vector<8x8xbf16>
    %cst_52 = arith.constant dense<0.000000e+00> : vector<8x8xf32>
    %131 = tpu.matmul %125, %130, %cst_52 {dimension_numbers = #tpu.dot_dimension_numbers<[1], [0], [0], [1], [0, 0, 1, 1], [], []>} : vector<8x8xbf16>, vector<8x8xbf16>, vector<8x8xf32> -> vector<8x8xf32>
    %cst_53 = arith.constant 0.353553385 : f32
    %132 = vector.broadcast %cst_53 : f32 to vector<8x8xf32>
    %133 = arith.mulf %131, %132 : vector<8x8xf32>
    %134 = vector.broadcast %66 : vector<1x8xf32> to vector<8x8xf32>
    %135 = arith.addf %133, %134 : vector<8x8xf32>
    %cst_54 = arith.constant dense<0xFF800000> : vector<8xf32>
    %136 = vector.multi_reduction <maximumf>, %135, %cst_54 [1] : vector<8x8xf32> to vector<8xf32>
    %137 = vector.shape_cast %136 : vector<8xf32> to vector<8x1xf32>
    %138 = vector.broadcast %137 : vector<8x1xf32> to vector<8x8xf32>
    %139 = arith.subf %135, %138 : vector<8x8xf32>
    %140 = math.exp %139 : vector<8x8xf32>
    %cst_55 = arith.constant dense<0.000000e+00> : vector<8xf32>
    %141 = vector.multi_reduction <add>, %140, %cst_55 [1] : vector<8x8xf32> to vector<8xf32>
    %142 = vector.shape_cast %141 : vector<8xf32> to vector<8x1xf32>
    %143 = tpu.reciprocal %142 {approx = true} : vector<8x1xf32> -> vector<8x1xf32>
    %144 = vector.broadcast %143 : vector<8x1xf32> to vector<8x8xf32>
    %145 = arith.mulf %140, %144 : vector<8x8xf32>
    %146 = arith.truncf %145 : vector<8x8xf32> to vector<8x8xbf16>
    %cst_56 = arith.constant dense<0.000000e+00> : vector<8x8xf32>
    %147 = tpu.matmul %146, %129, %cst_56 {dimension_numbers = #tpu.dot_dimension_numbers<[1], [0], [0], [1], [0, 0, 1, 1], [], []>} : vector<8x8xbf16>, vector<8x8xbf16>, vector<8x8xf32> -> vector<8x8xf32>
    %148 = arith.truncf %147 : vector<8x8xf32> to vector<8x8xbf16>
    %149 = vector.extract_strided_slice %15 {offsets = [16, 0], sizes = [8, 32], strides = [1, 1]} : vector<32x32xbf16> to vector<8x32xbf16>
    %cst_57 = arith.constant dense<0.000000e+00> : vector<8x32xf32>
    %150 = tpu.matmul %148, %149, %cst_57 {dimension_numbers = #tpu.dot_dimension_numbers<[1], [0], [0], [1], [0, 0, 1, 1], [], []>} : vector<8x8xbf16>, vector<8x32xbf16>, vector<8x32xf32> -> vector<8x32xf32>
    %151 = arith.addf %123, %150 : vector<8x32xf32>
    %152 = vector.extract_strided_slice %62 {offsets = [0, 24], sizes = [8, 8], strides = [1, 1]} : vector<8x32xf32> to vector<8x8xf32>
    %153 = arith.truncf %152 : vector<8x8xf32> to vector<8x8xbf16>
    %154 = vector.extract_strided_slice %63 {offsets = [0, 24], sizes = [8, 8], strides = [1, 1]} : vector<8x32xf32> to vector<8x8xf32>
    %155 = arith.truncf %154 : vector<8x8xf32> to vector<8x8xbf16>
    %156 = vector.extract_strided_slice %64 {offsets = [0, 24], sizes = [8, 8], strides = [1, 1]} : vector<8x32xf32> to vector<8x8xf32>
    %157 = arith.truncf %156 : vector<8x8xf32> to vector<8x8xbf16>
    %158 = tpu.transpose %155, [1, 0] : vector<8x8xbf16> -> vector<8x8xbf16>
    %cst_58 = arith.constant dense<0.000000e+00> : vector<8x8xf32>
    %159 = tpu.matmul %153, %158, %cst_58 {dimension_numbers = #tpu.dot_dimension_numbers<[1], [0], [0], [1], [0, 0, 1, 1], [], []>} : vector<8x8xbf16>, vector<8x8xbf16>, vector<8x8xf32> -> vector<8x8xf32>
    %cst_59 = arith.constant 0.353553385 : f32
    %160 = vector.broadcast %cst_59 : f32 to vector<8x8xf32>
    %161 = arith.mulf %159, %160 : vector<8x8xf32>
    %162 = vector.broadcast %66 : vector<1x8xf32> to vector<8x8xf32>
    %163 = arith.addf %161, %162 : vector<8x8xf32>
    %cst_60 = arith.constant dense<0xFF800000> : vector<8xf32>
    %164 = vector.multi_reduction <maximumf>, %163, %cst_60 [1] : vector<8x8xf32> to vector<8xf32>
    %165 = vector.shape_cast %164 : vector<8xf32> to vector<8x1xf32>
    %166 = vector.broadcast %165 : vector<8x1xf32> to vector<8x8xf32>
    %167 = arith.subf %163, %166 : vector<8x8xf32>
    %168 = math.exp %167 : vector<8x8xf32>
    %cst_61 = arith.constant dense<0.000000e+00> : vector<8xf32>
    %169 = vector.multi_reduction <add>, %168, %cst_61 [1] : vector<8x8xf32> to vector<8xf32>
    %170 = vector.shape_cast %169 : vector<8xf32> to vector<8x1xf32>
    %171 = tpu.reciprocal %170 {approx = true} : vector<8x1xf32> -> vector<8x1xf32>
    %172 = vector.broadcast %171 : vector<8x1xf32> to vector<8x8xf32>
    %173 = arith.mulf %168, %172 : vector<8x8xf32>
    %174 = arith.truncf %173 : vector<8x8xf32> to vector<8x8xbf16>
    %cst_62 = arith.constant dense<0.000000e+00> : vector<8x8xf32>
    %175 = tpu.matmul %174, %157, %cst_62 {dimension_numbers = #tpu.dot_dimension_numbers<[1], [0], [0], [1], [0, 0, 1, 1], [], []>} : vector<8x8xbf16>, vector<8x8xbf16>, vector<8x8xf32> -> vector<8x8xf32>
    %176 = arith.truncf %175 : vector<8x8xf32> to vector<8x8xbf16>
    %177 = vector.extract_strided_slice %15 {offsets = [24, 0], sizes = [8, 32], strides = [1, 1]} : vector<32x32xbf16> to vector<8x32xbf16>
    %cst_63 = arith.constant dense<0.000000e+00> : vector<8x32xf32>
    %178 = tpu.matmul %176, %177, %cst_63 {dimension_numbers = #tpu.dot_dimension_numbers<[1], [0], [0], [1], [0, 0, 1, 1], [], []>} : vector<8x8xbf16>, vector<8x32xbf16>, vector<8x32xf32> -> vector<8x32xf32>
    %179 = arith.addf %151, %178 : vector<8x32xf32>
    %180 = vector.extract_strided_slice %55 {offsets = [8, 0], sizes = [8, 32], strides = [1, 1]} : vector<16x32xf32> to vector<8x32xf32>
    %181 = vector.extract_strided_slice %58 {offsets = [8, 0], sizes = [8, 32], strides = [1, 1]} : vector<16x32xf32> to vector<8x32xf32>
    %182 = vector.extract_strided_slice %61 {offsets = [8, 0], sizes = [8, 32], strides = [1, 1]} : vector<16x32xf32> to vector<8x32xf32>
    %c1 = arith.constant 1 : index
    %c0_64 = arith.constant 0 : index
    %c0_65 = arith.constant 0 : index
    %183 = vector.load %arg4[%c1, %c0_64, %c0_65] : memref<2x1x8xf32, #tpu.memory_space<vmem>>, vector<1x1x8xf32>
    %184 = vector.shape_cast %183 : vector<1x1x8xf32> to vector<1x8xf32>
    %cst_66 = arith.constant 0.000000e+00 : f32
    %185 = vector.broadcast %cst_66 : f32 to vector<8x32xf32>
    %186 = vector.extract_strided_slice %180 {offsets = [0, 0], sizes = [8, 8], strides = [1, 1]} : vector<8x32xf32> to vector<8x8xf32>
    %187 = arith.truncf %186 : vector<8x8xf32> to vector<8x8xbf16>
    %188 = vector.extract_strided_slice %181 {offsets = [0, 0], sizes = [8, 8], strides = [1, 1]} : vector<8x32xf32> to vector<8x8xf32>
    %189 = arith.truncf %188 : vector<8x8xf32> to vector<8x8xbf16>
    %190 = vector.extract_strided_slice %182 {offsets = [0, 0], sizes = [8, 8], strides = [1, 1]} : vector<8x32xf32> to vector<8x8xf32>
    %191 = arith.truncf %190 : vector<8x8xf32> to vector<8x8xbf16>
    %192 = tpu.transpose %189, [1, 0] : vector<8x8xbf16> -> vector<8x8xbf16>
    %cst_67 = arith.constant dense<0.000000e+00> : vector<8x8xf32>
    %193 = tpu.matmul %187, %192, %cst_67 {dimension_numbers = #tpu.dot_dimension_numbers<[1], [0], [0], [1], [0, 0, 1, 1], [], []>} : vector<8x8xbf16>, vector<8x8xbf16>, vector<8x8xf32> -> vector<8x8xf32>
    %cst_68 = arith.constant 0.353553385 : f32
    %194 = vector.broadcast %cst_68 : f32 to vector<8x8xf32>
    %195 = arith.mulf %193, %194 : vector<8x8xf32>
    %196 = vector.broadcast %184 : vector<1x8xf32> to vector<8x8xf32>
    %197 = arith.addf %195, %196 : vector<8x8xf32>
    %cst_69 = arith.constant dense<0xFF800000> : vector<8xf32>
    %198 = vector.multi_reduction <maximumf>, %197, %cst_69 [1] : vector<8x8xf32> to vector<8xf32>
    %199 = vector.shape_cast %198 : vector<8xf32> to vector<8x1xf32>
    %200 = vector.broadcast %199 : vector<8x1xf32> to vector<8x8xf32>
    %201 = arith.subf %197, %200 : vector<8x8xf32>
    %202 = math.exp %201 : vector<8x8xf32>
    %cst_70 = arith.constant dense<0.000000e+00> : vector<8xf32>
    %203 = vector.multi_reduction <add>, %202, %cst_70 [1] : vector<8x8xf32> to vector<8xf32>
    %204 = vector.shape_cast %203 : vector<8xf32> to vector<8x1xf32>
    %205 = tpu.reciprocal %204 {approx = true} : vector<8x1xf32> -> vector<8x1xf32>
    %206 = vector.broadcast %205 : vector<8x1xf32> to vector<8x8xf32>
    %207 = arith.mulf %202, %206 : vector<8x8xf32>
    %208 = arith.truncf %207 : vector<8x8xf32> to vector<8x8xbf16>
    %cst_71 = arith.constant dense<0.000000e+00> : vector<8x8xf32>
    %209 = tpu.matmul %208, %191, %cst_71 {dimension_numbers = #tpu.dot_dimension_numbers<[1], [0], [0], [1], [0, 0, 1, 1], [], []>} : vector<8x8xbf16>, vector<8x8xbf16>, vector<8x8xf32> -> vector<8x8xf32>
    %210 = arith.truncf %209 : vector<8x8xf32> to vector<8x8xbf16>
    %211 = vector.extract_strided_slice %15 {offsets = [0, 0], sizes = [8, 32], strides = [1, 1]} : vector<32x32xbf16> to vector<8x32xbf16>
    %cst_72 = arith.constant dense<0.000000e+00> : vector<8x32xf32>
    %212 = tpu.matmul %210, %211, %cst_72 {dimension_numbers = #tpu.dot_dimension_numbers<[1], [0], [0], [1], [0, 0, 1, 1], [], []>} : vector<8x8xbf16>, vector<8x32xbf16>, vector<8x32xf32> -> vector<8x32xf32>
    %213 = arith.addf %185, %212 : vector<8x32xf32>
    %214 = vector.extract_strided_slice %180 {offsets = [0, 8], sizes = [8, 8], strides = [1, 1]} : vector<8x32xf32> to vector<8x8xf32>
    %215 = arith.truncf %214 : vector<8x8xf32> to vector<8x8xbf16>
    %216 = vector.extract_strided_slice %181 {offsets = [0, 8], sizes = [8, 8], strides = [1, 1]} : vector<8x32xf32> to vector<8x8xf32>
    %217 = arith.truncf %216 : vector<8x8xf32> to vector<8x8xbf16>
    %218 = vector.extract_strided_slice %182 {offsets = [0, 8], sizes = [8, 8], strides = [1, 1]} : vector<8x32xf32> to vector<8x8xf32>
    %219 = arith.truncf %218 : vector<8x8xf32> to vector<8x8xbf16>
    %220 = tpu.transpose %217, [1, 0] : vector<8x8xbf16> -> vector<8x8xbf16>
    %cst_73 = arith.constant dense<0.000000e+00> : vector<8x8xf32>
    %221 = tpu.matmul %215, %220, %cst_73 {dimension_numbers = #tpu.dot_dimension_numbers<[1], [0], [0], [1], [0, 0, 1, 1], [], []>} : vector<8x8xbf16>, vector<8x8xbf16>, vector<8x8xf32> -> vector<8x8xf32>
    %cst_74 = arith.constant 0.353553385 : f32
    %222 = vector.broadcast %cst_74 : f32 to vector<8x8xf32>
    %223 = arith.mulf %221, %222 : vector<8x8xf32>
    %224 = vector.broadcast %184 : vector<1x8xf32> to vector<8x8xf32>
    %225 = arith.addf %223, %224 : vector<8x8xf32>
    %cst_75 = arith.constant dense<0xFF800000> : vector<8xf32>
    %226 = vector.multi_reduction <maximumf>, %225, %cst_75 [1] : vector<8x8xf32> to vector<8xf32>
    %227 = vector.shape_cast %226 : vector<8xf32> to vector<8x1xf32>
    %228 = vector.broadcast %227 : vector<8x1xf32> to vector<8x8xf32>
    %229 = arith.subf %225, %228 : vector<8x8xf32>
    %230 = math.exp %229 : vector<8x8xf32>
    %cst_76 = arith.constant dense<0.000000e+00> : vector<8xf32>
    %231 = vector.multi_reduction <add>, %230, %cst_76 [1] : vector<8x8xf32> to vector<8xf32>
    %232 = vector.shape_cast %231 : vector<8xf32> to vector<8x1xf32>
    %233 = tpu.reciprocal %232 {approx = true} : vector<8x1xf32> -> vector<8x1xf32>
    %234 = vector.broadcast %233 : vector<8x1xf32> to vector<8x8xf32>
    %235 = arith.mulf %230, %234 : vector<8x8xf32>
    %236 = arith.truncf %235 : vector<8x8xf32> to vector<8x8xbf16>
    %cst_77 = arith.constant dense<0.000000e+00> : vector<8x8xf32>
    %237 = tpu.matmul %236, %219, %cst_77 {dimension_numbers = #tpu.dot_dimension_numbers<[1], [0], [0], [1], [0, 0, 1, 1], [], []>} : vector<8x8xbf16>, vector<8x8xbf16>, vector<8x8xf32> -> vector<8x8xf32>
    %238 = arith.truncf %237 : vector<8x8xf32> to vector<8x8xbf16>
    %239 = vector.extract_strided_slice %15 {offsets = [8, 0], sizes = [8, 32], strides = [1, 1]} : vector<32x32xbf16> to vector<8x32xbf16>
    %cst_78 = arith.constant dense<0.000000e+00> : vector<8x32xf32>
    %240 = tpu.matmul %238, %239, %cst_78 {dimension_numbers = #tpu.dot_dimension_numbers<[1], [0], [0], [1], [0, 0, 1, 1], [], []>} : vector<8x8xbf16>, vector<8x32xbf16>, vector<8x32xf32> -> vector<8x32xf32>
    %241 = arith.addf %213, %240 : vector<8x32xf32>
    %242 = vector.extract_strided_slice %180 {offsets = [0, 16], sizes = [8, 8], strides = [1, 1]} : vector<8x32xf32> to vector<8x8xf32>
    %243 = arith.truncf %242 : vector<8x8xf32> to vector<8x8xbf16>
    %244 = vector.extract_strided_slice %181 {offsets = [0, 16], sizes = [8, 8], strides = [1, 1]} : vector<8x32xf32> to vector<8x8xf32>
    %245 = arith.truncf %244 : vector<8x8xf32> to vector<8x8xbf16>
    %246 = vector.extract_strided_slice %182 {offsets = [0, 16], sizes = [8, 8], strides = [1, 1]} : vector<8x32xf32> to vector<8x8xf32>
    %247 = arith.truncf %246 : vector<8x8xf32> to vector<8x8xbf16>
    %248 = tpu.transpose %245, [1, 0] : vector<8x8xbf16> -> vector<8x8xbf16>
    %cst_79 = arith.constant dense<0.000000e+00> : vector<8x8xf32>
    %249 = tpu.matmul %243, %248, %cst_79 {dimension_numbers = #tpu.dot_dimension_numbers<[1], [0], [0], [1], [0, 0, 1, 1], [], []>} : vector<8x8xbf16>, vector<8x8xbf16>, vector<8x8xf32> -> vector<8x8xf32>
    %cst_80 = arith.constant 0.353553385 : f32
    %250 = vector.broadcast %cst_80 : f32 to vector<8x8xf32>
    %251 = arith.mulf %249, %250 : vector<8x8xf32>
    %252 = vector.broadcast %184 : vector<1x8xf32> to vector<8x8xf32>
    %253 = arith.addf %251, %252 : vector<8x8xf32>
    %cst_81 = arith.constant dense<0xFF800000> : vector<8xf32>
    %254 = vector.multi_reduction <maximumf>, %253, %cst_81 [1] : vector<8x8xf32> to vector<8xf32>
    %255 = vector.shape_cast %254 : vector<8xf32> to vector<8x1xf32>
    %256 = vector.broadcast %255 : vector<8x1xf32> to vector<8x8xf32>
    %257 = arith.subf %253, %256 : vector<8x8xf32>
    %258 = math.exp %257 : vector<8x8xf32>
    %cst_82 = arith.constant dense<0.000000e+00> : vector<8xf32>
    %259 = vector.multi_reduction <add>, %258, %cst_82 [1] : vector<8x8xf32> to vector<8xf32>
    %260 = vector.shape_cast %259 : vector<8xf32> to vector<8x1xf32>
    %261 = tpu.reciprocal %260 {approx = true} : vector<8x1xf32> -> vector<8x1xf32>
    %262 = vector.broadcast %261 : vector<8x1xf32> to vector<8x8xf32>
    %263 = arith.mulf %258, %262 : vector<8x8xf32>
    %264 = arith.truncf %263 : vector<8x8xf32> to vector<8x8xbf16>
    %cst_83 = arith.constant dense<0.000000e+00> : vector<8x8xf32>
    %265 = tpu.matmul %264, %247, %cst_83 {dimension_numbers = #tpu.dot_dimension_numbers<[1], [0], [0], [1], [0, 0, 1, 1], [], []>} : vector<8x8xbf16>, vector<8x8xbf16>, vector<8x8xf32> -> vector<8x8xf32>
    %266 = arith.truncf %265 : vector<8x8xf32> to vector<8x8xbf16>
    %267 = vector.extract_strided_slice %15 {offsets = [16, 0], sizes = [8, 32], strides = [1, 1]} : vector<32x32xbf16> to vector<8x32xbf16>
    %cst_84 = arith.constant dense<0.000000e+00> : vector<8x32xf32>
    %268 = tpu.matmul %266, %267, %cst_84 {dimension_numbers = #tpu.dot_dimension_numbers<[1], [0], [0], [1], [0, 0, 1, 1], [], []>} : vector<8x8xbf16>, vector<8x32xbf16>, vector<8x32xf32> -> vector<8x32xf32>
    %269 = arith.addf %241, %268 : vector<8x32xf32>
    %270 = vector.extract_strided_slice %180 {offsets = [0, 24], sizes = [8, 8], strides = [1, 1]} : vector<8x32xf32> to vector<8x8xf32>
    %271 = arith.truncf %270 : vector<8x8xf32> to vector<8x8xbf16>
    %272 = vector.extract_strided_slice %181 {offsets = [0, 24], sizes = [8, 8], strides = [1, 1]} : vector<8x32xf32> to vector<8x8xf32>
    %273 = arith.truncf %272 : vector<8x8xf32> to vector<8x8xbf16>
    %274 = vector.extract_strided_slice %182 {offsets = [0, 24], sizes = [8, 8], strides = [1, 1]} : vector<8x32xf32> to vector<8x8xf32>
    %275 = arith.truncf %274 : vector<8x8xf32> to vector<8x8xbf16>
    %276 = tpu.transpose %273, [1, 0] : vector<8x8xbf16> -> vector<8x8xbf16>
    %cst_85 = arith.constant dense<0.000000e+00> : vector<8x8xf32>
    %277 = tpu.matmul %271, %276, %cst_85 {dimension_numbers = #tpu.dot_dimension_numbers<[1], [0], [0], [1], [0, 0, 1, 1], [], []>} : vector<8x8xbf16>, vector<8x8xbf16>, vector<8x8xf32> -> vector<8x8xf32>
    %cst_86 = arith.constant 0.353553385 : f32
    %278 = vector.broadcast %cst_86 : f32 to vector<8x8xf32>
    %279 = arith.mulf %277, %278 : vector<8x8xf32>
    %280 = vector.broadcast %184 : vector<1x8xf32> to vector<8x8xf32>
    %281 = arith.addf %279, %280 : vector<8x8xf32>
    %cst_87 = arith.constant dense<0xFF800000> : vector<8xf32>
    %282 = vector.multi_reduction <maximumf>, %281, %cst_87 [1] : vector<8x8xf32> to vector<8xf32>
    %283 = vector.shape_cast %282 : vector<8xf32> to vector<8x1xf32>
    %284 = vector.broadcast %283 : vector<8x1xf32> to vector<8x8xf32>
    %285 = arith.subf %281, %284 : vector<8x8xf32>
    %286 = math.exp %285 : vector<8x8xf32>
    %cst_88 = arith.constant dense<0.000000e+00> : vector<8xf32>
    %287 = vector.multi_reduction <add>, %286, %cst_88 [1] : vector<8x8xf32> to vector<8xf32>
    %288 = vector.shape_cast %287 : vector<8xf32> to vector<8x1xf32>
    %289 = tpu.reciprocal %288 {approx = true} : vector<8x1xf32> -> vector<8x1xf32>
    %290 = vector.broadcast %289 : vector<8x1xf32> to vector<8x8xf32>
    %291 = arith.mulf %286, %290 : vector<8x8xf32>
    %292 = arith.truncf %291 : vector<8x8xf32> to vector<8x8xbf16>
    %cst_89 = arith.constant dense<0.000000e+00> : vector<8x8xf32>
    %293 = tpu.matmul %292, %275, %cst_89 {dimension_numbers = #tpu.dot_dimension_numbers<[1], [0], [0], [1], [0, 0, 1, 1], [], []>} : vector<8x8xbf16>, vector<8x8xbf16>, vector<8x8xf32> -> vector<8x8xf32>
    %294 = arith.truncf %293 : vector<8x8xf32> to vector<8x8xbf16>
    %295 = vector.extract_strided_slice %15 {offsets = [24, 0], sizes = [8, 32], strides = [1, 1]} : vector<32x32xbf16> to vector<8x32xbf16>
    %cst_90 = arith.constant dense<0.000000e+00> : vector<8x32xf32>
    %296 = tpu.matmul %294, %295, %cst_90 {dimension_numbers = #tpu.dot_dimension_numbers<[1], [0], [0], [1], [0, 0, 1, 1], [], []>} : vector<8x8xbf16>, vector<8x32xbf16>, vector<8x32xf32> -> vector<8x32xf32>
    %297 = arith.addf %269, %296 : vector<8x32xf32>
    %298 = tpu.concatenate %179, %297 in 0 : vector<8x32xf32>, vector<8x32xf32> -> vector<16x32xf32>
    %299 = vector.broadcast %33 : vector<1x32xf32> to vector<16x32xf32>
    %300 = arith.addf %298, %299 : vector<16x32xf32>
    %301 = arith.addf %300, %3 : vector<16x32xf32>
    %cst_91 = arith.constant dense<0.000000e+00> : vector<16xf32>
    %302 = vector.multi_reduction <add>, %301, %cst_91 [1] : vector<16x32xf32> to vector<16xf32>
    %303 = vector.shape_cast %302 : vector<16xf32> to vector<16x1xf32>
    %cst_92 = arith.constant 3.200000e+01 : f32
    %304 = vector.broadcast %cst_92 : f32 to vector<16x1xf32>
    %305 = arith.divf %303, %304 : vector<16x1xf32>
    %306 = vector.broadcast %305 : vector<16x1xf32> to vector<16x32xf32>
    %307 = arith.subf %301, %306 : vector<16x32xf32>
    %308 = arith.mulf %307, %307 : vector<16x32xf32>
    %cst_93 = arith.constant dense<0.000000e+00> : vector<16xf32>
    %309 = vector.multi_reduction <add>, %308, %cst_93 [1] : vector<16x32xf32> to vector<16xf32>
    %310 = vector.shape_cast %309 : vector<16xf32> to vector<16x1xf32>
    %cst_94 = arith.constant 3.200000e+01 : f32
    %311 = vector.broadcast %cst_94 : f32 to vector<16x1xf32>
    %312 = arith.divf %310, %311 : vector<16x1xf32>
    %cst_95 = arith.constant 9.99999996E-13 : f32
    %313 = vector.broadcast %cst_95 : f32 to vector<16x1xf32>
    %314 = arith.addf %312, %313 : vector<16x1xf32>
    %315 = math.rsqrt %314 : vector<16x1xf32>
    %316 = vector.broadcast %315 : vector<16x1xf32> to vector<16x32xf32>
    %317 = arith.mulf %307, %316 : vector<16x32xf32>
    %318 = vector.broadcast %42 : vector<1x32xf32> to vector<16x32xf32>
    %319 = arith.mulf %317, %318 : vector<16x32xf32>
    %320 = vector.broadcast %45 : vector<1x32xf32> to vector<16x32xf32>
    %321 = arith.addf %319, %320 : vector<16x32xf32>
    %322 = arith.truncf %321 : vector<16x32xf32> to vector<16x32xbf16>
    %cst_96 = arith.constant dense<0.000000e+00> : vector<16x64xf32>
    %323 = tpu.matmul %322, %18, %cst_96 {dimension_numbers = #tpu.dot_dimension_numbers<[1], [0], [0], [1], [0, 0, 1, 1], [], []>} : vector<16x32xbf16>, vector<32x64xbf16>, vector<16x64xf32> -> vector<16x64xf32>
    %324 = vector.broadcast %36 : vector<1x64xf32> to vector<16x64xf32>
    %325 = arith.addf %323, %324 : vector<16x64xf32>
    %cst_97 = arith.constant 5.000000e-01 : f32
    %326 = vector.broadcast %cst_97 : f32 to vector<16x64xf32>
    %327 = arith.mulf %325, %326 : vector<16x64xf32>
    %cst_98 = arith.constant 0.707106769 : f32
    %328 = vector.broadcast %cst_98 : f32 to vector<16x64xf32>
    %329 = arith.mulf %325, %328 : vector<16x64xf32>
    %330 = math.erf %329 : vector<16x64xf32>
    %cst_99 = arith.constant 1.000000e+00 : f32
    %331 = vector.broadcast %cst_99 : f32 to vector<16x64xf32>
    %332 = arith.addf %331, %330 : vector<16x64xf32>
    %333 = arith.mulf %327, %332 : vector<16x64xf32>
    %334 = arith.truncf %333 : vector<16x64xf32> to vector<16x64xbf16>
    %cst_100 = arith.constant dense<0.000000e+00> : vector<16x32xf32>
    %335 = tpu.matmul %334, %21, %cst_100 {dimension_numbers = #tpu.dot_dimension_numbers<[1], [0], [0], [1], [0, 0, 1, 1], [], []>} : vector<16x64xbf16>, vector<64x32xbf16>, vector<16x32xf32> -> vector<16x32xf32>
    %336 = vector.broadcast %39 : vector<1x32xf32> to vector<16x32xf32>
    %337 = arith.addf %335, %336 : vector<16x32xf32>
    %338 = arith.addf %337, %321 : vector<16x32xf32>
    %cst_101 = arith.constant dense<0.000000e+00> : vector<16xf32>
    %339 = vector.multi_reduction <add>, %338, %cst_101 [1] : vector<16x32xf32> to vector<16xf32>
    %340 = vector.shape_cast %339 : vector<16xf32> to vector<16x1xf32>
    %cst_102 = arith.constant 3.200000e+01 : f32
    %341 = vector.broadcast %cst_102 : f32 to vector<16x1xf32>
    %342 = arith.divf %340, %341 : vector<16x1xf32>
    %343 = vector.broadcast %342 : vector<16x1xf32> to vector<16x32xf32>
    %344 = arith.subf %338, %343 : vector<16x32xf32>
    %345 = arith.mulf %344, %344 : vector<16x32xf32>
    %cst_103 = arith.constant dense<0.000000e+00> : vector<16xf32>
    %346 = vector.multi_reduction <add>, %345, %cst_103 [1] : vector<16x32xf32> to vector<16xf32>
    %347 = vector.shape_cast %346 : vector<16xf32> to vector<16x1xf32>
    %cst_104 = arith.constant 3.200000e+01 : f32
    %348 = vector.broadcast %cst_104 : f32 to vector<16x1xf32>
    %349 = arith.divf %347, %348 : vector<16x1xf32>
    %cst_105 = arith.constant 9.99999996E-13 : f32
    %350 = vector.broadcast %cst_105 : f32 to vector<16x1xf32>
    %351 = arith.addf %349, %350 : vector<16x1xf32>
    %352 = math.rsqrt %351 : vector<16x1xf32>
    %353 = vector.broadcast %352 : vector<16x1xf32> to vector<16x32xf32>
    %354 = arith.mulf %344, %353 : vector<16x32xf32>
    %355 = vector.broadcast %48 : vector<1x32xf32> to vector<16x32xf32>
    %356 = arith.mulf %354, %355 : vector<16x32xf32>
    %357 = vector.broadcast %51 : vector<1x32xf32> to vector<16x32xf32>
    %358 = arith.addf %356, %357 : vector<16x32xf32>
    %c0_106 = arith.constant 0 : index
    %c0_107 = arith.constant 0 : index
    %359 = vector.load %arg22[%c0_106, %c0_107] : memref<16x32xf32, #tpu.memory_space<vmem>>, vector<16x32xf32>
    tpu.vector_store %arg22[%c0_106, %c0_107], %358 {strides = array<i32>} : memref<16x32xf32, #tpu.memory_space<vmem>>, vector<16x32xf32>,
    %360 = vector.shape_cast %358 : vector<16x32xf32> to vector<1x2x8x32xf32>
    %c0_108 = arith.constant 0 : index
    %c0_109 = arith.constant 0 : index
    %c0_110 = arith.constant 0 : index
    %c0_111 = arith.constant 0 : index
    %361 = vector.load %arg21[%c0_108, %c0_109, %c0_110, %c0_111] : memref<1x2x8x32xf32, #tpu.memory_space<vmem>>, vector<1x2x8x32xf32>
    tpu.vector_store %arg21[%c0_108, %c0_109, %c0_110, %c0_111], %360 {strides = array<i32>} : memref<1x2x8x32xf32, #tpu.memory_space<vmem>>, vector<1x2x8x32xf32>,
    return
  }
  func.func @transform_0(%arg0: i32, %arg1: i32) -> (i32, i32, i32) {
    %c0_i32 = arith.constant 0 : i32
    %c0_i32_0 = arith.constant 0 : i32
    %c0_i32_1 = arith.constant 0 : i32
    return %arg0, %c0_i32, %c0_i32_0 : i32, i32, i32
  }
  func.func @transform_1(%arg0: i32, %arg1: i32) -> (i32, i32, i32) {
    %c0_i32 = arith.constant 0 : i32
    %c0_i32_0 = arith.constant 0 : i32
    %c0_i32_1 = arith.constant 0 : i32
    return %arg0, %c0_i32, %c0_i32_0 : i32, i32, i32
  }
  func.func @transform_2(%arg0: i32, %arg1: i32) -> (i32, i32, i32) {
    %c0_i32 = arith.constant 0 : i32
    %c0_i32_0 = arith.constant 0 : i32
    %c0_i32_1 = arith.constant 0 : i32
    return %arg0, %c0_i32, %c0_i32_0 : i32, i32, i32
  }
  func.func @transform_3(%arg0: i32, %arg1: i32) -> (i32, i32, i32) {
    %c0_i32 = arith.constant 0 : i32
    %c0_i32_0 = arith.constant 0 : i32
    %c0_i32_1 = arith.constant 0 : i32
    %c0_i32_2 = arith.constant 0 : i32
    return %c0_i32, %c0_i32_0, %c0_i32_1 : i32, i32, i32
  }
  func.func @transform_4(%arg0: i32, %arg1: i32) -> (i32, i32, i32) {
    %c0_i32 = arith.constant 0 : i32
    %c0_i32_0 = arith.constant 0 : i32
    %c0_i32_1 = arith.constant 0 : i32
    %c0_i32_2 = arith.constant 0 : i32
    return %c0_i32, %c0_i32_0, %c0_i32_1 : i32, i32, i32
  }
  func.func @transform_5(%arg0: i32, %arg1: i32) -> (i32, i32, i32) {
    %c0_i32 = arith.constant 0 : i32
    %c0_i32_0 = arith.constant 0 : i32
    %c0_i32_1 = arith.constant 0 : i32
    %c0_i32_2 = arith.constant 0 : i32
    return %c0_i32, %c0_i32_0, %c0_i32_1 : i32, i32, i32
  }
  func.func @transform_6(%arg0: i32, %arg1: i32) -> (i32, i32, i32) {
    %c0_i32 = arith.constant 0 : i32
    %c0_i32_0 = arith.constant 0 : i32
    %c0_i32_1 = arith.constant 0 : i32
    %c0_i32_2 = arith.constant 0 : i32
    return %c0_i32, %c0_i32_0, %c0_i32_1 : i32, i32, i32
  }
  func.func @transform_7(%arg0: i32, %arg1: i32) -> (i32, i32, i32) {
    %c0_i32 = arith.constant 0 : i32
    %c0_i32_0 = arith.constant 0 : i32
    %c0_i32_1 = arith.constant 0 : i32
    %c0_i32_2 = arith.constant 0 : i32
    return %c0_i32, %c0_i32_0, %c0_i32_1 : i32, i32, i32
  }
  func.func @transform_8(%arg0: i32, %arg1: i32) -> (i32, i32, i32) {
    %c0_i32 = arith.constant 0 : i32
    %c0_i32_0 = arith.constant 0 : i32
    %c0_i32_1 = arith.constant 0 : i32
    %c0_i32_2 = arith.constant 0 : i32
    return %c0_i32, %c0_i32_0, %c0_i32_1 : i32, i32, i32
  }
  func.func @transform_9(%arg0: i32, %arg1: i32) -> (i32, i32, i32) {
    %c0_i32 = arith.constant 0 : i32
    %c0_i32_0 = arith.constant 0 : i32
    %c0_i32_1 = arith.constant 0 : i32
    %c0_i32_2 = arith.constant 0 : i32
    return %c0_i32, %c0_i32_0, %c0_i32_1 : i32, i32, i32
  }
  func.func @transform_10(%arg0: i32, %arg1: i32) -> (i32, i32, i32) {
    %c0_i32 = arith.constant 0 : i32
    %c0_i32_0 = arith.constant 0 : i32
    %c0_i32_1 = arith.constant 0 : i32
    %c0_i32_2 = arith.constant 0 : i32
    return %c0_i32, %c0_i32_0, %c0_i32_1 : i32, i32, i32
  }
  func.func @transform_11(%arg0: i32, %arg1: i32) -> (i32, i32, i32) {
    %c0_i32 = arith.constant 0 : i32
    %c0_i32_0 = arith.constant 0 : i32
    %c0_i32_1 = arith.constant 0 : i32
    %c0_i32_2 = arith.constant 0 : i32
    return %c0_i32, %c0_i32_0, %c0_i32_1 : i32, i32, i32
  }
  func.func @transform_12(%arg0: i32, %arg1: i32) -> (i32, i32, i32) {
    %c0_i32 = arith.constant 0 : i32
    %c0_i32_0 = arith.constant 0 : i32
    %c0_i32_1 = arith.constant 0 : i32
    %c0_i32_2 = arith.constant 0 : i32
    return %c0_i32, %c0_i32_0, %c0_i32_1 : i32, i32, i32
  }
  func.func @transform_13(%arg0: i32, %arg1: i32) -> (i32, i32, i32) {
    %c0_i32 = arith.constant 0 : i32
    %c0_i32_0 = arith.constant 0 : i32
    %c0_i32_1 = arith.constant 0 : i32
    %c0_i32_2 = arith.constant 0 : i32
    return %c0_i32, %c0_i32_0, %c0_i32_1 : i32, i32, i32
  }
  func.func @transform_14(%arg0: i32, %arg1: i32) -> (i32, i32, i32) {
    %c0_i32 = arith.constant 0 : i32
    %c0_i32_0 = arith.constant 0 : i32
    %c0_i32_1 = arith.constant 0 : i32
    %c0_i32_2 = arith.constant 0 : i32
    return %c0_i32, %c0_i32_0, %c0_i32_1 : i32, i32, i32
  }
  func.func @transform_15(%arg0: i32, %arg1: i32) -> (i32, i32, i32) {
    %c0_i32 = arith.constant 0 : i32
    %c0_i32_0 = arith.constant 0 : i32
    %c0_i32_1 = arith.constant 0 : i32
    %c0_i32_2 = arith.constant 0 : i32
    return %c0_i32, %c0_i32_0, %c0_i32_1 : i32, i32, i32
  }
  func.func @transform_16(%arg0: i32, %arg1: i32) -> (i32, i32, i32) {
    %c0_i32 = arith.constant 0 : i32
    %c0_i32_0 = arith.constant 0 : i32
    %c0_i32_1 = arith.constant 0 : i32
    %c0_i32_2 = arith.constant 0 : i32
    return %c0_i32, %c0_i32_0, %c0_i32_1 : i32, i32, i32
  }
  func.func @transform_17(%arg0: i32, %arg1: i32) -> (i32, i32, i32) {
    %c0_i32 = arith.constant 0 : i32
    %c0_i32_0 = arith.constant 0 : i32
    %c0_i32_1 = arith.constant 0 : i32
    %c0_i32_2 = arith.constant 0 : i32
    return %c0_i32, %c0_i32_0, %c0_i32_1 : i32, i32, i32
  }
  func.func @transform_18(%arg0: i32, %arg1: i32) -> (i32, i32, i32) {
    %c0_i32 = arith.constant 0 : i32
    %c0_i32_0 = arith.constant 0 : i32
    %c0_i32_1 = arith.constant 0 : i32
    %c0_i32_2 = arith.constant 0 : i32
    return %c0_i32, %c0_i32_0, %c0_i32_1 : i32, i32, i32
  }
  func.func @transform_19(%arg0: i32, %arg1: i32) -> (i32, i32, i32, i32) {
    %c0_i32 = arith.constant 0 : i32
    %c0_i32_0 = arith.constant 0 : i32
    %c0_i32_1 = arith.constant 0 : i32
    return %arg1, %arg0, %c0_i32, %c0_i32_0 : i32, i32, i32, i32
  }
}

</mosaic_0001>

<llo_original>
// kernel: tpu_custom_call.1
$region0: #{tpu_custom_call.1}
  #allocation0 [shape = 'u32[]', space=smem, size = 0x4, offset = 0x4, fixed_abs, tag = 'smem constant byte address 0x4 - core index']
  #allocation1 [shape = 'u32[144,128]{1,0:T(1,128)}', space=vmem, size = 0x12000, scoped, tag = 'internal scratch']
  #allocation2 [shape = 'f32[16,32]{1,0:T(8,128)}', space=vmem, size = 0x2000, scoped, tag = 'scratch operand']
  %s0 = inlined_call_operand.hbm [shape: f32[2,8,32], index: 0, kind: input, shape index: {}]
  %s1 = inlined_call_operand.hbm [shape: f32[2,1,32], index: 1, kind: input, shape index: {}]
  %s2 = inlined_call_operand.vmem [shape: f32[2,1,8], index: 2, kind: input, shape index: {}]
  %s3 = inlined_call_operand.vmem [shape: bf16[2,32,32], index: 3, kind: input, shape index: {}]
  %s4 = inlined_call_operand.vmem [shape: f32[2,1,32], index: 4, kind: input, shape index: {}]
  %s5 = inlined_call_operand.vmem [shape: bf16[2,32,32], index: 5, kind: input, shape index: {}]
  %s6 = inlined_call_operand.vmem [shape: f32[2,1,32], index: 6, kind: input, shape index: {}]
  %s7 = inlined_call_operand.vmem [shape: bf16[2,32,32], index: 7, kind: input, shape index: {}]
  %s8 = inlined_call_operand.vmem [shape: f32[2,1,32], index: 8, kind: input, shape index: {}]
  %s9 = inlined_call_operand.hbm [shape: bf16[2,32,32], index: 9, kind: input, shape index: {}]
  %s10 = inlined_call_operand.vmem [shape: f32[2,1,32], index: 10, kind: input, shape index: {}]
  %s11 = inlined_call_operand.vmem [shape: f32[2,1,32], index: 11, kind: input, shape index: {}]
  %s12 = inlined_call_operand.vmem [shape: f32[2,1,32], index: 12, kind: input, shape index: {}]
  %s13 = inlined_call_operand.hbm [shape: bf16[2,32,64], index: 13, kind: input, shape index: {}]
  %s14 = inlined_call_operand.vmem [shape: f32[2,1,64], index: 14, kind: input, shape index: {}]
  %s15 = inlined_call_operand.vmem [shape: bf16[2,64,32], index: 15, kind: input, shape index: {}]
  %s16 = inlined_call_operand.vmem [shape: f32[2,1,32], index: 16, kind: input, shape index: {}]
  %s17 = inlined_call_operand.vmem [shape: f32[2,1,32], index: 17, kind: input, shape index: {}]
  %s18 = inlined_call_operand.vmem [shape: f32[2,1,32], index: 18, kind: input, shape index: {}]
  %s19 = inlined_call_operand.hbm [shape: f32[2,2,8,32], index: 19, kind: output, shape index: {}]
  %s20 = sld [smem:[#allocation0]]
  $region129: #{tpu_custom_call.1} parent=0
    _
  %s22 = ssub.s32 1, %s20
  %s23 = scalar_select 0, %s22, %s20
  $region1: #{tpu_custom_call.1} parent=0
    #allocation3 [shape = 'u8[8192]{0}', space=vmem, size = 0x2000, scoped, tag = 'input window, operand 0, single buffered']
    #allocation4 [shape = 's32[2]{0}', space=sflag, size = 0x8, scoped, tag = 'scoped memory for tpu_custom_call.1']
    #allocation5 [shape = 's32[2]{0}', space=sflag, size = 0x8, scoped, tag = 'scoped memory for tpu_custom_call.1']
    #allocation6 [shape = 'u8[1024]{0}', space=vmem, size = 0x400, scoped, tag = 'input window, operand 1, single buffered']
    #allocation7 [shape = 's32[1]{0}', space=sflag, size = 0x4, scoped, tag = 'scoped memory for tpu_custom_call.1']
    #allocation8 [shape = 'u8[16384]{0}', space=vmem, size = 0x4000, scoped, tag = 'input window, operand 9, single buffered']
    #allocation9 [shape = 'u8[16384]{0}', space=vmem, size = 0x4000, scoped, tag = 'input window, operand 13, single buffered']
    #allocation10 [shape = 's32[1]{0}', space=sflag, size = 0x4, scoped, tag = 'scoped memory for tpu_custom_call.1']
    #allocation11 [shape = 'u8[16384]{0}', space=vmem, size = 0x4000, scoped, tag = 'output window, operand 0']
    %24 = vsyncpa [#allocation4], 0
    %25 = vsyncpa [#allocation7], 0
    %26 = vsyncpa [#allocation10], 0
    %27 = vsyncpa [#allocation5], 0
    %s28 = scalar_lea.sflag [#allocation5], 1
    %29 = vsyncpa %s28, 0
    loop: start=0, step=1, limit=4
    $region2: #{tpu_custom_call.1} parent=1 // loop_pre_header
      _
    $region3: #{tpu_custom_call.1} parent=1 // loop_header
      %s31 = sphi 0, %s35
      %p32 = scmp.ge.s32.totalorder %s31, 4
      %s38 = sphi 0, %s50
      %s39 = sphi 0, %s46
      %s40 = sphi 0, %s38
      %s41 = sphi 0, %s39
      %s42 = sphi 0, %s40
      %s43 = sphi 0, %s41
      %s53 = sphi 0, %s55
      %s56 = sphi 0, %s53
      %s57 = sphi 0, %s56
      %s73 = sphi 0, %s57
      %s79 = sphi 0, %s81
      %s82 = sphi 0, %s79
      %s83 = sphi 0, %s82
      %s99 = sphi 0, %s83
      %s105 = sphi 0, %s107
      %s108 = sphi 0, %s105
      %s109 = sphi 0, %s108
      %s125 = sphi 0, %s109
      %s129 = sphi 0, %s129
      %s131 = sphi 0, %s129
      %s132 = sphi 0, %s131
      %s146 = sphi 0, %s132
      %s150 = sphi 0, %s150
      %s152 = sphi 0, %s150
      %s153 = sphi 0, %s152
      %s167 = sphi 0, %s153
      %s171 = sphi 0, %s171
      %s173 = sphi 0, %s171
      %s174 = sphi 0, %s173
      %s188 = sphi 0, %s174
      %s192 = sphi 0, %s192
      %s194 = sphi 0, %s192
      %s195 = sphi 0, %s194
      %s209 = sphi 0, %s195
      %s213 = sphi 0, %s213
      %s215 = sphi 0, %s213
      %s216 = sphi 0, %s215
      %s230 = sphi 0, %s216
      %s234 = sphi 0, %s234
      %s236 = sphi 0, %s234
      %s237 = sphi 0, %s236
      %s251 = sphi 0, %s237
      %s255 = sphi 0, %s255
      %s257 = sphi 0, %s255
      %s258 = sphi 0, %s257
      %s272 = sphi 0, %s258
      %s276 = sphi 0, %s276
      %s278 = sphi 0, %s276
      %s279 = sphi 0, %s278
      %s293 = sphi 0, %s279
      %s297 = sphi 0, %s297
      %s299 = sphi 0, %s297
      %s300 = sphi 0, %s299
      %s314 = sphi 0, %s300
      %s318 = sphi 0, %s318
      %s320 = sphi 0, %s318
      %s321 = sphi 0, %s320
      %s335 = sphi 0, %s321
      %s339 = sphi 0, %s339
      %s341 = sphi 0, %s339
      %s342 = sphi 0, %s341
      %s356 = sphi 0, %s342
      %s360 = sphi 0, %s360
      %s362 = sphi 0, %s360
      %s363 = sphi 0, %s362
      %s377 = sphi 0, %s363
      %s381 = sphi 0, %s381
      %s383 = sphi 0, %s381
      %s384 = sphi 0, %s383
      %s398 = sphi 0, %s384
      %s402 = sphi 0, %s402
      %s404 = sphi 0, %s402
      %s405 = sphi 0, %s404
      %s419 = sphi 0, %s405
      %s423 = sphi 0, %s423
      %s425 = sphi 0, %s423
      %s426 = sphi 0, %s425
      %s440 = sphi 0, %s426
      %s444 = sphi 0, %s444
      %s446 = sphi 0, %s444
      %s447 = sphi 0, %s446
      %s461 = sphi 0, %s447
      %s469 = sphi 0, %s471
      %s472 = sphi 0, %s469
      %s473 = sphi 0, %s472
      %s489 = sphi 0, %s473
    $region4: #{tpu_custom_call.1} parent=1 // loop_header_branch
      %34 = sbr.rel (%p32) target = $region8
    $region5: #{tpu_custom_call.1} parent=1 // loop_body
      %s36 = ssub.s32 %s31, 1
      %s37 = ssub.s32 %s31, 2
      %s44 = sadd.s32 1, %s39
      %p45 = scmp.ge.s32.totalorder %s44, 2
      %s46 = scalar_select %p45, 0, %s44
      %s47 = sadd.s32 1, %s38
      %s48 = scalar_select %p45, %s47, %s38
      %p49 = scmp.ge.s32.totalorder %s48, 1
      %s50 = scalar_select %p49, 0, %s48
      %s51 = ssub.s32 %s38, %s50
      %p52 = scmp.eq.s32.totalorder %s51, 0
      %s54 = sadd.s32 %s53, 1
      %s55 = scalar_select %p52, %s53, %s54
      %p58 = pneg %p52
      %p59 = scmp.eq.s32.totalorder %s31, 1
      %p60 = por %p58, %p59
      %p61 = scmp.ne.s32.totalorder %s53, %s56
      %p62 = scmp.eq.s32.totalorder %s31, 0
      %p63 = por %p61, %p62
      %p64 = scmp.ne.s32.totalorder %s53, %s56
      %p65 = scmp.eq.s32.totalorder %s36, 1
      %p66 = por %p64, %p65
      %p67 = scmp.ne.s32.totalorder %s56, %s57
      %p68 = scmp.eq.s32.totalorder %s36, 0
      %p69 = por %p67, %p68
      %p70 = scmp.ne.s32.totalorder %s56, %s57
      %p71 = scmp.eq.s32.totalorder %s37, 1
      %p72 = por %p70, %p71
      %p74 = scmp.ne.s32.totalorder %s57, %s73
      %p75 = scmp.eq.s32.totalorder %s37, 0
      %p76 = por %p74, %p75
      %s77 = ssub.s32 %s38, %s50
      %p78 = scmp.eq.s32.totalorder %s77, 0
      %s80 = sadd.s32 %s79, 1
      %s81 = scalar_select %p78, %s79, %s80
      %p84 = pneg %p78
      %p85 = scmp.eq.s32.totalorder %s31, 1
      %p86 = por %p84, %p85
      %p87 = scmp.ne.s32.totalorder %s79, %s82
      %p88 = scmp.eq.s32.totalorder %s31, 0
      %p89 = por %p87, %p88
      %p90 = scmp.ne.s32.totalorder %s79, %s82
      %p91 = scmp.eq.s32.totalorder %s36, 1
      %p92 = por %p90, %p91
      %p93 = scmp.ne.s32.totalorder %s82, %s83
      %p94 = scmp.eq.s32.totalorder %s36, 0
      %p95 = por %p93, %p94
      %p96 = scmp.ne.s32.totalorder %s82, %s83
      %p97 = scmp.eq.s32.totalorder %s37, 1
      %p98 = por %p96, %p97
      %p100 = scmp.ne.s32.totalorder %s83, %s99
      %p101 = scmp.eq.s32.totalorder %s37, 0
      %p102 = por %p100, %p101
      %s103 = ssub.s32 %s38, %s50
      %p104 = scmp.eq.s32.totalorder %s103, 0
      %s106 = sadd.s32 %s105, 1
      %s107 = scalar_select %p104, %s105, %s106
      %p110 = pneg %p104
      %p111 = scmp.eq.s32.totalorder %s31, 1
      %p112 = por %p110, %p111
      %p113 = scmp.ne.s32.totalorder %s105, %s108
      %p114 = scmp.eq.s32.totalorder %s31, 0
      %p115 = por %p113, %p114
      %p116 = scmp.ne.s32.totalorder %s105, %s108
      %p117 = scmp.eq.s32.totalorder %s36, 1
      %p118 = por %p116, %p117
      %p119 = scmp.ne.s32.totalorder %s108, %s109
      %p120 = scmp.eq.s32.totalorder %s36, 0
      %p121 = por %p119, %p120
      %p122 = scmp.ne.s32.totalorder %s108, %s109
      %p123 = scmp.eq.s32.totalorder %s37, 1
      %p124 = por %p122, %p123
      %p126 = scmp.ne.s32.totalorder %s109, %s125
      %p127 = scmp.eq.s32.totalorder %s37, 0
      %p128 = por %p126, %p127
      %s130 = sadd.s32 %s129, 1
      %p133 = scmp.eq.s32.totalorder %s31, 1
      %p134 = scmp.ne.s32.totalorder %s129, %s131
      %p135 = scmp.eq.s32.totalorder %s31, 0
      %p136 = por %p134, %p135
      %p137 = scmp.ne.s32.totalorder %s129, %s131
      %p138 = scmp.eq.s32.totalorder %s36, 1
      %p139 = por %p137, %p138
      %p140 = scmp.ne.s32.totalorder %s131, %s132
      %p141 = scmp.eq.s32.totalorder %s36, 0
      %p142 = por %p140, %p141
      %p143 = scmp.ne.s32.totalorder %s131, %s132
      %p144 = scmp.eq.s32.totalorder %s37, 1
      %p145 = por %p143, %p144
      %p147 = scmp.ne.s32.totalorder %s132, %s146
      %p148 = scmp.eq.s32.totalorder %s37, 0
      %p149 = por %p147, %p148
      %s151 = sadd.s32 %s150, 1
      %p154 = scmp.eq.s32.totalorder %s31, 1
      %p155 = scmp.ne.s32.totalorder %s150, %s152
      %p156 = scmp.eq.s32.totalorder %s31, 0
      %p157 = por %p155, %p156
      %p158 = scmp.ne.s32.totalorder %s150, %s152
      %p159 = scmp.eq.s32.totalorder %s36, 1
      %p160 = por %p158, %p159
      %p161 = scmp.ne.s32.totalorder %s152, %s153
      %p162 = scmp.eq.s32.totalorder %s36, 0
      %p163 = por %p161, %p162
      %p164 = scmp.ne.s32.totalorder %s152, %s153
      %p165 = scmp.eq.s32.totalorder %s37, 1
      %p166 = por %p164, %p165
      %p168 = scmp.ne.s32.totalorder %s153, %s167
      %p169 = scmp.eq.s32.totalorder %s37, 0
      %p170 = por %p168, %p169
      %s172 = sadd.s32 %s171, 1
      %p175 = scmp.eq.s32.totalorder %s31, 1
      %p176 = scmp.ne.s32.totalorder %s171, %s173
      %p177 = scmp.eq.s32.totalorder %s31, 0
      %p178 = por %p176, %p177
      %p179 = scmp.ne.s32.totalorder %s171, %s173
      %p180 = scmp.eq.s32.totalorder %s36, 1
      %p181 = por %p179, %p180
      %p182 = scmp.ne.s32.totalorder %s173, %s174
      %p183 = scmp.eq.s32.totalorder %s36, 0
      %p184 = por %p182, %p183
      %p185 = scmp.ne.s32.totalorder %s173, %s174
      %p186 = scmp.eq.s32.totalorder %s37, 1
      %p187 = por %p185, %p186
      %p189 = scmp.ne.s32.totalorder %s174, %s188
      %p190 = scmp.eq.s32.totalorder %s37, 0
      %p191 = por %p189, %p190
      %s193 = sadd.s32 %s192, 1
      %p196 = scmp.eq.s32.totalorder %s31, 1
      %p197 = scmp.ne.s32.totalorder %s192, %s194
      %p198 = scmp.eq.s32.totalorder %s31, 0
      %p199 = por %p197, %p198
      %p200 = scmp.ne.s32.totalorder %s192, %s194
      %p201 = scmp.eq.s32.totalorder %s36, 1
      %p202 = por %p200, %p201
      %p203 = scmp.ne.s32.totalorder %s194, %s195
      %p204 = scmp.eq.s32.totalorder %s36, 0
      %p205 = por %p203, %p204
      %p206 = scmp.ne.s32.totalorder %s194, %s195
      %p207 = scmp.eq.s32.totalorder %s37, 1
      %p208 = por %p206, %p207
      %p210 = scmp.ne.s32.totalorder %s195, %s209
      %p211 = scmp.eq.s32.totalorder %s37, 0
      %p212 = por %p210, %p211
      %s214 = sadd.s32 %s213, 1
      %p217 = scmp.eq.s32.totalorder %s31, 1
      %p218 = scmp.ne.s32.totalorder %s213, %s215
      %p219 = scmp.eq.s32.totalorder %s31, 0
      %p220 = por %p218, %p219
      %p221 = scmp.ne.s32.totalorder %s213, %s215
      %p222 = scmp.eq.s32.totalorder %s36, 1
      %p223 = por %p221, %p222
      %p224 = scmp.ne.s32.totalorder %s215, %s216
      %p225 = scmp.eq.s32.totalorder %s36, 0
      %p226 = por %p224, %p225
      %p227 = scmp.ne.s32.totalorder %s215, %s216
      %p228 = scmp.eq.s32.totalorder %s37, 1
      %p229 = por %p227, %p228
      %p231 = scmp.ne.s32.totalorder %s216, %s230
      %p232 = scmp.eq.s32.totalorder %s37, 0
      %p233 = por %p231, %p232
      %s235 = sadd.s32 %s234, 1
      %p238 = scmp.eq.s32.totalorder %s31, 1
      %p239 = scmp.ne.s32.totalorder %s234, %s236
      %p240 = scmp.eq.s32.totalorder %s31, 0
      %p241 = por %p239, %p240
      %p242 = scmp.ne.s32.totalorder %s234, %s236
      %p243 = scmp.eq.s32.totalorder %s36, 1
      %p244 = por %p242, %p243
      %p245 = scmp.ne.s32.totalorder %s236, %s237
      %p246 = scmp.eq.s32.totalorder %s36, 0
      %p247 = por %p245, %p246
      %p248 = scmp.ne.s32.totalorder %s236, %s237
      %p249 = scmp.eq.s32.totalorder %s37, 1
      %p250 = por %p248, %p249
      %p252 = scmp.ne.s32.totalorder %s237, %s251
      %p253 = scmp.eq.s32.totalorder %s37, 0
      %p254 = por %p252, %p253
      %s256 = sadd.s32 %s255, 1
      %p259 = scmp.eq.s32.totalorder %s31, 1
      %p260 = scmp.ne.s32.totalorder %s255, %s257
      %p261 = scmp.eq.s32.totalorder %s31, 0
      %p262 = por %p260, %p261
      %p263 = scmp.ne.s32.totalorder %s255, %s257
      %p264 = scmp.eq.s32.totalorder %s36, 1
      %p265 = por %p263, %p264
      %p266 = scmp.ne.s32.totalorder %s257, %s258
      %p267 = scmp.eq.s32.totalorder %s36, 0
      %p268 = por %p266, %p267
      %p269 = scmp.ne.s32.totalorder %s257, %s258
      %p270 = scmp.eq.s32.totalorder %s37, 1
      %p271 = por %p269, %p270
      %p273 = scmp.ne.s32.totalorder %s258, %s272
      %p274 = scmp.eq.s32.totalorder %s37, 0
      %p275 = por %p273, %p274
      %s277 = sadd.s32 %s276, 1
      %p280 = scmp.eq.s32.totalorder %s31, 1
      %p281 = scmp.ne.s32.totalorder %s276, %s278
      %p282 = scmp.eq.s32.totalorder %s31, 0
      %p283 = por %p281, %p282
      %p284 = scmp.ne.s32.totalorder %s276, %s278
      %p285 = scmp.eq.s32.totalorder %s36, 1
      %p286 = por %p284, %p285
      %p287 = scmp.ne.s32.totalorder %s278, %s279
      %p288 = scmp.eq.s32.totalorder %s36, 0
      %p289 = por %p287, %p288
      %p290 = scmp.ne.s32.totalorder %s278, %s279
      %p291 = scmp.eq.s32.totalorder %s37, 1
      %p292 = por %p290, %p291
      %p294 = scmp.ne.s32.totalorder %s279, %s293
      %p295 = scmp.eq.s32.totalorder %s37, 0
      %p296 = por %p294, %p295
      %s298 = sadd.s32 %s297, 1
      %p301 = scmp.eq.s32.totalorder %s31, 1
      %p302 = scmp.ne.s32.totalorder %s297, %s299
      %p303 = scmp.eq.s32.totalorder %s31, 0
      %p304 = por %p302, %p303
      %p305 = scmp.ne.s32.totalorder %s297, %s299
      %p306 = scmp.eq.s32.totalorder %s36, 1
      %p307 = por %p305, %p306
      %p308 = scmp.ne.s32.totalorder %s299, %s300
      %p309 = scmp.eq.s32.totalorder %s36, 0
      %p310 = por %p308, %p309
      %p311 = scmp.ne.s32.totalorder %s299, %s300
      %p312 = scmp.eq.s32.totalorder %s37, 1
      %p313 = por %p311, %p312
      %p315 = scmp.ne.s32.totalorder %s300, %s314
      %p316 = scmp.eq.s32.totalorder %s37, 0
      %p317 = por %p315, %p316
      %s319 = sadd.s32 %s318, 1
      %p322 = scmp.eq.s32.totalorder %s31, 1
      %p323 = scmp.ne.s32.totalorder %s318, %s320
      %p324 = scmp.eq.s32.totalorder %s31, 0
      %p325 = por %p323, %p324
      %p326 = scmp.ne.s32.totalorder %s318, %s320
      %p327 = scmp.eq.s32.totalorder %s36, 1
      %p328 = por %p326, %p327
      %p329 = scmp.ne.s32.totalorder %s320, %s321
      %p330 = scmp.eq.s32.totalorder %s36, 0
      %p331 = por %p329, %p330
      %p332 = scmp.ne.s32.totalorder %s320, %s321
      %p333 = scmp.eq.s32.totalorder %s37, 1
      %p334 = por %p332, %p333
      %p336 = scmp.ne.s32.totalorder %s321, %s335
      %p337 = scmp.eq.s32.totalorder %s37, 0
      %p338 = por %p336, %p337
      %s340 = sadd.s32 %s339, 1
      %p343 = scmp.eq.s32.totalorder %s31, 1
      %p344 = scmp.ne.s32.totalorder %s339, %s341
      %p345 = scmp.eq.s32.totalorder %s31, 0
      %p346 = por %p344, %p345
      %p347 = scmp.ne.s32.totalorder %s339, %s341
      %p348 = scmp.eq.s32.totalorder %s36, 1
      %p349 = por %p347, %p348
      %p350 = scmp.ne.s32.totalorder %s341, %s342
      %p351 = scmp.eq.s32.totalorder %s36, 0
      %p352 = por %p350, %p351
      %p353 = scmp.ne.s32.totalorder %s341, %s342
      %p354 = scmp.eq.s32.totalorder %s37, 1
      %p355 = por %p353, %p354
      %p357 = scmp.ne.s32.totalorder %s342, %s356
      %p358 = scmp.eq.s32.totalorder %s37, 0
      %p359 = por %p357, %p358
      %s361 = sadd.s32 %s360, 1
      %p364 = scmp.eq.s32.totalorder %s31, 1
      %p365 = scmp.ne.s32.totalorder %s360, %s362
      %p366 = scmp.eq.s32.totalorder %s31, 0
      %p367 = por %p365, %p366
      %p368 = scmp.ne.s32.totalorder %s360, %s362
      %p369 = scmp.eq.s32.totalorder %s36, 1
      %p370 = por %p368, %p369
      %p371 = scmp.ne.s32.totalorder %s362, %s363
      %p372 = scmp.eq.s32.totalorder %s36, 0
      %p373 = por %p371, %p372
      %p374 = scmp.ne.s32.totalorder %s362, %s363
      %p375 = scmp.eq.s32.totalorder %s37, 1
      %p376 = por %p374, %p375
      %p378 = scmp.ne.s32.totalorder %s363, %s377
      %p379 = scmp.eq.s32.totalorder %s37, 0
      %p380 = por %p378, %p379
      %s382 = sadd.s32 %s381, 1
      %p385 = scmp.eq.s32.totalorder %s31, 1
      %p386 = scmp.ne.s32.totalorder %s381, %s383
      %p387 = scmp.eq.s32.totalorder %s31, 0
      %p388 = por %p386, %p387
      %p389 = scmp.ne.s32.totalorder %s381, %s383
      %p390 = scmp.eq.s32.totalorder %s36, 1
      %p391 = por %p389, %p390
      %p392 = scmp.ne.s32.totalorder %s383, %s384
      %p393 = scmp.eq.s32.totalorder %s36, 0
      %p394 = por %p392, %p393
      %p395 = scmp.ne.s32.totalorder %s383, %s384
      %p396 = scmp.eq.s32.totalorder %s37, 1
      %p397 = por %p395, %p396
      %p399 = scmp.ne.s32.totalorder %s384, %s398
      %p400 = scmp.eq.s32.totalorder %s37, 0
      %p401 = por %p399, %p400
      %s403 = sadd.s32 %s402, 1
      %p406 = scmp.eq.s32.totalorder %s31, 1
      %p407 = scmp.ne.s32.totalorder %s402, %s404
      %p408 = scmp.eq.s32.totalorder %s31, 0
      %p409 = por %p407, %p408
      %p410 = scmp.ne.s32.totalorder %s402, %s404
      %p411 = scmp.eq.s32.totalorder %s36, 1
      %p412 = por %p410, %p411
      %p413 = scmp.ne.s32.totalorder %s404, %s405
      %p414 = scmp.eq.s32.totalorder %s36, 0
      %p415 = por %p413, %p414
      %p416 = scmp.ne.s32.totalorder %s404, %s405
      %p417 = scmp.eq.s32.totalorder %s37, 1
      %p418 = por %p416, %p417
      %p420 = scmp.ne.s32.totalorder %s405, %s419
      %p421 = scmp.eq.s32.totalorder %s37, 0
      %p422 = por %p420, %p421
      %s424 = sadd.s32 %s423, 1
      %p427 = scmp.eq.s32.totalorder %s31, 1
      %p428 = scmp.ne.s32.totalorder %s423, %s425
      %p429 = scmp.eq.s32.totalorder %s31, 0
      %p430 = por %p428, %p429
      %p431 = scmp.ne.s32.totalorder %s423, %s425
      %p432 = scmp.eq.s32.totalorder %s36, 1
      %p433 = por %p431, %p432
      %p434 = scmp.ne.s32.totalorder %s425, %s426
      %p435 = scmp.eq.s32.totalorder %s36, 0
      %p436 = por %p434, %p435
      %p437 = scmp.ne.s32.totalorder %s425, %s426
      %p438 = scmp.eq.s32.totalorder %s37, 1
      %p439 = por %p437, %p438
      %p441 = scmp.ne.s32.totalorder %s426, %s440
      %p442 = scmp.eq.s32.totalorder %s37, 0
      %p443 = por %p441, %p442
      %s445 = sadd.s32 %s444, 1
      %p448 = scmp.eq.s32.totalorder %s31, 1
      %p449 = scmp.ne.s32.totalorder %s444, %s446
      %p450 = scmp.eq.s32.totalorder %s31, 0
      %p451 = por %p449, %p450
      %p452 = scmp.ne.s32.totalorder %s444, %s446
      %p453 = scmp.eq.s32.totalorder %s36, 1
      %p454 = por %p452, %p453
      %p455 = scmp.ne.s32.totalorder %s446, %s447
      %p456 = scmp.eq.s32.totalorder %s36, 0
      %p457 = por %p455, %p456
      %p458 = scmp.ne.s32.totalorder %s446, %s447
      %p459 = scmp.eq.s32.totalorder %s37, 1
      %p460 = por %p458, %p459
      %p462 = scmp.ne.s32.totalorder %s447, %s461
      %p463 = scmp.eq.s32.totalorder %s37, 0
      %p464 = por %p462, %p463
      %s465 = ssub.s32 %s39, %s46
      %s466 = ssub.s32 %s38, %s50
      %s467 = sor.u32 %s465, %s466
      %p468 = scmp.eq.s32.totalorder %s467, 0
      %s470 = sadd.s32 %s469, 1
      %s471 = scalar_select %p468, %s469, %s470
      %p474 = pneg %p468
      %p475 = scmp.eq.s32.totalorder %s31, 1
      %p476 = por %p474, %p475
      %p477 = scmp.ne.s32.totalorder %s469, %s472
      %p478 = scmp.eq.s32.totalorder %s31, 0
      %p479 = por %p477, %p478
      %p480 = scmp.ne.s32.totalorder %s469, %s472
      %p481 = scmp.eq.s32.totalorder %s36, 1
      %p482 = por %p480, %p481
      %p483 = scmp.ne.s32.totalorder %s472, %s473
      %p484 = scmp.eq.s32.totalorder %s36, 0
      %p485 = por %p483, %p484
      %p486 = scmp.ne.s32.totalorder %s472, %s473
      %p487 = scmp.eq.s32.totalorder %s37, 1
      %p488 = por %p486, %p487
      %p490 = scmp.ne.s32.totalorder %s473, %s489
      %p491 = scmp.eq.s32.totalorder %s37, 0
      %p492 = por %p490, %p491
      %p493 = scmp.le.s32.totalorder 1, %s31
      %p494 = scmp.lt.s32.totalorder %s31, 3
      %p495 = pnand %p493, %p494
      %p496 = pneg %p495
      // Predicated region
      $region9: #{tpu_custom_call.1} parent=5 // pred_check
        _
      $region10: #{tpu_custom_call.1} parent=5 // pred_check_branch
        %498 = sbr.rel (%p495) target = $region12
      $region11: #{tpu_custom_call.1} parent=5 // pred_region
        %s499 = ssub.s32 %s31, 1
        // Predicated region
        $region13: #{tpu_custom_call.1} parent=11 // pred_check
          %p500 = pneg %p69
        $region14: #{tpu_custom_call.1} parent=11 // pred_check_branch
          %502 = sbr.rel (%p500) target = $region16
        $region15: #{tpu_custom_call.1} parent=11 // pred_region
          %s503 = smul.u32 2, %s40
          %s505 = ssub.s32 256, 256
          %506 = vsyncadd [#allocation4], %s505
          %s507 = smul.addr %s503, 128
          %s508 = scalar_lea.hbm %s0, %s507
          %s509 = sshll.u32 [#allocation3], 4
          %s510 = int_to_ptr.vmem [resolvable:$true] %s509
          %515 = dma.hbm_to_vmem [thread:$0]  %s508, 256, %s510, [#allocation4], 128, 128, 8
        $region16: #{tpu_custom_call.1} parent=11 // pred_fallthru
          _
        // Predicated region
        $region17: #{tpu_custom_call.1} parent=11 // pred_check
          %p516 = pneg %p95
        $region18: #{tpu_custom_call.1} parent=11 // pred_check_branch
          %518 = sbr.rel (%p516) target = $region20
        $region19: #{tpu_custom_call.1} parent=11 // pred_region
          %s519 = smul.u32 2, %s40
          %s521 = ssub.s32 32, 32
          %522 = vsyncadd [#allocation7], %s521
          %s523 = smul.addr %s519, 16
          %s524 = scalar_lea.hbm %s1, %s523
          %s525 = sshll.u32 [#allocation6], 4
          %s526 = int_to_ptr.vmem [resolvable:$true] %s525
          %531 = dma.hbm_to_vmem [thread:$0]  %s524, 32, %s526, [#allocation7], 16, 16, 1
        $region20: #{tpu_custom_call.1} parent=11 // pred_fallthru
          _
        // Predicated region
        $region21: #{tpu_custom_call.1} parent=11 // pred_check
          %p532 = pneg %p121
        $region22: #{tpu_custom_call.1} parent=11 // pred_check_branch
          %534 = sbr.rel (%p532) target = $region24
        $region23: #{tpu_custom_call.1} parent=11 // pred_region
          %s535 = smul.u32 2, %s40
          %p536 = scmp.lt.s32.totalorder %s535, 1
          %s537 = scalar_select %p536, %s535, 1
          %s538 = scalar_lea.vmem %s2, %s537
          %s539 = smul.u32 2, %s40
        $region24: #{tpu_custom_call.1} parent=11 // pred_fallthru
          _
        // Predicated region
        $region25: #{tpu_custom_call.1} parent=11 // pred_check
          %p540 = pneg %p142
        $region26: #{tpu_custom_call.1} parent=11 // pred_check_branch
          %542 = sbr.rel (%p540) target = $region28
        $region27: #{tpu_custom_call.1} parent=11 // pred_region
          _
        $region28: #{tpu_custom_call.1} parent=11 // pred_fallthru
          _
        // Predicated region
        $region29: #{tpu_custom_call.1} parent=11 // pred_check
          %p543 = pneg %p163
        $region30: #{tpu_custom_call.1} parent=11 // pred_check_branch
          %545 = sbr.rel (%p543) target = $region32
        $region31: #{tpu_custom_call.1} parent=11 // pred_region
          _
        $region32: #{tpu_custom_call.1} parent=11 // pred_fallthru
          _
        // Predicated region
        $region33: #{tpu_custom_call.1} parent=11 // pred_check
          %p546 = pneg %p184
        $region34: #{tpu_custom_call.1} parent=11 // pred_check_branch
          %548 = sbr.rel (%p546) target = $region36
        $region35: #{tpu_custom_call.1} parent=11 // pred_region
          _
        $region36: #{tpu_custom_call.1} parent=11 // pred_fallthru
          _
        // Predicated region
        $region37: #{tpu_custom_call.1} parent=11 // pred_check
          %p549 = pneg %p205
        $region38: #{tpu_custom_call.1} parent=11 // pred_check_branch
          %551 = sbr.rel (%p549) target = $region40
        $region39: #{tpu_custom_call.1} parent=11 // pred_region
          _
        $region40: #{tpu_custom_call.1} parent=11 // pred_fallthru
          _
        // Predicated region
        $region41: #{tpu_custom_call.1} parent=11 // pred_check
          %p552 = pneg %p226
        $region42: #{tpu_custom_call.1} parent=11 // pred_check_branch
          %554 = sbr.rel (%p552) target = $region44
        $region43: #{tpu_custom_call.1} parent=11 // pred_region
          _
        $region44: #{tpu_custom_call.1} parent=11 // pred_fallthru
          _
        // Predicated region
        $region45: #{tpu_custom_call.1} parent=11 // pred_check
          %p555 = pneg %p247
        $region46: #{tpu_custom_call.1} parent=11 // pred_check_branch
          %557 = sbr.rel (%p555) target = $region48
        $region47: #{tpu_custom_call.1} parent=11 // pred_region
          _
        $region48: #{tpu_custom_call.1} parent=11 // pred_fallthru
          _
        // Predicated region
        $region49: #{tpu_custom_call.1} parent=11 // pred_check
          %p558 = pneg %p268
        $region50: #{tpu_custom_call.1} parent=11 // pred_check_branch
          %560 = sbr.rel (%p558) target = $region52
        $region51: #{tpu_custom_call.1} parent=11 // pred_region
          %s562 = ssub.s32 512, 512
          %563 = vsyncadd [#allocation7], %s562
          %s564 = sshll.u32 [#allocation8], 4
          %s565 = int_to_ptr.vmem [resolvable:$true] %s564
          %570 = dma.hbm_to_vmem [thread:$0]  %s9, 512, %s565, [#allocation7], 64, 64, 4
        $region52: #{tpu_custom_call.1} parent=11 // pred_fallthru
          _
        // Predicated region
        $region53: #{tpu_custom_call.1} parent=11 // pred_check
          %p571 = pneg %p289
        $region54: #{tpu_custom_call.1} parent=11 // pred_check_branch
          %573 = sbr.rel (%p571) target = $region56
        $region55: #{tpu_custom_call.1} parent=11 // pred_region
          _
        $region56: #{tpu_custom_call.1} parent=11 // pred_fallthru
          _
        // Predicated region
        $region57: #{tpu_custom_call.1} parent=11 // pred_check
          %p574 = pneg %p310
        $region58: #{tpu_custom_call.1} parent=11 // pred_check_branch
          %576 = sbr.rel (%p574) target = $region60
        $region59: #{tpu_custom_call.1} parent=11 // pred_region
          _
        $region60: #{tpu_custom_call.1} parent=11 // pred_fallthru
          _
        // Predicated region
        $region61: #{tpu_custom_call.1} parent=11 // pred_check
          %p577 = pneg %p331
        $region62: #{tpu_custom_call.1} parent=11 // pred_check_branch
          %579 = sbr.rel (%p577) target = $region64
        $region63: #{tpu_custom_call.1} parent=11 // pred_region
          _
        $region64: #{tpu_custom_call.1} parent=11 // pred_fallthru
          _
        // Predicated region
        $region65: #{tpu_custom_call.1} parent=11 // pred_check
          %p580 = pneg %p352
        $region66: #{tpu_custom_call.1} parent=11 // pred_check_branch
          %582 = sbr.rel (%p580) target = $region68
        $region67: #{tpu_custom_call.1} parent=11 // pred_region
          %s584 = ssub.s32 512, 512
          %585 = vsyncadd [#allocation10], %s584
          %s586 = sshll.u32 [#allocation9], 4
          %s587 = int_to_ptr.vmem [resolvable:$true] %s586
          %592 = dma.hbm_to_vmem [thread:$0]  %s13, 512, %s587, [#allocation10], 64, 64, 4
        $region68: #{tpu_custom_call.1} parent=11 // pred_fallthru
          _
        // Predicated region
        $region69: #{tpu_custom_call.1} parent=11 // pred_check
          %p593 = pneg %p373
        $region70: #{tpu_custom_call.1} parent=11 // pred_check_branch
          %595 = sbr.rel (%p593) target = $region72
        $region71: #{tpu_custom_call.1} parent=11 // pred_region
          _
        $region72: #{tpu_custom_call.1} parent=11 // pred_fallthru
          _
        // Predicated region
        $region73: #{tpu_custom_call.1} parent=11 // pred_check
          %p596 = pneg %p394
        $region74: #{tpu_custom_call.1} parent=11 // pred_check_branch
          %598 = sbr.rel (%p596) target = $region76
        $region75: #{tpu_custom_call.1} parent=11 // pred_region
          _
        $region76: #{tpu_custom_call.1} parent=11 // pred_fallthru
          _
        // Predicated region
        $region77: #{tpu_custom_call.1} parent=11 // pred_check
          %p599 = pneg %p415
        $region78: #{tpu_custom_call.1} parent=11 // pred_check_branch
          %601 = sbr.rel (%p599) target = $region80
        $region79: #{tpu_custom_call.1} parent=11 // pred_region
          _
        $region80: #{tpu_custom_call.1} parent=11 // pred_fallthru
          _
        // Predicated region
        $region81: #{tpu_custom_call.1} parent=11 // pred_check
          %p602 = pneg %p436
        $region82: #{tpu_custom_call.1} parent=11 // pred_check_branch
          %604 = sbr.rel (%p602) target = $region84
        $region83: #{tpu_custom_call.1} parent=11 // pred_region
          _
        $region84: #{tpu_custom_call.1} parent=11 // pred_fallthru
          _
        // Predicated region
        $region85: #{tpu_custom_call.1} parent=11 // pred_check
          %p605 = pneg %p457
        $region86: #{tpu_custom_call.1} parent=11 // pred_check_branch
          %607 = sbr.rel (%p605) target = $region88
        $region87: #{tpu_custom_call.1} parent=11 // pred_region
          _
        $region88: #{tpu_custom_call.1} parent=11 // pred_fallthru
          _
      $region12: #{tpu_custom_call.1} parent=5 // pred_fallthru
        _
      %p608 = scmp.lt.s32.totalorder %s31, 2
      // Predicated region
      $region89: #{tpu_custom_call.1} parent=5 // pred_check
        %p609 = pneg %p608
      $region90: #{tpu_custom_call.1} parent=5 // pred_check_branch
        %611 = sbr.rel (%p609) target = $region92
      $region91: #{tpu_custom_call.1} parent=5 // pred_region
        _
      $region92: #{tpu_custom_call.1} parent=5 // pred_fallthru
        _
      %p612 = scmp.le.s32.totalorder 1, %s31
      %p613 = scmp.lt.s32.totalorder %s31, 3
      %p614 = pnand %p612, %p613
      %p615 = pneg %p614
      // Predicated region
      $region93: #{tpu_custom_call.1} parent=5 // pred_check
        _
      $region94: #{tpu_custom_call.1} parent=5 // pred_check_branch
        %617 = sbr.rel (%p614) target = $region96
      $region95: #{tpu_custom_call.1} parent=5 // pred_region
        %s618 = ssub.s32 %s31, 1
        // Predicated region
        $region97: #{tpu_custom_call.1} parent=95 // pred_check
          %p619 = pneg %p69
        $region98: #{tpu_custom_call.1} parent=95 // pred_check_branch
          %621 = sbr.rel (%p619) target = $region100
        $region99: #{tpu_custom_call.1} parent=95 // pred_region
          %622 = dma.done [#allocation4], 256
        $region100: #{tpu_custom_call.1} parent=95 // pred_fallthru
          _
        // Predicated region
        $region101: #{tpu_custom_call.1} parent=95 // pred_check
          %p623 = pneg %p95
        $region102: #{tpu_custom_call.1} parent=95 // pred_check_branch
          %625 = sbr.rel (%p623) target = $region104
        $region103: #{tpu_custom_call.1} parent=95 // pred_region
          %626 = dma.done [#allocation7], 32
        $region104: #{tpu_custom_call.1} parent=95 // pred_fallthru
          _
        // Predicated region
        $region105: #{tpu_custom_call.1} parent=95 // pred_check
          %p627 = pneg %p268
        $region106: #{tpu_custom_call.1} parent=95 // pred_check_branch
          %629 = sbr.rel (%p627) target = $region108
        $region107: #{tpu_custom_call.1} parent=95 // pred_region
          %630 = dma.done [#allocation7], 512
        $region108: #{tpu_custom_call.1} parent=95 // pred_fallthru
          _
        // Predicated region
        $region109: #{tpu_custom_call.1} parent=95 // pred_check
          %p631 = pneg %p352
        $region110: #{tpu_custom_call.1} parent=95 // pred_check_branch
          %633 = sbr.rel (%p631) target = $region112
        $region111: #{tpu_custom_call.1} parent=95 // pred_region
          %634 = dma.done [#allocation10], 512
        $region112: #{tpu_custom_call.1} parent=95 // pred_fallthru
          _
        %p635 = pneg %p69
        %p636 = pneg %p66
        %p637 = pneg %p95
        %p638 = pneg %p92
        %s639 = smul.u32 2, %s40
        %p640 = scmp.lt.s32.totalorder %s639, 1
        %s641 = scalar_select %p640, %s639, 1
        %s642 = scalar_lea.vmem %s2, %s641
        %p643 = pneg %p121
        %p644 = pneg %p118
        %p645 = pneg %p142
        %p646 = pneg %p139
        %p647 = pneg %p163
        %p648 = pneg %p160
        %p649 = pneg %p184
        %p650 = pneg %p181
        %p651 = pneg %p205
        %p652 = pneg %p202
        %p653 = pneg %p226
        %p654 = pneg %p223
        %p655 = pneg %p247
        %p656 = pneg %p244
        %p657 = pneg %p268
        %p658 = pneg %p265
        %p659 = pneg %p289
        %p660 = pneg %p286
        %p661 = pneg %p310
        %p662 = pneg %p307
        %p663 = pneg %p331
        %p664 = pneg %p328
        %p665 = pneg %p352
        %p666 = pneg %p349
        %p667 = pneg %p373
        %p668 = pneg %p370
        %p669 = pneg %p394
        %p670 = pneg %p391
        %p671 = pneg %p415
        %p672 = pneg %p412
        %p673 = pneg %p436
        %p674 = pneg %p433
        %p675 = pneg %p457
        %p676 = pneg %p454
        %p677 = pneg %p485
        %p678 = pneg %p482
        %s679 = sand.u32 %s472, 1
        %s680 = scalar_lea.sflag [#allocation5], %s679
        %s681 = sand.u32 %s472, 1
        %s682 = smul.addr %s681, 16
        %s683 = scalar_lea.vmem [#allocation11], %s682
        %s684 = smul.u32 2, %s40
        %s685 = smul.u32 2, %s40
        %s686 = smul.u32 2, %s40
        %p687 = scmp.lt.s32.totalorder %s686, 1
        %s688 = scalar_select %p687, %s686, 1
        %s689 = scalar_lea.vmem %s2, %s688
        %s690 = smul.u32 2, %s40
        %s691 = smul.u32 2, %s40
        %p693 = scmp.eq.s32.totalorder %s41, 0
        // Predicated region
        $region113: #{tpu_custom_call.1} parent=95 // pred_check
          %p694 = pneg %p693
        $region114: #{tpu_custom_call.1} parent=95 // pred_check_branch
          %696 = sbr.rel (%p694) target = $region116
        $region115: #{tpu_custom_call.1} parent=95 // pred_region
          %v697 = vld [vmem:[#allocation3] sm:$0xff]
          %v698 = vld [vmem:[#allocation3 + $0x8] sm:$0xff]
          %v699 = vld [vmem:[#allocation6] sm:$0x1]
          %v700 = vld [vmem:[#allocation6 + $0x1] sm:$0x1]
          %v703 = vlaneseq
          %v704 = vshrl.u32 %v703, 7
          %v705 = vsub.s32 0, %v704
          %v706 = vrot.slane %v699, %v705
          %v707 = vlaneseq
          %v708 = vshrl.u32 %v707, 7
          %v709 = vsub.s32 0, %v708
          %v710 = vrot.slane %v700, %v709
          %v713 = vadd.f32 %v697, %v706
          %v714 = vadd.f32 %v698, %v710
          %vm715 = vcmask 261120
          %716 = vst.msk [vmem:[#allocation2] sm:$0xff] %vm715, %v713
          %717 = vst.msk [vmem:[#allocation2 + $0x8] sm:$0xff] %vm715, %v714
        $region116: #{tpu_custom_call.1} parent=95 // pred_fallthru
          _
        %v718 = vld [vmem:[#allocation2] sm:$0xff]
        %v719 = vld [vmem:[#allocation2 + $0x8] sm:$0xff]
        %s720 = smul.u32 %s41, 4
        %s721 = smul.addr %s720, 4
        %s722 = scalar_lea.vmem %s3, %s721
        %v723 = vld [vmem:[%s722] sm:$0xf]
        %v724 = vld [vmem:[%s722 + $0x4] sm:$0xf]
        %v725 = vld [vmem:[%s722 + $0x8] sm:$0xf]
        %v726 = vld [vmem:[%s722 + $0xc] sm:$0xf]
        %s727 = smul.addr %s720, 4
        %s728 = scalar_lea.vmem %s5, %s727
        %v729 = vld [vmem:[%s728] sm:$0xf]
        %v730 = vld [vmem:[%s728 + $0x4] sm:$0xf]
        %v731 = vld [vmem:[%s728 + $0x8] sm:$0xf]
        %v732 = vld [vmem:[%s728 + $0xc] sm:$0xf]
        %s733 = smul.addr %s720, 4
        %s734 = scalar_lea.vmem %s7, %s733
        %v735 = vld [vmem:[%s734] sm:$0xf]
        %v736 = vld [vmem:[%s734 + $0x4] sm:$0xf]
        %v737 = vld [vmem:[%s734 + $0x8] sm:$0xf]
        %v738 = vld [vmem:[%s734 + $0xc] sm:$0xf]
        %s739 = smul.addr %s720, 4
        %s740 = scalar_lea.vmem [#allocation8], %s739
        %v741 = vld [vmem:[%s740] sm:$0xf]
        %v742 = vld [vmem:[%s740 + $0x4] sm:$0xf]
        %v743 = vld [vmem:[%s740 + $0x8] sm:$0xf]
        %v744 = vld [vmem:[%s740 + $0xc] sm:$0xf]
        %s745 = smul.addr %s720, 4
        %s746 = scalar_lea.vmem [#allocation9], %s745
        %v747 = vld [vmem:[%s746] sm:$0xf]
        %v748 = vld [vmem:[%s746 + $0x4] sm:$0xf]
        %v749 = vld [vmem:[%s746 + $0x8] sm:$0xf]
        %v750 = vld [vmem:[%s746 + $0xc] sm:$0xf]
        %s751 = smul.u32 %s41, 8
        %s752 = smul.addr %s751, 4
        %s753 = scalar_lea.vmem %s15, %s752
        %v754 = vld [vmem:[%s753] sm:$0xf]
        %v755 = vld [vmem:[%s753 + $0x4] sm:$0xf]
        %v756 = vld [vmem:[%s753 + $0x8] sm:$0xf]
        %v757 = vld [vmem:[%s753 + $0xc] sm:$0xf]
        %v758 = vld [vmem:[%s753 + $0x10] sm:$0xf]
        %v759 = vld [vmem:[%s753 + $0x14] sm:$0xf]
        %v760 = vld [vmem:[%s753 + $0x18] sm:$0xf]
        %v761 = vld [vmem:[%s753 + $0x1c] sm:$0xf]
        %s762 = scalar_lea.vmem %s4, %s41
        %v763 = vld [vmem:[%s762] sm:$0x1]
        %s764 = scalar_lea.vmem %s6, %s41
        %v765 = vld [vmem:[%s764] sm:$0x1]
        %s766 = scalar_lea.vmem %s8, %s41
        %v767 = vld [vmem:[%s766] sm:$0x1]
        %s768 = scalar_lea.vmem %s10, %s41
        %v769 = vld [vmem:[%s768] sm:$0x1]
        %s770 = scalar_lea.vmem %s14, %s41
        %v771 = vld [vmem:[%s770] sm:$0x1]
        %s772 = scalar_lea.vmem %s16, %s41
        %v773 = vld [vmem:[%s772] sm:$0x1]
        %s774 = scalar_lea.vmem %s11, %s41
        %v775 = vld [vmem:[%s774] sm:$0x1]
        %s776 = scalar_lea.vmem %s12, %s41
        %v777 = vld [vmem:[%s776] sm:$0x1]
        %s778 = scalar_lea.vmem %s17, %s41
        %v779 = vld [vmem:[%s778] sm:$0x1]
        %s780 = scalar_lea.vmem %s18, %s41
        %v781 = vld [vmem:[%s780] sm:$0x1]
        %v782 = vpack.c.bf16 %v719, %v718
        %v784 = vlaneseq
        %v785 = vshrl.u32 %v784, 7
        %v786 = vsub.s32 0, %v785
        %v787 = vrot.slane %v763, %v786
        %v793 = vunpack.c.l.b16 %v723
        %v794 = vunpack.c.l.b16 %v724
        %v795 = vunpack.c.l.b16 %v725
        %v796 = vunpack.c.l.b16 %v726
        %v797 = vpack.c.b16 %v794, %v793
        %v798 = vpack.c.b16 %v796, %v795
        %vm801 = vcmask 261120
        %v803 = vsel %vm801, %v782, 0
        %805 = vmatprep.subr.bf16.mxu0 0
        %806 = vmatpush1.bf16.msra.mxu0 0
        %807 = vmatprep.subr.bf16.mxu0 0
        %808 = vmatpush1.bf16.msra.mxu0 0
        %809 = vmatprep.subr.bf16.mxu0 0
        %810 = vmatpush1.bf16.msra.mxu0 0
        %811 = vmatprep.subr.bf16.mxu0 0
        %812 = vmatpush1.bf16.msra.mxu0 0
        %813 = vmatprep.subr.bf16.mxu0 0
        %814 = vmatpush1.bf16.msra.mxu0 0
        %815 = vmatprep.subr.bf16.mxu0 0
        %816 = vmatpush1.bf16.msra.mxu0 0
        %817 = vmatprep.subr.bf16.mxu0 0
        %818 = vmatpush1.bf16.msra.mxu0 %v798
        %819 = vmatprep.subr.bf16.mxu0 0
        %820 = vmatpush1.bf16.msra.mxu0 %v797
        %821 = vmatprep.subr.bf16.mxu0 0
        %822 = vmatpush2.bf16.msra.mxu0 0
        %823 = vmatprep.subr.bf16.mxu0 0
        %824 = vmatpush2.bf16.msra.mxu0 0
        %825 = vmatprep.subr.bf16.mxu0 0
        %826 = vmatpush2.bf16.msra.mxu0 0
        %827 = vmatprep.subr.bf16.mxu0 0
        %828 = vmatpush2.bf16.msra.mxu0 0
        %829 = vmatprep.subr.bf16.mxu0 0
        %830 = vmatpush2.bf16.msra.mxu0 0
        %831 = vmatprep.subr.bf16.mxu0 0
        %832 = vmatpush2.bf16.msra.mxu0 0
        %833 = vmatprep.subr.bf16.mxu0 0
        %834 = vmatpush2.bf16.msra.mxu0 0
        %835 = vmatprep.subr.bf16.mxu0 0
        %836 = vmatpush2.bf16.msra.mxu0 0
        %837 = vmatprep.mubr.bf16.mxu0 0
        %838 = vmatmul.mubr.bf16.gmra.mxu0 %v803
        %v839 = vpop.f32.mrf.mxu0
        %v840 = vadd.f32 %v787, %v839
        %v841 = vpop.f32.mrf.mxu0
        %v842 = vpop.f32.mrf.mxu0
        %v843 = vadd.f32 %v787, %v842
        %v844 = vpop.f32.mrf.mxu0
        %845 = vdwg.mxu0
        %v847 = vlaneseq
        %v848 = vshrl.u32 %v847, 7
        %v849 = vsub.s32 0, %v848
        %v850 = vrot.slane %v765, %v849
        %v856 = vunpack.c.l.b16 %v729
        %v857 = vunpack.c.l.b16 %v730
        %v858 = vunpack.c.l.b16 %v731
        %v859 = vunpack.c.l.b16 %v732
        %v860 = vpack.c.b16 %v857, %v856
        %v861 = vpack.c.b16 %v859, %v858
        %864 = vmatprep.subr.bf16.mxu0 0
        %865 = vmatpush1.bf16.msra.mxu0 0
        %866 = vmatprep.subr.bf16.mxu0 0
        %867 = vmatpush1.bf16.msra.mxu0 0
        %868 = vmatprep.subr.bf16.mxu0 0
        %869 = vmatpush1.bf16.msra.mxu0 0
        %870 = vmatprep.subr.bf16.mxu0 0
        %871 = vmatpush1.bf16.msra.mxu0 0
        %872 = vmatprep.subr.bf16.mxu0 0
        %873 = vmatpush1.bf16.msra.mxu0 0
        %874 = vmatprep.subr.bf16.mxu0 0
        %875 = vmatpush1.bf16.msra.mxu0 0
        %876 = vmatprep.subr.bf16.mxu0 0
        %877 = vmatpush1.bf16.msra.mxu0 %v861
        %878 = vmatprep.subr.bf16.mxu0 0
        %879 = vmatpush1.bf16.msra.mxu0 %v860
        %880 = vmatprep.subr.bf16.mxu0 0
        %881 = vmatpush2.bf16.msra.mxu0 0
        %882 = vmatprep.subr.bf16.mxu0 0
        %883 = vmatpush2.bf16.msra.mxu0 0
        %884 = vmatprep.subr.bf16.mxu0 0
        %885 = vmatpush2.bf16.msra.mxu0 0
        %886 = vmatprep.subr.bf16.mxu0 0
        %887 = vmatpush2.bf16.msra.mxu0 0
        %888 = vmatprep.subr.bf16.mxu0 0
        %889 = vmatpush2.bf16.msra.mxu0 0
        %890 = vmatprep.subr.bf16.mxu0 0
        %891 = vmatpush2.bf16.msra.mxu0 0
        %892 = vmatprep.subr.bf16.mxu0 0
        %893 = vmatpush2.bf16.msra.mxu0 0
        %894 = vmatprep.subr.bf16.mxu0 0
        %895 = vmatpush2.bf16.msra.mxu0 0
        %896 = vmatprep.mubr.bf16.mxu0 0
        %897 = vmatmul.mubr.bf16.gmra.mxu0 %v803
        %v898 = vpop.f32.mrf.mxu0
        %v899 = vadd.f32 %v850, %v898
        %v900 = vpop.f32.mrf.mxu0
        %v901 = vpop.f32.mrf.mxu0
        %v902 = vadd.f32 %v850, %v901
        %v903 = vpop.f32.mrf.mxu0
        %904 = vdwg.mxu0
        %v906 = vlaneseq
        %v907 = vshrl.u32 %v906, 7
        %v908 = vsub.s32 0, %v907
        %v909 = vrot.slane %v767, %v908
        %v915 = vunpack.c.l.b16 %v735
        %v916 = vunpack.c.l.b16 %v736
        %v917 = vunpack.c.l.b16 %v737
        %v918 = vunpack.c.l.b16 %v738
        %v919 = vpack.c.b16 %v916, %v915
        %v920 = vpack.c.b16 %v918, %v917
        %923 = vmatprep.subr.bf16.mxu0 0
        %924 = vmatpush1.bf16.msra.mxu0 0
        %925 = vmatprep.subr.bf16.mxu0 0
        %926 = vmatpush1.bf16.msra.mxu0 0
        %927 = vmatprep.subr.bf16.mxu0 0
        %928 = vmatpush1.bf16.msra.mxu0 0
        %929 = vmatprep.subr.bf16.mxu0 0
        %930 = vmatpush1.bf16.msra.mxu0 0
        %931 = vmatprep.subr.bf16.mxu0 0
        %932 = vmatpush1.bf16.msra.mxu0 0
        %933 = vmatprep.subr.bf16.mxu0 0
        %934 = vmatpush1.bf16.msra.mxu0 0
        %935 = vmatprep.subr.bf16.mxu0 0
        %936 = vmatpush1.bf16.msra.mxu0 %v920
        %937 = vmatprep.subr.bf16.mxu0 0
        %938 = vmatpush1.bf16.msra.mxu0 %v919
        %939 = vmatprep.subr.bf16.mxu0 0
        %940 = vmatpush2.bf16.msra.mxu0 0
        %941 = vmatprep.subr.bf16.mxu0 0
        %942 = vmatpush2.bf16.msra.mxu0 0
        %943 = vmatprep.subr.bf16.mxu0 0
        %944 = vmatpush2.bf16.msra.mxu0 0
        %945 = vmatprep.subr.bf16.mxu0 0
        %946 = vmatpush2.bf16.msra.mxu0 0
        %947 = vmatprep.subr.bf16.mxu0 0
        %948 = vmatpush2.bf16.msra.mxu0 0
        %949 = vmatprep.subr.bf16.mxu0 0
        %950 = vmatpush2.bf16.msra.mxu0 0
        %951 = vmatprep.subr.bf16.mxu0 0
        %952 = vmatpush2.bf16.msra.mxu0 0
        %953 = vmatprep.subr.bf16.mxu0 0
        %954 = vmatpush2.bf16.msra.mxu0 0
        %955 = vmatprep.mubr.bf16.mxu0 0
        %956 = vmatmul.mubr.bf16.gmra.mxu0 %v803
        %v957 = vpop.f32.mrf.mxu0
        %v958 = vadd.f32 %v909, %v957
        %v959 = vpop.f32.mrf.mxu0
        %v960 = vpop.f32.mrf.mxu0
        %v961 = vadd.f32 %v909, %v960
        %v962 = vpop.f32.mrf.mxu0
        %963 = vdwg.mxu0
        %v964 = vld [vmem:[%s689] sm:$0x1]
        %v965 = vpack.c.bf16 %v840, %v840
        %v966 = vpack.c.bf16 %v899, %v899
        %v967 = vpack.c.bf16 %v958, %v958
        %vm968 = vcmask 64512
        %v970 = vsel %vm968, %v965, 0
        %v973 = vsel %vm968, %v966, 0
        %975 = vmatprep.subr.bf16.mxu0 0
        %976 = vmatpush1.bf16.xpose.msra.mxu0 0
        %977 = vmatprep.subr.bf16.mxu0 0
        %978 = vmatpush1.bf16.xpose.msra.mxu0 0
        %979 = vmatprep.subr.bf16.mxu0 0
        %980 = vmatpush1.bf16.xpose.msra.mxu0 0
        %981 = vmatprep.subr.bf16.mxu0 0
        %982 = vmatpush1.bf16.xpose.msra.mxu0 0
        %983 = vmatprep.subr.bf16.mxu0 0
        %984 = vmatpush1.bf16.xpose.msra.mxu0 0
        %985 = vmatprep.subr.bf16.mxu0 0
        %986 = vmatpush1.bf16.xpose.msra.mxu0 0
        %987 = vmatprep.subr.bf16.mxu0 0
        %988 = vmatpush1.bf16.xpose.msra.mxu0 0
        %989 = vmatprep.subr.bf16.mxu0 0
        %990 = vmatpush1.bf16.xpose.msra.mxu0 %v973
        %991 = vmatprep.subr.bf16.mxu0 0
        %992 = vmatpush2.bf16.xpose.msra.mxu0 0
        %993 = vmatprep.subr.bf16.mxu0 0
        %994 = vmatpush2.bf16.xpose.msra.mxu0 0
        %995 = vmatprep.subr.bf16.mxu0 0
        %996 = vmatpush2.bf16.xpose.msra.mxu0 0
        %997 = vmatprep.subr.bf16.mxu0 0
        %998 = vmatpush2.bf16.xpose.msra.mxu0 0
        %999 = vmatprep.subr.bf16.mxu0 0
        %1000 = vmatpush2.bf16.xpose.msra.mxu0 0
        %1001 = vmatprep.subr.bf16.mxu0 0
        %1002 = vmatpush2.bf16.xpose.msra.mxu0 0
        %1003 = vmatprep.subr.bf16.mxu0 0
        %1004 = vmatpush2.bf16.xpose.msra.mxu0 0
        %1005 = vmatprep.subr.bf16.mxu0 0
        %1006 = vmatpush2.bf16.xpose.msra.mxu0 0
        %1007 = vmatprep.mubr.bf16.mxu0 0
        %1008 = vmatmul.mubr.bf16.gmra.mxu0 %v970
        %v1009 = vpop.f32.mrf.mxu0
        %v1010 = vadd.f32 0.0, %v1009
        %v1011 = vpop.f32.mrf.mxu0
        %v1012 = vpop.f32.mrf.mxu0
        %v1013 = vpop.f32.mrf.mxu0
        %1014 = vdwg.mxu0
        %v1015 = vmul.f32 %v1010, 0.35355338
        %v1017 = vlaneseq
        %v1018 = vshrl.u32 %v1017, 7
        %v1019 = vsub.s32 0, %v1018
        %v1020 = vrot.slane %v964, %v1019
        %v1022 = vadd.f32 %v1015, %v1020
        %v1023 = vsel %vm968, %v1022, -inf
        %1024 = vmax.xlane.f32.xlu0 %v1023
        %v1025 = vpop.xlane.xlu0 %1024
        %v1026 = vsub.f32 %v1022, %v1025
        %v1027 = vmul.f32 %v1026, 1.442695
        %v1028 = vpow.pop %v1027
        %v1029 = vsel %vm968, %v1028, 0.0
        %1030 = vadd.xlane.f32.xlu0 %v1029
        %v1031 = vpop.xlane.xlu0 %1030
        %v1032 = vrcp.pop %v1031
        %v1033 = vmul.f32 %v1028, %v1032
        %v1034 = vpack.c.bf16 %v1033, %v1033
        %v1036 = vsel %vm968, %v1034, 0
        %vm1038 = vcmask 1043456
        %v1040 = vsel %vm1038, %v967, 0
        %1042 = vmatprep.subr.bf16.mxu0 0
        %1043 = vmatpush1.bf16.msra.mxu0 0
        %1044 = vmatprep.subr.bf16.mxu0 0
        %1045 = vmatpush1.bf16.msra.mxu0 0
        %1046 = vmatprep.subr.bf16.mxu0 0
        %1047 = vmatpush1.bf16.msra.mxu0 0
        %1048 = vmatprep.subr.bf16.mxu0 0
        %1049 = vmatpush1.bf16.msra.mxu0 0
        %1050 = vmatprep.subr.bf16.mxu0 0
        %1051 = vmatpush1.bf16.msra.mxu0 0
        %1052 = vmatprep.subr.bf16.mxu0 0
        %1053 = vmatpush1.bf16.msra.mxu0 0
        %1054 = vmatprep.subr.bf16.mxu0 0
        %1055 = vmatpush1.bf16.msra.mxu0 0
        %1056 = vmatprep.subr.bf16.mxu0 0
        %1057 = vmatpush1.bf16.msra.mxu0 %v1040
        %1058 = vmatprep.subr.bf16.mxu0 0
        %1059 = vmatpush2.bf16.msra.mxu0 0
        %1060 = vmatprep.subr.bf16.mxu0 0
        %1061 = vmatpush2.bf16.msra.mxu0 0
        %1062 = vmatprep.subr.bf16.mxu0 0
        %1063 = vmatpush2.bf16.msra.mxu0 0
        %1064 = vmatprep.subr.bf16.mxu0 0
        %1065 = vmatpush2.bf16.msra.mxu0 0
        %1066 = vmatprep.subr.bf16.mxu0 0
        %1067 = vmatpush2.bf16.msra.mxu0 0
        %1068 = vmatprep.subr.bf16.mxu0 0
        %1069 = vmatpush2.bf16.msra.mxu0 0
        %1070 = vmatprep.subr.bf16.mxu0 0
        %1071 = vmatpush2.bf16.msra.mxu0 0
        %1072 = vmatprep.subr.bf16.mxu0 0
        %1073 = vmatpush2.bf16.msra.mxu0 0
        %1074 = vmatprep.mubr.bf16.mxu0 0
        %1075 = vmatmul.mubr.bf16.gmra.mxu0 %v1036
        %v1076 = vpop.f32.mrf.mxu0
        %v1077 = vadd.f32 0.0, %v1076
        %v1078 = vpop.f32.mrf.mxu0
        %v1079 = vpop.f32.mrf.mxu0
        %v1080 = vpop.f32.mrf.mxu0
        %1081 = vdwg.mxu0
        %v1082 = vpack.c.bf16 %v1077, %v1077
        %1084 = vrot.lane.b32.xlu0 %v965, 120
        %v1085 = vpop.permute.xlu0 %1084
        %1087 = vrot.lane.b32.xlu0 %v966, 120
        %v1088 = vpop.permute.xlu0 %1087
        %v1090 = vsel %vm968, %v1085, 0
        %v1093 = vsel %vm968, %v1088, 0
        %1095 = vmatprep.subr.bf16.mxu0 0
        %1096 = vmatpush1.bf16.xpose.msra.mxu0 0
        %1097 = vmatprep.subr.bf16.mxu0 0
        %1098 = vmatpush1.bf16.xpose.msra.mxu0 0
        %1099 = vmatprep.subr.bf16.mxu0 0
        %1100 = vmatpush1.bf16.xpose.msra.mxu0 0
        %1101 = vmatprep.subr.bf16.mxu0 0
        %1102 = vmatpush1.bf16.xpose.msra.mxu0 0
        %1103 = vmatprep.subr.bf16.mxu0 0
        %1104 = vmatpush1.bf16.xpose.msra.mxu0 0
        %1105 = vmatprep.subr.bf16.mxu0 0
        %1106 = vmatpush1.bf16.xpose.msra.mxu0 0
        %1107 = vmatprep.subr.bf16.mxu0 0
        %1108 = vmatpush1.bf16.xpose.msra.mxu0 0
        %1109 = vmatprep.subr.bf16.mxu0 0
        %1110 = vmatpush1.bf16.xpose.msra.mxu0 %v1093
        %1111 = vmatprep.subr.bf16.mxu0 0
        %1112 = vmatpush2.bf16.xpose.msra.mxu0 0
        %1113 = vmatprep.subr.bf16.mxu0 0
        %1114 = vmatpush2.bf16.xpose.msra.mxu0 0
        %1115 = vmatprep.subr.bf16.mxu0 0
        %1116 = vmatpush2.bf16.xpose.msra.mxu0 0
        %1117 = vmatprep.subr.bf16.mxu0 0
        %1118 = vmatpush2.bf16.xpose.msra.mxu0 0
        %1119 = vmatprep.subr.bf16.mxu0 0
        %1120 = vmatpush2.bf16.xpose.msra.mxu0 0
        %1121 = vmatprep.subr.bf16.mxu0 0
        %1122 = vmatpush2.bf16.xpose.msra.mxu0 0
        %1123 = vmatprep.subr.bf16.mxu0 0
        %1124 = vmatpush2.bf16.xpose.msra.mxu0 0
        %1125 = vmatprep.subr.bf16.mxu0 0
        %1126 = vmatpush2.bf16.xpose.msra.mxu0 0
        %1127 = vmatprep.mubr.bf16.mxu0 0
        %1128 = vmatmul.mubr.bf16.gmra.mxu0 %v1090
        %v1129 = vpop.f32.mrf.mxu0
        %v1130 = vadd.f32 0.0, %v1129
        %v1131 = vpop.f32.mrf.mxu0
        %v1132 = vpop.f32.mrf.mxu0
        %v1133 = vpop.f32.mrf.mxu0
        %1134 = vdwg.mxu0
        %v1135 = vmul.f32 %v1130, 0.35355338
        %v1136 = vadd.f32 %v1135, %v1020
        %v1137 = vsel %vm968, %v1136, -inf
        %1138 = vmax.xlane.f32.xlu0 %v1137
        %v1139 = vpop.xlane.xlu0 %1138
        %v1140 = vsub.f32 %v1136, %v1139
        %v1141 = vmul.f32 %v1140, 1.442695
        %v1142 = vpow.pop %v1141
        %v1143 = vsel %vm968, %v1142, 0.0
        %1144 = vadd.xlane.f32.xlu0 %v1143
        %v1145 = vpop.xlane.xlu0 %1144
        %v1146 = vrcp.pop %v1145
        %v1147 = vmul.f32 %v1142, %v1146
        %v1148 = vpack.c.bf16 %v1147, %v1147
        %1150 = vrot.lane.b32.xlu0 %v967, 120
        %v1151 = vpop.permute.xlu0 %1150
        %v1153 = vsel %vm968, %v1148, 0
        %v1156 = vsel %vm1038, %v1151, 0
        %1158 = vmatprep.subr.bf16.mxu0 0
        %1159 = vmatpush1.bf16.msra.mxu0 0
        %1160 = vmatprep.subr.bf16.mxu0 0
        %1161 = vmatpush1.bf16.msra.mxu0 0
        %1162 = vmatprep.subr.bf16.mxu0 0
        %1163 = vmatpush1.bf16.msra.mxu0 0
        %1164 = vmatprep.subr.bf16.mxu0 0
        %1165 = vmatpush1.bf16.msra.mxu0 0
        %1166 = vmatprep.subr.bf16.mxu0 0
        %1167 = vmatpush1.bf16.msra.mxu0 0
        %1168 = vmatprep.subr.bf16.mxu0 0
        %1169 = vmatpush1.bf16.msra.mxu0 0
        %1170 = vmatprep.subr.bf16.mxu0 0
        %1171 = vmatpush1.bf16.msra.mxu0 0
        %1172 = vmatprep.subr.bf16.mxu0 0
        %1173 = vmatpush1.bf16.msra.mxu0 %v1156
        %1174 = vmatprep.subr.bf16.mxu0 0
        %1175 = vmatpush2.bf16.msra.mxu0 0
        %1176 = vmatprep.subr.bf16.mxu0 0
        %1177 = vmatpush2.bf16.msra.mxu0 0
        %1178 = vmatprep.subr.bf16.mxu0 0
        %1179 = vmatpush2.bf16.msra.mxu0 0
        %1180 = vmatprep.subr.bf16.mxu0 0
        %1181 = vmatpush2.bf16.msra.mxu0 0
        %1182 = vmatprep.subr.bf16.mxu0 0
        %1183 = vmatpush2.bf16.msra.mxu0 0
        %1184 = vmatprep.subr.bf16.mxu0 0
        %1185 = vmatpush2.bf16.msra.mxu0 0
        %1186 = vmatprep.subr.bf16.mxu0 0
        %1187 = vmatpush2.bf16.msra.mxu0 0
        %1188 = vmatprep.subr.bf16.mxu0 0
        %1189 = vmatpush2.bf16.msra.mxu0 0
        %1190 = vmatprep.mubr.bf16.mxu0 0
        %1191 = vmatmul.mubr.bf16.gmra.mxu0 %v1153
        %v1192 = vpop.f32.mrf.mxu0
        %v1193 = vadd.f32 0.0, %v1192
        %v1194 = vpop.f32.mrf.mxu0
        %v1195 = vpop.f32.mrf.mxu0
        %v1196 = vpop.f32.mrf.mxu0
        %1197 = vdwg.mxu0
        %v1198 = vpack.c.bf16 %v1193, %v1193
        %v1200 = vsel %vm968, %v1198, 0
        %v1203 = vsel %vm1038, %v742, 0
        %1205 = vmatprep.subr.bf16.mxu0 0
        %1206 = vmatpush1.bf16.msra.mxu0 0
        %1207 = vmatprep.subr.bf16.mxu0 0
        %1208 = vmatpush1.bf16.msra.mxu0 0
        %1209 = vmatprep.subr.bf16.mxu0 0
        %1210 = vmatpush1.bf16.msra.mxu0 0
        %1211 = vmatprep.subr.bf16.mxu0 0
        %1212 = vmatpush1.bf16.msra.mxu0 0
        %1213 = vmatprep.subr.bf16.mxu0 0
        %1214 = vmatpush1.bf16.msra.mxu0 0
        %1215 = vmatprep.subr.bf16.mxu0 0
        %1216 = vmatpush1.bf16.msra.mxu0 0
        %1217 = vmatprep.subr.bf16.mxu0 0
        %1218 = vmatpush1.bf16.msra.mxu0 0
        %1219 = vmatprep.subr.bf16.mxu0 0
        %1220 = vmatpush1.bf16.msra.mxu0 %v1203
        %1221 = vmatprep.subr.bf16.mxu0 0
        %1222 = vmatpush2.bf16.msra.mxu0 0
        %1223 = vmatprep.subr.bf16.mxu0 0
        %1224 = vmatpush2.bf16.msra.mxu0 0
        %1225 = vmatprep.subr.bf16.mxu0 0
        %1226 = vmatpush2.bf16.msra.mxu0 0
        %1227 = vmatprep.subr.bf16.mxu0 0
        %1228 = vmatpush2.bf16.msra.mxu0 0
        %1229 = vmatprep.subr.bf16.mxu0 0
        %1230 = vmatpush2.bf16.msra.mxu0 0
        %1231 = vmatprep.subr.bf16.mxu0 0
        %1232 = vmatpush2.bf16.msra.mxu0 0
        %1233 = vmatprep.subr.bf16.mxu0 0
        %1234 = vmatpush2.bf16.msra.mxu0 0
        %1235 = vmatprep.subr.bf16.mxu0 0
        %1236 = vmatpush2.bf16.msra.mxu0 0
        %1237 = vmatprep.mubr.bf16.mxu0 0
        %1238 = vmatmul.mubr.bf16.gmra.mxu0 %v1200
        %v1239 = vpop.f32.mrf.mxu0
        %v1240 = vadd.f32 0.0, %v1239
        %v1241 = vpop.f32.mrf.mxu0
        %v1242 = vpop.f32.mrf.mxu0
        %v1243 = vpop.f32.mrf.mxu0
        %1244 = vdwg.mxu0
        %v1246 = vsel %vm968, %v1082, 0
        %v1249 = vsel %vm1038, %v741, 0
        %1251 = vmatprep.subr.bf16.mxu0 0
        %1252 = vmatpush1.bf16.msra.mxu0 0
        %1253 = vmatprep.subr.bf16.mxu0 0
        %1254 = vmatpush1.bf16.msra.mxu0 0
        %1255 = vmatprep.subr.bf16.mxu0 0
        %1256 = vmatpush1.bf16.msra.mxu0 0
        %1257 = vmatprep.subr.bf16.mxu0 0
        %1258 = vmatpush1.bf16.msra.mxu0 0
        %1259 = vmatprep.subr.bf16.mxu0 0
        %1260 = vmatpush1.bf16.msra.mxu0 0
        %1261 = vmatprep.subr.bf16.mxu0 0
        %1262 = vmatpush1.bf16.msra.mxu0 0
        %1263 = vmatprep.subr.bf16.mxu0 0
        %1264 = vmatpush1.bf16.msra.mxu0 0
        %1265 = vmatprep.subr.bf16.mxu0 0
        %1266 = vmatpush1.bf16.msra.mxu0 %v1249
        %1267 = vmatprep.subr.bf16.mxu0 0
        %1268 = vmatpush2.bf16.msra.mxu0 0
        %1269 = vmatprep.subr.bf16.mxu0 0
        %1270 = vmatpush2.bf16.msra.mxu0 0
        %1271 = vmatprep.subr.bf16.mxu0 0
        %1272 = vmatpush2.bf16.msra.mxu0 0
        %1273 = vmatprep.subr.bf16.mxu0 0
        %1274 = vmatpush2.bf16.msra.mxu0 0
        %1275 = vmatprep.subr.bf16.mxu0 0
        %1276 = vmatpush2.bf16.msra.mxu0 0
        %1277 = vmatprep.subr.bf16.mxu0 0
        %1278 = vmatpush2.bf16.msra.mxu0 0
        %1279 = vmatprep.subr.bf16.mxu0 0
        %1280 = vmatpush2.bf16.msra.mxu0 0
        %1281 = vmatprep.subr.bf16.mxu0 0
        %1282 = vmatpush2.bf16.msra.mxu0 0
        %1283 = vmatprep.mubr.bf16.mxu0 0
        %1284 = vmatmul.mubr.bf16.gmra.mxu0 %v1246
        %v1285 = vpop.f32.mrf.mxu0
        %v1286 = vadd.f32 %v1240, %v1285
        %v1287 = vpop.f32.mrf.mxu0
        %v1288 = vpop.f32.mrf.mxu0
        %v1289 = vpop.f32.mrf.mxu0
        %1290 = vdwg.mxu0
        %1291 = vrot.lane.b32.xlu0 %v965, 112
        %v1292 = vpop.permute.xlu0 %1291
        %1293 = vrot.lane.b32.xlu0 %v966, 112
        %v1294 = vpop.permute.xlu0 %1293
        %v1296 = vsel %vm968, %v1292, 0
        %v1299 = vsel %vm968, %v1294, 0
        %1301 = vmatprep.subr.bf16.mxu0 0
        %1302 = vmatpush1.bf16.xpose.msra.mxu0 0
        %1303 = vmatprep.subr.bf16.mxu0 0
        %1304 = vmatpush1.bf16.xpose.msra.mxu0 0
        %1305 = vmatprep.subr.bf16.mxu0 0
        %1306 = vmatpush1.bf16.xpose.msra.mxu0 0
        %1307 = vmatprep.subr.bf16.mxu0 0
        %1308 = vmatpush1.bf16.xpose.msra.mxu0 0
        %1309 = vmatprep.subr.bf16.mxu0 0
        %1310 = vmatpush1.bf16.xpose.msra.mxu0 0
        %1311 = vmatprep.subr.bf16.mxu0 0
        %1312 = vmatpush1.bf16.xpose.msra.mxu0 0
        %1313 = vmatprep.subr.bf16.mxu0 0
        %1314 = vmatpush1.bf16.xpose.msra.mxu0 0
        %1315 = vmatprep.subr.bf16.mxu0 0
        %1316 = vmatpush1.bf16.xpose.msra.mxu0 %v1299
        %1317 = vmatprep.subr.bf16.mxu0 0
        %1318 = vmatpush2.bf16.xpose.msra.mxu0 0
        %1319 = vmatprep.subr.bf16.mxu0 0
        %1320 = vmatpush2.bf16.xpose.msra.mxu0 0
        %1321 = vmatprep.subr.bf16.mxu0 0
        %1322 = vmatpush2.bf16.xpose.msra.mxu0 0
        %1323 = vmatprep.subr.bf16.mxu0 0
        %1324 = vmatpush2.bf16.xpose.msra.mxu0 0
        %1325 = vmatprep.subr.bf16.mxu0 0
        %1326 = vmatpush2.bf16.xpose.msra.mxu0 0
        %1327 = vmatprep.subr.bf16.mxu0 0
        %1328 = vmatpush2.bf16.xpose.msra.mxu0 0
        %1329 = vmatprep.subr.bf16.mxu0 0
        %1330 = vmatpush2.bf16.xpose.msra.mxu0 0
        %1331 = vmatprep.subr.bf16.mxu0 0
        %1332 = vmatpush2.bf16.xpose.msra.mxu0 0
        %1333 = vmatprep.mubr.bf16.mxu0 0
        %1334 = vmatmul.mubr.bf16.gmra.mxu0 %v1296
        %v1335 = vpop.f32.mrf.mxu0
        %v1336 = vadd.f32 0.0, %v1335
        %v1337 = vpop.f32.mrf.mxu0
        %v1338 = vpop.f32.mrf.mxu0
        %v1339 = vpop.f32.mrf.mxu0
        %1340 = vdwg.mxu0
        %v1341 = vmul.f32 %v1336, 0.35355338
        %v1342 = vadd.f32 %v1341, %v1020
        %v1343 = vsel %vm968, %v1342, -inf
        %1344 = vmax.xlane.f32.xlu0 %v1343
        %v1345 = vpop.xlane.xlu0 %1344
        %v1346 = vsub.f32 %v1342, %v1345
        %v1347 = vmul.f32 %v1346, 1.442695
        %v1348 = vpow.pop %v1347
        %v1349 = vsel %vm968, %v1348, 0.0
        %1350 = vadd.xlane.f32.xlu0 %v1349
        %v1351 = vpop.xlane.xlu0 %1350
        %v1352 = vrcp.pop %v1351
        %v1353 = vmul.f32 %v1348, %v1352
        %v1354 = vpack.c.bf16 %v1353, %v1353
        %1355 = vrot.lane.b32.xlu0 %v967, 112
        %v1356 = vpop.permute.xlu0 %1355
        %v1358 = vsel %vm968, %v1354, 0
        %v1361 = vsel %vm1038, %v1356, 0
        %1363 = vmatprep.subr.bf16.mxu0 0
        %1364 = vmatpush1.bf16.msra.mxu0 0
        %1365 = vmatprep.subr.bf16.mxu0 0
        %1366 = vmatpush1.bf16.msra.mxu0 0
        %1367 = vmatprep.subr.bf16.mxu0 0
        %1368 = vmatpush1.bf16.msra.mxu0 0
        %1369 = vmatprep.subr.bf16.mxu0 0
        %1370 = vmatpush1.bf16.msra.mxu0 0
        %1371 = vmatprep.subr.bf16.mxu0 0
        %1372 = vmatpush1.bf16.msra.mxu0 0
        %1373 = vmatprep.subr.bf16.mxu0 0
        %1374 = vmatpush1.bf16.msra.mxu0 0
        %1375 = vmatprep.subr.bf16.mxu0 0
        %1376 = vmatpush1.bf16.msra.mxu0 0
        %1377 = vmatprep.subr.bf16.mxu0 0
        %1378 = vmatpush1.bf16.msra.mxu0 %v1361
        %1379 = vmatprep.subr.bf16.mxu0 0
        %1380 = vmatpush2.bf16.msra.mxu0 0
        %1381 = vmatprep.subr.bf16.mxu0 0
        %1382 = vmatpush2.bf16.msra.mxu0 0
        %1383 = vmatprep.subr.bf16.mxu0 0
        %1384 = vmatpush2.bf16.msra.mxu0 0
        %1385 = vmatprep.subr.bf16.mxu0 0
        %1386 = vmatpush2.bf16.msra.mxu0 0
        %1387 = vmatprep.subr.bf16.mxu0 0
        %1388 = vmatpush2.bf16.msra.mxu0 0
        %1389 = vmatprep.subr.bf16.mxu0 0
        %1390 = vmatpush2.bf16.msra.mxu0 0
        %1391 = vmatprep.subr.bf16.mxu0 0
        %1392 = vmatpush2.bf16.msra.mxu0 0
        %1393 = vmatprep.subr.bf16.mxu0 0
        %1394 = vmatpush2.bf16.msra.mxu0 0
        %1395 = vmatprep.mubr.bf16.mxu0 0
        %1396 = vmatmul.mubr.bf16.gmra.mxu0 %v1358
        %v1397 = vpop.f32.mrf.mxu0
        %v1398 = vadd.f32 0.0, %v1397
        %v1399 = vpop.f32.mrf.mxu0
        %v1400 = vpop.f32.mrf.mxu0
        %v1401 = vpop.f32.mrf.mxu0
        %1402 = vdwg.mxu0
        %v1403 = vpack.c.bf16 %v1398, %v1398
        %v1405 = vsel %vm968, %v1403, 0
        %v1408 = vsel %vm1038, %v743, 0
        %1410 = vmatprep.subr.bf16.mxu0 0
        %1411 = vmatpush1.bf16.msra.mxu0 0
        %1412 = vmatprep.subr.bf16.mxu0 0
        %1413 = vmatpush1.bf16.msra.mxu0 0
        %1414 = vmatprep.subr.bf16.mxu0 0
        %1415 = vmatpush1.bf16.msra.mxu0 0
        %1416 = vmatprep.subr.bf16.mxu0 0
        %1417 = vmatpush1.bf16.msra.mxu0 0
        %1418 = vmatprep.subr.bf16.mxu0 0
        %1419 = vmatpush1.bf16.msra.mxu0 0
        %1420 = vmatprep.subr.bf16.mxu0 0
        %1421 = vmatpush1.bf16.msra.mxu0 0
        %1422 = vmatprep.subr.bf16.mxu0 0
        %1423 = vmatpush1.bf16.msra.mxu0 0
        %1424 = vmatprep.subr.bf16.mxu0 0
        %1425 = vmatpush1.bf16.msra.mxu0 %v1408
        %1426 = vmatprep.subr.bf16.mxu0 0
        %1427 = vmatpush2.bf16.msra.mxu0 0
        %1428 = vmatprep.subr.bf16.mxu0 0
        %1429 = vmatpush2.bf16.msra.mxu0 0
        %1430 = vmatprep.subr.bf16.mxu0 0
        %1431 = vmatpush2.bf16.msra.mxu0 0
        %1432 = vmatprep.subr.bf16.mxu0 0
        %1433 = vmatpush2.bf16.msra.mxu0 0
        %1434 = vmatprep.subr.bf16.mxu0 0
        %1435 = vmatpush2.bf16.msra.mxu0 0
        %1436 = vmatprep.subr.bf16.mxu0 0
        %1437 = vmatpush2.bf16.msra.mxu0 0
        %1438 = vmatprep.subr.bf16.mxu0 0
        %1439 = vmatpush2.bf16.msra.mxu0 0
        %1440 = vmatprep.subr.bf16.mxu0 0
        %1441 = vmatpush2.bf16.msra.mxu0 0
        %1442 = vmatprep.mubr.bf16.mxu0 0
        %1443 = vmatmul.mubr.bf16.gmra.mxu0 %v1405
        %v1444 = vpop.f32.mrf.mxu0
        %v1445 = vadd.f32 0.0, %v1444
        %v1446 = vpop.f32.mrf.mxu0
        %v1447 = vpop.f32.mrf.mxu0
        %v1448 = vpop.f32.mrf.mxu0
        %1449 = vdwg.mxu0
        %v1450 = vadd.f32 %v1286, %v1445
        %1451 = vrot.lane.b32.xlu0 %v965, 104
        %v1452 = vpop.permute.xlu0 %1451
        %1453 = vrot.lane.b32.xlu0 %v966, 104
        %v1454 = vpop.permute.xlu0 %1453
        %v1456 = vsel %vm968, %v1452, 0
        %v1459 = vsel %vm968, %v1454, 0
        %1461 = vmatprep.subr.bf16.mxu0 0
        %1462 = vmatpush1.bf16.xpose.msra.mxu0 0
        %1463 = vmatprep.subr.bf16.mxu0 0
        %1464 = vmatpush1.bf16.xpose.msra.mxu0 0
        %1465 = vmatprep.subr.bf16.mxu0 0
        %1466 = vmatpush1.bf16.xpose.msra.mxu0 0
        %1467 = vmatprep.subr.bf16.mxu0 0
        %1468 = vmatpush1.bf16.xpose.msra.mxu0 0
        %1469 = vmatprep.subr.bf16.mxu0 0
        %1470 = vmatpush1.bf16.xpose.msra.mxu0 0
        %1471 = vmatprep.subr.bf16.mxu0 0
        %1472 = vmatpush1.bf16.xpose.msra.mxu0 0
        %1473 = vmatprep.subr.bf16.mxu0 0
        %1474 = vmatpush1.bf16.xpose.msra.mxu0 0
        %1475 = vmatprep.subr.bf16.mxu0 0
        %1476 = vmatpush1.bf16.xpose.msra.mxu0 %v1459
        %1477 = vmatprep.subr.bf16.mxu0 0
        %1478 = vmatpush2.bf16.xpose.msra.mxu0 0
        %1479 = vmatprep.subr.bf16.mxu0 0
        %1480 = vmatpush2.bf16.xpose.msra.mxu0 0
        %1481 = vmatprep.subr.bf16.mxu0 0
        %1482 = vmatpush2.bf16.xpose.msra.mxu0 0
        %1483 = vmatprep.subr.bf16.mxu0 0
        %1484 = vmatpush2.bf16.xpose.msra.mxu0 0
        %1485 = vmatprep.subr.bf16.mxu0 0
        %1486 = vmatpush2.bf16.xpose.msra.mxu0 0
        %1487 = vmatprep.subr.bf16.mxu0 0
        %1488 = vmatpush2.bf16.xpose.msra.mxu0 0
        %1489 = vmatprep.subr.bf16.mxu0 0
        %1490 = vmatpush2.bf16.xpose.msra.mxu0 0
        %1491 = vmatprep.subr.bf16.mxu0 0
        %1492 = vmatpush2.bf16.xpose.msra.mxu0 0
        %1493 = vmatprep.mubr.bf16.mxu0 0
        %1494 = vmatmul.mubr.bf16.gmra.mxu0 %v1456
        %v1495 = vpop.f32.mrf.mxu0
        %v1496 = vadd.f32 0.0, %v1495
        %v1497 = vpop.f32.mrf.mxu0
        %v1498 = vpop.f32.mrf.mxu0
        %v1499 = vpop.f32.mrf.mxu0
        %1500 = vdwg.mxu0
        %v1501 = vmul.f32 %v1496, 0.35355338
        %v1502 = vadd.f32 %v1501, %v1020
        %v1503 = vsel %vm968, %v1502, -inf
        %1504 = vmax.xlane.f32.xlu0 %v1503
        %v1505 = vpop.xlane.xlu0 %1504
        %v1506 = vsub.f32 %v1502, %v1505
        %v1507 = vmul.f32 %v1506, 1.442695
        %v1508 = vpow.pop %v1507
        %v1509 = vsel %vm968, %v1508, 0.0
        %1510 = vadd.xlane.f32.xlu0 %v1509
        %v1511 = vpop.xlane.xlu0 %1510
        %v1512 = vrcp.pop %v1511
        %v1513 = vmul.f32 %v1508, %v1512
        %v1514 = vpack.c.bf16 %v1513, %v1513
        %1515 = vrot.lane.b32.xlu0 %v967, 104
        %v1516 = vpop.permute.xlu0 %1515
        %v1518 = vsel %vm968, %v1514, 0
        %v1521 = vsel %vm1038, %v1516, 0
        %1523 = vmatprep.subr.bf16.mxu0 0
        %1524 = vmatpush1.bf16.msra.mxu0 0
        %1525 = vmatprep.subr.bf16.mxu0 0
        %1526 = vmatpush1.bf16.msra.mxu0 0
        %1527 = vmatprep.subr.bf16.mxu0 0
        %1528 = vmatpush1.bf16.msra.mxu0 0
        %1529 = vmatprep.subr.bf16.mxu0 0
        %1530 = vmatpush1.bf16.msra.mxu0 0
        %1531 = vmatprep.subr.bf16.mxu0 0
        %1532 = vmatpush1.bf16.msra.mxu0 0
        %1533 = vmatprep.subr.bf16.mxu0 0
        %1534 = vmatpush1.bf16.msra.mxu0 0
        %1535 = vmatprep.subr.bf16.mxu0 0
        %1536 = vmatpush1.bf16.msra.mxu0 0
        %1537 = vmatprep.subr.bf16.mxu0 0
        %1538 = vmatpush1.bf16.msra.mxu0 %v1521
        %1539 = vmatprep.subr.bf16.mxu0 0
        %1540 = vmatpush2.bf16.msra.mxu0 0
        %1541 = vmatprep.subr.bf16.mxu0 0
        %1542 = vmatpush2.bf16.msra.mxu0 0
        %1543 = vmatprep.subr.bf16.mxu0 0
        %1544 = vmatpush2.bf16.msra.mxu0 0
        %1545 = vmatprep.subr.bf16.mxu0 0
        %1546 = vmatpush2.bf16.msra.mxu0 0
        %1547 = vmatprep.subr.bf16.mxu0 0
        %1548 = vmatpush2.bf16.msra.mxu0 0
        %1549 = vmatprep.subr.bf16.mxu0 0
        %1550 = vmatpush2.bf16.msra.mxu0 0
        %1551 = vmatprep.subr.bf16.mxu0 0
        %1552 = vmatpush2.bf16.msra.mxu0 0
        %1553 = vmatprep.subr.bf16.mxu0 0
        %1554 = vmatpush2.bf16.msra.mxu0 0
        %1555 = vmatprep.mubr.bf16.mxu0 0
        %1556 = vmatmul.mubr.bf16.gmra.mxu0 %v1518
        %v1557 = vpop.f32.mrf.mxu0
        %v1558 = vadd.f32 0.0, %v1557
        %v1559 = vpop.f32.mrf.mxu0
        %v1560 = vpop.f32.mrf.mxu0
        %v1561 = vpop.f32.mrf.mxu0
        %1562 = vdwg.mxu0
        %v1563 = vpack.c.bf16 %v1558, %v1558
        %v1565 = vsel %vm968, %v1563, 0
        %v1568 = vsel %vm1038, %v744, 0
        %1570 = vmatprep.subr.bf16.mxu0 0
        %1571 = vmatpush1.bf16.msra.mxu0 0
        %1572 = vmatprep.subr.bf16.mxu0 0
        %1573 = vmatpush1.bf16.msra.mxu0 0
        %1574 = vmatprep.subr.bf16.mxu0 0
        %1575 = vmatpush1.bf16.msra.mxu0 0
        %1576 = vmatprep.subr.bf16.mxu0 0
        %1577 = vmatpush1.bf16.msra.mxu0 0
        %1578 = vmatprep.subr.bf16.mxu0 0
        %1579 = vmatpush1.bf16.msra.mxu0 0
        %1580 = vmatprep.subr.bf16.mxu0 0
        %1581 = vmatpush1.bf16.msra.mxu0 0
        %1582 = vmatprep.subr.bf16.mxu0 0
        %1583 = vmatpush1.bf16.msra.mxu0 0
        %1584 = vmatprep.subr.bf16.mxu0 0
        %1585 = vmatpush1.bf16.msra.mxu0 %v1568
        %1586 = vmatprep.subr.bf16.mxu0 0
        %1587 = vmatpush2.bf16.msra.mxu0 0
        %1588 = vmatprep.subr.bf16.mxu0 0
        %1589 = vmatpush2.bf16.msra.mxu0 0
        %1590 = vmatprep.subr.bf16.mxu0 0
        %1591 = vmatpush2.bf16.msra.mxu0 0
        %1592 = vmatprep.subr.bf16.mxu0 0
        %1593 = vmatpush2.bf16.msra.mxu0 0
        %1594 = vmatprep.subr.bf16.mxu0 0
        %1595 = vmatpush2.bf16.msra.mxu0 0
        %1596 = vmatprep.subr.bf16.mxu0 0
        %1597 = vmatpush2.bf16.msra.mxu0 0
        %1598 = vmatprep.subr.bf16.mxu0 0
        %1599 = vmatpush2.bf16.msra.mxu0 0
        %1600 = vmatprep.subr.bf16.mxu0 0
        %1601 = vmatpush2.bf16.msra.mxu0 0
        %1602 = vmatprep.mubr.bf16.mxu0 0
        %1603 = vmatmul.mubr.bf16.gmra.mxu0 %v1565
        %v1604 = vpop.f32.mrf.mxu0
        %v1605 = vadd.f32 0.0, %v1604
        %v1606 = vpop.f32.mrf.mxu0
        %v1607 = vpop.f32.mrf.mxu0
        %v1608 = vpop.f32.mrf.mxu0
        %1609 = vdwg.mxu0
        %v1610 = vadd.f32 %v1450, %v1605
        %s1611 = scalar_lea.vmem %s689, 1
        %v1612 = vld [vmem:[%s1611] sm:$0x1]
        %v1613 = vpack.c.bf16 %v843, %v843
        %v1614 = vpack.c.bf16 %v902, %v902
        %v1615 = vpack.c.bf16 %v961, %v961
        %v1617 = vsel %vm968, %v1613, 0
        %v1620 = vsel %vm968, %v1614, 0
        %1622 = vmatprep.subr.bf16.mxu0 0
        %1623 = vmatpush1.bf16.xpose.msra.mxu0 0
        %1624 = vmatprep.subr.bf16.mxu0 0
        %1625 = vmatpush1.bf16.xpose.msra.mxu0 0
        %1626 = vmatprep.subr.bf16.mxu0 0
        %1627 = vmatpush1.bf16.xpose.msra.mxu0 0
        %1628 = vmatprep.subr.bf16.mxu0 0
        %1629 = vmatpush1.bf16.xpose.msra.mxu0 0
        %1630 = vmatprep.subr.bf16.mxu0 0
        %1631 = vmatpush1.bf16.xpose.msra.mxu0 0
        %1632 = vmatprep.subr.bf16.mxu0 0
        %1633 = vmatpush1.bf16.xpose.msra.mxu0 0
        %1634 = vmatprep.subr.bf16.mxu0 0
        %1635 = vmatpush1.bf16.xpose.msra.mxu0 0
        %1636 = vmatprep.subr.bf16.mxu0 0
        %1637 = vmatpush1.bf16.xpose.msra.mxu0 %v1620
        %1638 = vmatprep.subr.bf16.mxu0 0
        %1639 = vmatpush2.bf16.xpose.msra.mxu0 0
        %1640 = vmatprep.subr.bf16.mxu0 0
        %1641 = vmatpush2.bf16.xpose.msra.mxu0 0
        %1642 = vmatprep.subr.bf16.mxu0 0
        %1643 = vmatpush2.bf16.xpose.msra.mxu0 0
        %1644 = vmatprep.subr.bf16.mxu0 0
        %1645 = vmatpush2.bf16.xpose.msra.mxu0 0
        %1646 = vmatprep.subr.bf16.mxu0 0
        %1647 = vmatpush2.bf16.xpose.msra.mxu0 0
        %1648 = vmatprep.subr.bf16.mxu0 0
        %1649 = vmatpush2.bf16.xpose.msra.mxu0 0
        %1650 = vmatprep.subr.bf16.mxu0 0
        %1651 = vmatpush2.bf16.xpose.msra.mxu0 0
        %1652 = vmatprep.subr.bf16.mxu0 0
        %1653 = vmatpush2.bf16.xpose.msra.mxu0 0
        %1654 = vmatprep.mubr.bf16.mxu0 0
        %1655 = vmatmul.mubr.bf16.gmra.mxu0 %v1617
        %v1656 = vpop.f32.mrf.mxu0
        %v1657 = vadd.f32 0.0, %v1656
        %v1658 = vpop.f32.mrf.mxu0
        %v1659 = vpop.f32.mrf.mxu0
        %v1660 = vpop.f32.mrf.mxu0
        %1661 = vdwg.mxu0
        %v1662 = vmul.f32 %v1657, 0.35355338
        %v1664 = vlaneseq
        %v1665 = vshrl.u32 %v1664, 7
        %v1666 = vsub.s32 0, %v1665
        %v1667 = vrot.slane %v1612, %v1666
        %v1669 = vadd.f32 %v1662, %v1667
        %v1670 = vsel %vm968, %v1669, -inf
        %1671 = vmax.xlane.f32.xlu0 %v1670
        %v1672 = vpop.xlane.xlu0 %1671
        %v1673 = vsub.f32 %v1669, %v1672
        %v1674 = vmul.f32 %v1673, 1.442695
        %v1675 = vpow.pop %v1674
        %v1676 = vsel %vm968, %v1675, 0.0
        %1677 = vadd.xlane.f32.xlu0 %v1676
        %v1678 = vpop.xlane.xlu0 %1677
        %v1679 = vrcp.pop %v1678
        %v1680 = vmul.f32 %v1675, %v1679
        %v1681 = vpack.c.bf16 %v1680, %v1680
        %v1683 = vsel %vm968, %v1681, 0
        %v1686 = vsel %vm1038, %v1615, 0
        %1688 = vmatprep.subr.bf16.mxu0 0
        %1689 = vmatpush1.bf16.msra.mxu0 0
        %1690 = vmatprep.subr.bf16.mxu0 0
        %1691 = vmatpush1.bf16.msra.mxu0 0
        %1692 = vmatprep.subr.bf16.mxu0 0
        %1693 = vmatpush1.bf16.msra.mxu0 0
        %1694 = vmatprep.subr.bf16.mxu0 0
        %1695 = vmatpush1.bf16.msra.mxu0 0
        %1696 = vmatprep.subr.bf16.mxu0 0
        %1697 = vmatpush1.bf16.msra.mxu0 0
        %1698 = vmatprep.subr.bf16.mxu0 0
        %1699 = vmatpush1.bf16.msra.mxu0 0
        %1700 = vmatprep.subr.bf16.mxu0 0
        %1701 = vmatpush1.bf16.msra.mxu0 0
        %1702 = vmatprep.subr.bf16.mxu0 0
        %1703 = vmatpush1.bf16.msra.mxu0 %v1686
        %1704 = vmatprep.subr.bf16.mxu0 0
        %1705 = vmatpush2.bf16.msra.mxu0 0
        %1706 = vmatprep.subr.bf16.mxu0 0
        %1707 = vmatpush2.bf16.msra.mxu0 0
        %1708 = vmatprep.subr.bf16.mxu0 0
        %1709 = vmatpush2.bf16.msra.mxu0 0
        %1710 = vmatprep.subr.bf16.mxu0 0
        %1711 = vmatpush2.bf16.msra.mxu0 0
        %1712 = vmatprep.subr.bf16.mxu0 0
        %1713 = vmatpush2.bf16.msra.mxu0 0
        %1714 = vmatprep.subr.bf16.mxu0 0
        %1715 = vmatpush2.bf16.msra.mxu0 0
        %1716 = vmatprep.subr.bf16.mxu0 0
        %1717 = vmatpush2.bf16.msra.mxu0 0
        %1718 = vmatprep.subr.bf16.mxu0 0
        %1719 = vmatpush2.bf16.msra.mxu0 0
        %1720 = vmatprep.mubr.bf16.mxu0 0
        %1721 = vmatmul.mubr.bf16.gmra.mxu0 %v1683
        %v1722 = vpop.f32.mrf.mxu0
        %v1723 = vadd.f32 0.0, %v1722
        %v1724 = vpop.f32.mrf.mxu0
        %v1725 = vpop.f32.mrf.mxu0
        %v1726 = vpop.f32.mrf.mxu0
        %1727 = vdwg.mxu0
        %v1728 = vpack.c.bf16 %v1723, %v1723
        %1730 = vrot.lane.b32.xlu0 %v1613, 120
        %v1731 = vpop.permute.xlu0 %1730
        %1733 = vrot.lane.b32.xlu0 %v1614, 120
        %v1734 = vpop.permute.xlu0 %1733
        %v1736 = vsel %vm968, %v1731, 0
        %v1739 = vsel %vm968, %v1734, 0
        %1741 = vmatprep.subr.bf16.mxu0 0
        %1742 = vmatpush1.bf16.xpose.msra.mxu0 0
        %1743 = vmatprep.subr.bf16.mxu0 0
        %1744 = vmatpush1.bf16.xpose.msra.mxu0 0
        %1745 = vmatprep.subr.bf16.mxu0 0
        %1746 = vmatpush1.bf16.xpose.msra.mxu0 0
        %1747 = vmatprep.subr.bf16.mxu0 0
        %1748 = vmatpush1.bf16.xpose.msra.mxu0 0
        %1749 = vmatprep.subr.bf16.mxu0 0
        %1750 = vmatpush1.bf16.xpose.msra.mxu0 0
        %1751 = vmatprep.subr.bf16.mxu0 0
        %1752 = vmatpush1.bf16.xpose.msra.mxu0 0
        %1753 = vmatprep.subr.bf16.mxu0 0
        %1754 = vmatpush1.bf16.xpose.msra.mxu0 0
        %1755 = vmatprep.subr.bf16.mxu0 0
        %1756 = vmatpush1.bf16.xpose.msra.mxu0 %v1739
        %1757 = vmatprep.subr.bf16.mxu0 0
        %1758 = vmatpush2.bf16.xpose.msra.mxu0 0
        %1759 = vmatprep.subr.bf16.mxu0 0
        %1760 = vmatpush2.bf16.xpose.msra.mxu0 0
        %1761 = vmatprep.subr.bf16.mxu0 0
        %1762 = vmatpush2.bf16.xpose.msra.mxu0 0
        %1763 = vmatprep.subr.bf16.mxu0 0
        %1764 = vmatpush2.bf16.xpose.msra.mxu0 0
        %1765 = vmatprep.subr.bf16.mxu0 0
        %1766 = vmatpush2.bf16.xpose.msra.mxu0 0
        %1767 = vmatprep.subr.bf16.mxu0 0
        %1768 = vmatpush2.bf16.xpose.msra.mxu0 0
        %1769 = vmatprep.subr.bf16.mxu0 0
        %1770 = vmatpush2.bf16.xpose.msra.mxu0 0
        %1771 = vmatprep.subr.bf16.mxu0 0
        %1772 = vmatpush2.bf16.xpose.msra.mxu0 0
        %1773 = vmatprep.mubr.bf16.mxu0 0
        %1774 = vmatmul.mubr.bf16.gmra.mxu0 %v1736
        %v1775 = vpop.f32.mrf.mxu0
        %v1776 = vadd.f32 0.0, %v1775
        %v1777 = vpop.f32.mrf.mxu0
        %v1778 = vpop.f32.mrf.mxu0
        %v1779 = vpop.f32.mrf.mxu0
        %1780 = vdwg.mxu0
        %v1781 = vmul.f32 %v1776, 0.35355338
        %v1782 = vadd.f32 %v1781, %v1667
        %v1783 = vsel %vm968, %v1782, -inf
        %1784 = vmax.xlane.f32.xlu0 %v1783
        %v1785 = vpop.xlane.xlu0 %1784
        %v1786 = vsub.f32 %v1782, %v1785
        %v1787 = vmul.f32 %v1786, 1.442695
        %v1788 = vpow.pop %v1787
        %v1789 = vsel %vm968, %v1788, 0.0
        %1790 = vadd.xlane.f32.xlu0 %v1789
        %v1791 = vpop.xlane.xlu0 %1790
        %v1792 = vrcp.pop %v1791
        %v1793 = vmul.f32 %v1788, %v1792
        %v1794 = vpack.c.bf16 %v1793, %v1793
        %1796 = vrot.lane.b32.xlu0 %v1615, 120
        %v1797 = vpop.permute.xlu0 %1796
        %v1799 = vsel %vm968, %v1794, 0
        %v1802 = vsel %vm1038, %v1797, 0
        %1804 = vmatprep.subr.bf16.mxu0 0
        %1805 = vmatpush1.bf16.msra.mxu0 0
        %1806 = vmatprep.subr.bf16.mxu0 0
        %1807 = vmatpush1.bf16.msra.mxu0 0
        %1808 = vmatprep.subr.bf16.mxu0 0
        %1809 = vmatpush1.bf16.msra.mxu0 0
        %1810 = vmatprep.subr.bf16.mxu0 0
        %1811 = vmatpush1.bf16.msra.mxu0 0
        %1812 = vmatprep.subr.bf16.mxu0 0
        %1813 = vmatpush1.bf16.msra.mxu0 0
        %1814 = vmatprep.subr.bf16.mxu0 0
        %1815 = vmatpush1.bf16.msra.mxu0 0
        %1816 = vmatprep.subr.bf16.mxu0 0
        %1817 = vmatpush1.bf16.msra.mxu0 0
        %1818 = vmatprep.subr.bf16.mxu0 0
        %1819 = vmatpush1.bf16.msra.mxu0 %v1802
        %1820 = vmatprep.subr.bf16.mxu0 0
        %1821 = vmatpush2.bf16.msra.mxu0 0
        %1822 = vmatprep.subr.bf16.mxu0 0
        %1823 = vmatpush2.bf16.msra.mxu0 0
        %1824 = vmatprep.subr.bf16.mxu0 0
        %1825 = vmatpush2.bf16.msra.mxu0 0
        %1826 = vmatprep.subr.bf16.mxu0 0
        %1827 = vmatpush2.bf16.msra.mxu0 0
        %1828 = vmatprep.subr.bf16.mxu0 0
        %1829 = vmatpush2.bf16.msra.mxu0 0
        %1830 = vmatprep.subr.bf16.mxu0 0
        %1831 = vmatpush2.bf16.msra.mxu0 0
        %1832 = vmatprep.subr.bf16.mxu0 0
        %1833 = vmatpush2.bf16.msra.mxu0 0
        %1834 = vmatprep.subr.bf16.mxu0 0
        %1835 = vmatpush2.bf16.msra.mxu0 0
        %1836 = vmatprep.mubr.bf16.mxu0 0
        %1837 = vmatmul.mubr.bf16.gmra.mxu0 %v1799
        %v1838 = vpop.f32.mrf.mxu0
        %v1839 = vadd.f32 0.0, %v1838
        %v1840 = vpop.f32.mrf.mxu0
        %v1841 = vpop.f32.mrf.mxu0
        %v1842 = vpop.f32.mrf.mxu0
        %1843 = vdwg.mxu0
        %v1844 = vpack.c.bf16 %v1839, %v1839
        %v1846 = vsel %vm968, %v1844, 0
        %1848 = vmatprep.subr.bf16.mxu0 0
        %1849 = vmatpush1.bf16.msra.mxu0 0
        %1850 = vmatprep.subr.bf16.mxu0 0
        %1851 = vmatpush1.bf16.msra.mxu0 0
        %1852 = vmatprep.subr.bf16.mxu0 0
        %1853 = vmatpush1.bf16.msra.mxu0 0
        %1854 = vmatprep.subr.bf16.mxu0 0
        %1855 = vmatpush1.bf16.msra.mxu0 0
        %1856 = vmatprep.subr.bf16.mxu0 0
        %1857 = vmatpush1.bf16.msra.mxu0 0
        %1858 = vmatprep.subr.bf16.mxu0 0
        %1859 = vmatpush1.bf16.msra.mxu0 0
        %1860 = vmatprep.subr.bf16.mxu0 0
        %1861 = vmatpush1.bf16.msra.mxu0 0
        %1862 = vmatprep.subr.bf16.mxu0 0
        %1863 = vmatpush1.bf16.msra.mxu0 %v1203
        %1864 = vmatprep.subr.bf16.mxu0 0
        %1865 = vmatpush2.bf16.msra.mxu0 0
        %1866 = vmatprep.subr.bf16.mxu0 0
        %1867 = vmatpush2.bf16.msra.mxu0 0
        %1868 = vmatprep.subr.bf16.mxu0 0
        %1869 = vmatpush2.bf16.msra.mxu0 0
        %1870 = vmatprep.subr.bf16.mxu0 0
        %1871 = vmatpush2.bf16.msra.mxu0 0
        %1872 = vmatprep.subr.bf16.mxu0 0
        %1873 = vmatpush2.bf16.msra.mxu0 0
        %1874 = vmatprep.subr.bf16.mxu0 0
        %1875 = vmatpush2.bf16.msra.mxu0 0
        %1876 = vmatprep.subr.bf16.mxu0 0
        %1877 = vmatpush2.bf16.msra.mxu0 0
        %1878 = vmatprep.subr.bf16.mxu0 0
        %1879 = vmatpush2.bf16.msra.mxu0 0
        %1880 = vmatprep.mubr.bf16.mxu0 0
        %1881 = vmatmul.mubr.bf16.gmra.mxu0 %v1846
        %v1882 = vpop.f32.mrf.mxu0
        %v1883 = vadd.f32 0.0, %v1882
        %v1884 = vpop.f32.mrf.mxu0
        %v1885 = vpop.f32.mrf.mxu0
        %v1886 = vpop.f32.mrf.mxu0
        %1887 = vdwg.mxu0
        %v1889 = vsel %vm968, %v1728, 0
        %1891 = vmatprep.subr.bf16.mxu0 0
        %1892 = vmatpush1.bf16.msra.mxu0 0
        %1893 = vmatprep.subr.bf16.mxu0 0
        %1894 = vmatpush1.bf16.msra.mxu0 0
        %1895 = vmatprep.subr.bf16.mxu0 0
        %1896 = vmatpush1.bf16.msra.mxu0 0
        %1897 = vmatprep.subr.bf16.mxu0 0
        %1898 = vmatpush1.bf16.msra.mxu0 0
        %1899 = vmatprep.subr.bf16.mxu0 0
        %1900 = vmatpush1.bf16.msra.mxu0 0
        %1901 = vmatprep.subr.bf16.mxu0 0
        %1902 = vmatpush1.bf16.msra.mxu0 0
        %1903 = vmatprep.subr.bf16.mxu0 0
        %1904 = vmatpush1.bf16.msra.mxu0 0
        %1905 = vmatprep.subr.bf16.mxu0 0
        %1906 = vmatpush1.bf16.msra.mxu0 %v1249
        %1907 = vmatprep.subr.bf16.mxu0 0
        %1908 = vmatpush2.bf16.msra.mxu0 0
        %1909 = vmatprep.subr.bf16.mxu0 0
        %1910 = vmatpush2.bf16.msra.mxu0 0
        %1911 = vmatprep.subr.bf16.mxu0 0
        %1912 = vmatpush2.bf16.msra.mxu0 0
        %1913 = vmatprep.subr.bf16.mxu0 0
        %1914 = vmatpush2.bf16.msra.mxu0 0
        %1915 = vmatprep.subr.bf16.mxu0 0
        %1916 = vmatpush2.bf16.msra.mxu0 0
        %1917 = vmatprep.subr.bf16.mxu0 0
        %1918 = vmatpush2.bf16.msra.mxu0 0
        %1919 = vmatprep.subr.bf16.mxu0 0
        %1920 = vmatpush2.bf16.msra.mxu0 0
        %1921 = vmatprep.subr.bf16.mxu0 0
        %1922 = vmatpush2.bf16.msra.mxu0 0
        %1923 = vmatprep.mubr.bf16.mxu0 0
        %1924 = vmatmul.mubr.bf16.gmra.mxu0 %v1889
        %v1925 = vpop.f32.mrf.mxu0
        %v1926 = vadd.f32 %v1883, %v1925
        %v1927 = vpop.f32.mrf.mxu0
        %v1928 = vpop.f32.mrf.mxu0
        %v1929 = vpop.f32.mrf.mxu0
        %1930 = vdwg.mxu0
        %1931 = vrot.lane.b32.xlu0 %v1613, 112
        %v1932 = vpop.permute.xlu0 %1931
        %1933 = vrot.lane.b32.xlu0 %v1614, 112
        %v1934 = vpop.permute.xlu0 %1933
        %v1936 = vsel %vm968, %v1932, 0
        %v1939 = vsel %vm968, %v1934, 0
        %1941 = vmatprep.subr.bf16.mxu0 0
        %1942 = vmatpush1.bf16.xpose.msra.mxu0 0
        %1943 = vmatprep.subr.bf16.mxu0 0
        %1944 = vmatpush1.bf16.xpose.msra.mxu0 0
        %1945 = vmatprep.subr.bf16.mxu0 0
        %1946 = vmatpush1.bf16.xpose.msra.mxu0 0
        %1947 = vmatprep.subr.bf16.mxu0 0
        %1948 = vmatpush1.bf16.xpose.msra.mxu0 0
        %1949 = vmatprep.subr.bf16.mxu0 0
        %1950 = vmatpush1.bf16.xpose.msra.mxu0 0
        %1951 = vmatprep.subr.bf16.mxu0 0
        %1952 = vmatpush1.bf16.xpose.msra.mxu0 0
        %1953 = vmatprep.subr.bf16.mxu0 0
        %1954 = vmatpush1.bf16.xpose.msra.mxu0 0
        %1955 = vmatprep.subr.bf16.mxu0 0
        %1956 = vmatpush1.bf16.xpose.msra.mxu0 %v1939
        %1957 = vmatprep.subr.bf16.mxu0 0
        %1958 = vmatpush2.bf16.xpose.msra.mxu0 0
        %1959 = vmatprep.subr.bf16.mxu0 0
        %1960 = vmatpush2.bf16.xpose.msra.mxu0 0
        %1961 = vmatprep.subr.bf16.mxu0 0
        %1962 = vmatpush2.bf16.xpose.msra.mxu0 0
        %1963 = vmatprep.subr.bf16.mxu0 0
        %1964 = vmatpush2.bf16.xpose.msra.mxu0 0
        %1965 = vmatprep.subr.bf16.mxu0 0
        %1966 = vmatpush2.bf16.xpose.msra.mxu0 0
        %1967 = vmatprep.subr.bf16.mxu0 0
        %1968 = vmatpush2.bf16.xpose.msra.mxu0 0
        %1969 = vmatprep.subr.bf16.mxu0 0
        %1970 = vmatpush2.bf16.xpose.msra.mxu0 0
        %1971 = vmatprep.subr.bf16.mxu0 0
        %1972 = vmatpush2.bf16.xpose.msra.mxu0 0
        %1973 = vmatprep.mubr.bf16.mxu0 0
        %1974 = vmatmul.mubr.bf16.gmra.mxu0 %v1936
        %v1975 = vpop.f32.mrf.mxu0
        %v1976 = vadd.f32 0.0, %v1975
        %v1977 = vpop.f32.mrf.mxu0
        %v1978 = vpop.f32.mrf.mxu0
        %v1979 = vpop.f32.mrf.mxu0
        %1980 = vdwg.mxu0
        %v1981 = vmul.f32 %v1976, 0.35355338
        %v1982 = vadd.f32 %v1981, %v1667
        %v1983 = vsel %vm968, %v1982, -inf
        %1984 = vmax.xlane.f32.xlu0 %v1983
        %v1985 = vpop.xlane.xlu0 %1984
        %v1986 = vsub.f32 %v1982, %v1985
        %v1987 = vmul.f32 %v1986, 1.442695
        %v1988 = vpow.pop %v1987
        %v1989 = vsel %vm968, %v1988, 0.0
        %1990 = vadd.xlane.f32.xlu0 %v1989
        %v1991 = vpop.xlane.xlu0 %1990
        %v1992 = vrcp.pop %v1991
        %v1993 = vmul.f32 %v1988, %v1992
        %v1994 = vpack.c.bf16 %v1993, %v1993
        %1995 = vrot.lane.b32.xlu0 %v1615, 112
        %v1996 = vpop.permute.xlu0 %1995
        %v1998 = vsel %vm968, %v1994, 0
        %v2001 = vsel %vm1038, %v1996, 0
        %2003 = vmatprep.subr.bf16.mxu0 0
        %2004 = vmatpush1.bf16.msra.mxu0 0
        %2005 = vmatprep.subr.bf16.mxu0 0
        %2006 = vmatpush1.bf16.msra.mxu0 0
        %2007 = vmatprep.subr.bf16.mxu0 0
        %2008 = vmatpush1.bf16.msra.mxu0 0
        %2009 = vmatprep.subr.bf16.mxu0 0
        %2010 = vmatpush1.bf16.msra.mxu0 0
        %2011 = vmatprep.subr.bf16.mxu0 0
        %2012 = vmatpush1.bf16.msra.mxu0 0
        %2013 = vmatprep.subr.bf16.mxu0 0
        %2014 = vmatpush1.bf16.msra.mxu0 0
        %2015 = vmatprep.subr.bf16.mxu0 0
        %2016 = vmatpush1.bf16.msra.mxu0 0
        %2017 = vmatprep.subr.bf16.mxu0 0
        %2018 = vmatpush1.bf16.msra.mxu0 %v2001
        %2019 = vmatprep.subr.bf16.mxu0 0
        %2020 = vmatpush2.bf16.msra.mxu0 0
        %2021 = vmatprep.subr.bf16.mxu0 0
        %2022 = vmatpush2.bf16.msra.mxu0 0
        %2023 = vmatprep.subr.bf16.mxu0 0
        %2024 = vmatpush2.bf16.msra.mxu0 0
        %2025 = vmatprep.subr.bf16.mxu0 0
        %2026 = vmatpush2.bf16.msra.mxu0 0
        %2027 = vmatprep.subr.bf16.mxu0 0
        %2028 = vmatpush2.bf16.msra.mxu0 0
        %2029 = vmatprep.subr.bf16.mxu0 0
        %2030 = vmatpush2.bf16.msra.mxu0 0
        %2031 = vmatprep.subr.bf16.mxu0 0
        %2032 = vmatpush2.bf16.msra.mxu0 0
        %2033 = vmatprep.subr.bf16.mxu0 0
        %2034 = vmatpush2.bf16.msra.mxu0 0
        %2035 = vmatprep.mubr.bf16.mxu0 0
        %2036 = vmatmul.mubr.bf16.gmra.mxu0 %v1998
        %v2037 = vpop.f32.mrf.mxu0
        %v2038 = vadd.f32 0.0, %v2037
        %v2039 = vpop.f32.mrf.mxu0
        %v2040 = vpop.f32.mrf.mxu0
        %v2041 = vpop.f32.mrf.mxu0
        %2042 = vdwg.mxu0
        %v2043 = vpack.c.bf16 %v2038, %v2038
        %v2045 = vsel %vm968, %v2043, 0
        %2047 = vmatprep.subr.bf16.mxu0 0
        %2048 = vmatpush1.bf16.msra.mxu0 0
        %2049 = vmatprep.subr.bf16.mxu0 0
        %2050 = vmatpush1.bf16.msra.mxu0 0
        %2051 = vmatprep.subr.bf16.mxu0 0
        %2052 = vmatpush1.bf16.msra.mxu0 0
        %2053 = vmatprep.subr.bf16.mxu0 0
        %2054 = vmatpush1.bf16.msra.mxu0 0
        %2055 = vmatprep.subr.bf16.mxu0 0
        %2056 = vmatpush1.bf16.msra.mxu0 0
        %2057 = vmatprep.subr.bf16.mxu0 0
        %2058 = vmatpush1.bf16.msra.mxu0 0
        %2059 = vmatprep.subr.bf16.mxu0 0
        %2060 = vmatpush1.bf16.msra.mxu0 0
        %2061 = vmatprep.subr.bf16.mxu0 0
        %2062 = vmatpush1.bf16.msra.mxu0 %v1408
        %2063 = vmatprep.subr.bf16.mxu0 0
        %2064 = vmatpush2.bf16.msra.mxu0 0
        %2065 = vmatprep.subr.bf16.mxu0 0
        %2066 = vmatpush2.bf16.msra.mxu0 0
        %2067 = vmatprep.subr.bf16.mxu0 0
        %2068 = vmatpush2.bf16.msra.mxu0 0
        %2069 = vmatprep.subr.bf16.mxu0 0
        %2070 = vmatpush2.bf16.msra.mxu0 0
        %2071 = vmatprep.subr.bf16.mxu0 0
        %2072 = vmatpush2.bf16.msra.mxu0 0
        %2073 = vmatprep.subr.bf16.mxu0 0
        %2074 = vmatpush2.bf16.msra.mxu0 0
        %2075 = vmatprep.subr.bf16.mxu0 0
        %2076 = vmatpush2.bf16.msra.mxu0 0
        %2077 = vmatprep.subr.bf16.mxu0 0
        %2078 = vmatpush2.bf16.msra.mxu0 0
        %2079 = vmatprep.mubr.bf16.mxu0 0
        %2080 = vmatmul.mubr.bf16.gmra.mxu0 %v2045
        %v2081 = vpop.f32.mrf.mxu0
        %v2082 = vadd.f32 0.0, %v2081
        %v2083 = vpop.f32.mrf.mxu0
        %v2084 = vpop.f32.mrf.mxu0
        %v2085 = vpop.f32.mrf.mxu0
        %2086 = vdwg.mxu0
        %v2087 = vadd.f32 %v1926, %v2082
        %2088 = vrot.lane.b32.xlu0 %v1613, 104
        %v2089 = vpop.permute.xlu0 %2088
        %2090 = vrot.lane.b32.xlu0 %v1614, 104
        %v2091 = vpop.permute.xlu0 %2090
        %v2093 = vsel %vm968, %v2089, 0
        %v2096 = vsel %vm968, %v2091, 0
        %2098 = vmatprep.subr.bf16.mxu0 0
        %2099 = vmatpush1.bf16.xpose.msra.mxu0 0
        %2100 = vmatprep.subr.bf16.mxu0 0
        %2101 = vmatpush1.bf16.xpose.msra.mxu0 0
        %2102 = vmatprep.subr.bf16.mxu0 0
        %2103 = vmatpush1.bf16.xpose.msra.mxu0 0
        %2104 = vmatprep.subr.bf16.mxu0 0
        %2105 = vmatpush1.bf16.xpose.msra.mxu0 0
        %2106 = vmatprep.subr.bf16.mxu0 0
        %2107 = vmatpush1.bf16.xpose.msra.mxu0 0
        %2108 = vmatprep.subr.bf16.mxu0 0
        %2109 = vmatpush1.bf16.xpose.msra.mxu0 0
        %2110 = vmatprep.subr.bf16.mxu0 0
        %2111 = vmatpush1.bf16.xpose.msra.mxu0 0
        %2112 = vmatprep.subr.bf16.mxu0 0
        %2113 = vmatpush1.bf16.xpose.msra.mxu0 %v2096
        %2114 = vmatprep.subr.bf16.mxu0 0
        %2115 = vmatpush2.bf16.xpose.msra.mxu0 0
        %2116 = vmatprep.subr.bf16.mxu0 0
        %2117 = vmatpush2.bf16.xpose.msra.mxu0 0
        %2118 = vmatprep.subr.bf16.mxu0 0
        %2119 = vmatpush2.bf16.xpose.msra.mxu0 0
        %2120 = vmatprep.subr.bf16.mxu0 0
        %2121 = vmatpush2.bf16.xpose.msra.mxu0 0
        %2122 = vmatprep.subr.bf16.mxu0 0
        %2123 = vmatpush2.bf16.xpose.msra.mxu0 0
        %2124 = vmatprep.subr.bf16.mxu0 0
        %2125 = vmatpush2.bf16.xpose.msra.mxu0 0
        %2126 = vmatprep.subr.bf16.mxu0 0
        %2127 = vmatpush2.bf16.xpose.msra.mxu0 0
        %2128 = vmatprep.subr.bf16.mxu0 0
        %2129 = vmatpush2.bf16.xpose.msra.mxu0 0
        %2130 = vmatprep.mubr.bf16.mxu0 0
        %2131 = vmatmul.mubr.bf16.gmra.mxu0 %v2093
        %v2132 = vpop.f32.mrf.mxu0
        %v2133 = vadd.f32 0.0, %v2132
        %v2134 = vpop.f32.mrf.mxu0
        %v2135 = vpop.f32.mrf.mxu0
        %v2136 = vpop.f32.mrf.mxu0
        %2137 = vdwg.mxu0
        %v2138 = vmul.f32 %v2133, 0.35355338
        %v2139 = vadd.f32 %v2138, %v1667
        %v2140 = vsel %vm968, %v2139, -inf
        %2141 = vmax.xlane.f32.xlu0 %v2140
        %v2142 = vpop.xlane.xlu0 %2141
        %v2143 = vsub.f32 %v2139, %v2142
        %v2144 = vmul.f32 %v2143, 1.442695
        %v2145 = vpow.pop %v2144
        %v2146 = vsel %vm968, %v2145, 0.0
        %2147 = vadd.xlane.f32.xlu0 %v2146
        %v2148 = vpop.xlane.xlu0 %2147
        %v2149 = vrcp.pop %v2148
        %v2150 = vmul.f32 %v2145, %v2149
        %v2151 = vpack.c.bf16 %v2150, %v2150
        %2152 = vrot.lane.b32.xlu0 %v1615, 104
        %v2153 = vpop.permute.xlu0 %2152
        %v2155 = vsel %vm968, %v2151, 0
        %v2158 = vsel %vm1038, %v2153, 0
        %2160 = vmatprep.subr.bf16.mxu0 0
        %2161 = vmatpush1.bf16.msra.mxu0 0
        %2162 = vmatprep.subr.bf16.mxu0 0
        %2163 = vmatpush1.bf16.msra.mxu0 0
        %2164 = vmatprep.subr.bf16.mxu0 0
        %2165 = vmatpush1.bf16.msra.mxu0 0
        %2166 = vmatprep.subr.bf16.mxu0 0
        %2167 = vmatpush1.bf16.msra.mxu0 0
        %2168 = vmatprep.subr.bf16.mxu0 0
        %2169 = vmatpush1.bf16.msra.mxu0 0
        %2170 = vmatprep.subr.bf16.mxu0 0
        %2171 = vmatpush1.bf16.msra.mxu0 0
        %2172 = vmatprep.subr.bf16.mxu0 0
        %2173 = vmatpush1.bf16.msra.mxu0 0
        %2174 = vmatprep.subr.bf16.mxu0 0
        %2175 = vmatpush1.bf16.msra.mxu0 %v2158
        %2176 = vmatprep.subr.bf16.mxu0 0
        %2177 = vmatpush2.bf16.msra.mxu0 0
        %2178 = vmatprep.subr.bf16.mxu0 0
        %2179 = vmatpush2.bf16.msra.mxu0 0
        %2180 = vmatprep.subr.bf16.mxu0 0
        %2181 = vmatpush2.bf16.msra.mxu0 0
        %2182 = vmatprep.subr.bf16.mxu0 0
        %2183 = vmatpush2.bf16.msra.mxu0 0
        %2184 = vmatprep.subr.bf16.mxu0 0
        %2185 = vmatpush2.bf16.msra.mxu0 0
        %2186 = vmatprep.subr.bf16.mxu0 0
        %2187 = vmatpush2.bf16.msra.mxu0 0
        %2188 = vmatprep.subr.bf16.mxu0 0
        %2189 = vmatpush2.bf16.msra.mxu0 0
        %2190 = vmatprep.subr.bf16.mxu0 0
        %2191 = vmatpush2.bf16.msra.mxu0 0
        %2192 = vmatprep.mubr.bf16.mxu0 0
        %2193 = vmatmul.mubr.bf16.gmra.mxu0 %v2155
        %v2194 = vpop.f32.mrf.mxu0
        %v2195 = vadd.f32 0.0, %v2194
        %v2196 = vpop.f32.mrf.mxu0
        %v2197 = vpop.f32.mrf.mxu0
        %v2198 = vpop.f32.mrf.mxu0
        %2199 = vdwg.mxu0
        %v2200 = vpack.c.bf16 %v2195, %v2195
        %v2202 = vsel %vm968, %v2200, 0
        %2204 = vmatprep.subr.bf16.mxu0 0
        %2205 = vmatpush1.bf16.msra.mxu0 0
        %2206 = vmatprep.subr.bf16.mxu0 0
        %2207 = vmatpush1.bf16.msra.mxu0 0
        %2208 = vmatprep.subr.bf16.mxu0 0
        %2209 = vmatpush1.bf16.msra.mxu0 0
        %2210 = vmatprep.subr.bf16.mxu0 0
        %2211 = vmatpush1.bf16.msra.mxu0 0
        %2212 = vmatprep.subr.bf16.mxu0 0
        %2213 = vmatpush1.bf16.msra.mxu0 0
        %2214 = vmatprep.subr.bf16.mxu0 0
        %2215 = vmatpush1.bf16.msra.mxu0 0
        %2216 = vmatprep.subr.bf16.mxu0 0
        %2217 = vmatpush1.bf16.msra.mxu0 0
        %2218 = vmatprep.subr.bf16.mxu0 0
        %2219 = vmatpush1.bf16.msra.mxu0 %v1568
        %2220 = vmatprep.subr.bf16.mxu0 0
        %2221 = vmatpush2.bf16.msra.mxu0 0
        %2222 = vmatprep.subr.bf16.mxu0 0
        %2223 = vmatpush2.bf16.msra.mxu0 0
        %2224 = vmatprep.subr.bf16.mxu0 0
        %2225 = vmatpush2.bf16.msra.mxu0 0
        %2226 = vmatprep.subr.bf16.mxu0 0
        %2227 = vmatpush2.bf16.msra.mxu0 0
        %2228 = vmatprep.subr.bf16.mxu0 0
        %2229 = vmatpush2.bf16.msra.mxu0 0
        %2230 = vmatprep.subr.bf16.mxu0 0
        %2231 = vmatpush2.bf16.msra.mxu0 0
        %2232 = vmatprep.subr.bf16.mxu0 0
        %2233 = vmatpush2.bf16.msra.mxu0 0
        %2234 = vmatprep.subr.bf16.mxu0 0
        %2235 = vmatpush2.bf16.msra.mxu0 0
        %2236 = vmatprep.mubr.bf16.mxu0 0
        %2237 = vmatmul.mubr.bf16.gmra.mxu0 %v2202
        %v2238 = vpop.f32.mrf.mxu0
        %v2239 = vadd.f32 0.0, %v2238
        %v2240 = vpop.f32.mrf.mxu0
        %v2241 = vpop.f32.mrf.mxu0
        %v2242 = vpop.f32.mrf.mxu0
        %2243 = vdwg.mxu0
        %v2244 = vadd.f32 %v2087, %v2239
        %v2246 = vlaneseq
        %v2247 = vshrl.u32 %v2246, 7
        %v2248 = vsub.s32 0, %v2247
        %v2249 = vrot.slane %v769, %v2248
        %v2251 = vadd.f32 %v1610, %v2249
        %v2252 = vadd.f32 %v2244, %v2249
        %v2253 = vadd.f32 %v2251, %v718
        %v2254 = vadd.f32 %v2252, %v719
        %v2255 = vsel %vm801, %v2253, 0.0
        %2256 = vadd.xlane.f32.xlu0 %v2255
        %v2257 = vpop.xlane.xlu0 %2256
        %v2258 = vsel %vm801, %v2254, 0.0
        %2259 = vadd.xlane.f32.xlu0 %v2258
        %v2260 = vpop.xlane.xlu0 %2259
        %v2261 = vrcp.pop 32.0
        %v2262 = vmul.f32 %v2257, %v2261
        %v2263 = vmul.f32 %v2260, %v2261
        %v2264 = vsub.f32 %v2253, %v2262
        %v2265 = vsub.f32 %v2254, %v2263
        %v2266 = vmul.f32 %v2264, %v2264
        %v2267 = vmul.f32 %v2265, %v2265
        %v2268 = vsel %vm801, %v2266, 0.0
        %2269 = vadd.xlane.f32.xlu0 %v2268
        %v2270 = vpop.xlane.xlu0 %2269
        %v2271 = vsel %vm801, %v2267, 0.0
        %2272 = vadd.xlane.f32.xlu0 %v2271
        %v2273 = vpop.xlane.xlu0 %2272
        %v2274 = vmul.f32 %v2270, %v2261
        %v2275 = vmul.f32 %v2273, %v2261
        %v2276 = vadd.f32 %v2274, 1e-12
        %v2277 = vadd.f32 %v2275, 1e-12
        %v2278 = vrsqrt.pop %v2276
        %v2279 = vrsqrt.pop %v2277
        %v2280 = vmul.f32 %v2264, %v2278
        %v2281 = vmul.f32 %v2265, %v2279
        %v2283 = vlaneseq
        %v2284 = vshrl.u32 %v2283, 7
        %v2285 = vsub.s32 0, %v2284
        %v2286 = vrot.slane %v775, %v2285
        %v2288 = vmul.f32 %v2280, %v2286
        %v2289 = vmul.f32 %v2281, %v2286
        %v2291 = vlaneseq
        %v2292 = vshrl.u32 %v2291, 7
        %v2293 = vsub.s32 0, %v2292
        %v2294 = vrot.slane %v777, %v2293
        %v2296 = vadd.f32 %v2288, %v2294
        %v2297 = vadd.f32 %v2289, %v2294
        %v2298 = vpack.c.bf16 %v2297, %v2296
        %v2300 = vlaneseq
        %v2301 = vshrl.u32 %v2300, 7
        %v2302 = vsub.s32 0, %v2301
        %v2303 = vrot.slane %v771, %v2302
        %v2309 = vunpack.c.l.b16 %v747
        %v2310 = vunpack.c.l.b16 %v748
        %v2311 = vunpack.c.l.b16 %v749
        %v2312 = vunpack.c.l.b16 %v750
        %v2313 = vpack.c.b16 %v2310, %v2309
        %v2314 = vpack.c.b16 %v2312, %v2311
        %v2318 = vsel %vm801, %v2298, 0
        %2320 = vmatprep.subr.bf16.mxu0 0
        %2321 = vmatpush1.bf16.msra.mxu0 0
        %2322 = vmatprep.subr.bf16.mxu0 0
        %2323 = vmatpush1.bf16.msra.mxu0 0
        %2324 = vmatprep.subr.bf16.mxu0 0
        %2325 = vmatpush1.bf16.msra.mxu0 0
        %2326 = vmatprep.subr.bf16.mxu0 0
        %2327 = vmatpush1.bf16.msra.mxu0 0
        %2328 = vmatprep.subr.bf16.mxu0 0
        %2329 = vmatpush1.bf16.msra.mxu0 0
        %2330 = vmatprep.subr.bf16.mxu0 0
        %2331 = vmatpush1.bf16.msra.mxu0 0
        %2332 = vmatprep.subr.bf16.mxu0 0
        %2333 = vmatpush1.bf16.msra.mxu0 %v2314
        %2334 = vmatprep.subr.bf16.mxu0 0
        %2335 = vmatpush1.bf16.msra.mxu0 %v2313
        %2336 = vmatprep.subr.bf16.mxu0 0
        %2337 = vmatpush2.bf16.msra.mxu0 0
        %2338 = vmatprep.subr.bf16.mxu0 0
        %2339 = vmatpush2.bf16.msra.mxu0 0
        %2340 = vmatprep.subr.bf16.mxu0 0
        %2341 = vmatpush2.bf16.msra.mxu0 0
        %2342 = vmatprep.subr.bf16.mxu0 0
        %2343 = vmatpush2.bf16.msra.mxu0 0
        %2344 = vmatprep.subr.bf16.mxu0 0
        %2345 = vmatpush2.bf16.msra.mxu0 0
        %2346 = vmatprep.subr.bf16.mxu0 0
        %2347 = vmatpush2.bf16.msra.mxu0 0
        %2348 = vmatprep.subr.bf16.mxu0 0
        %2349 = vmatpush2.bf16.msra.mxu0 0
        %2350 = vmatprep.subr.bf16.mxu0 0
        %2351 = vmatpush2.bf16.msra.mxu0 0
        %2352 = vmatprep.mubr.bf16.mxu0 0
        %2353 = vmatmul.mubr.bf16.gmra.mxu0 %v2318
        %v2354 = vpop.f32.mrf.mxu0
        %v2355 = vadd.f32 %v2303, %v2354
        %v2356 = vpop.f32.mrf.mxu0
        %v2357 = vpop.f32.mrf.mxu0
        %v2358 = vadd.f32 %v2303, %v2357
        %v2359 = vpop.f32.mrf.mxu0
        %2360 = vdwg.mxu0
        %v2361 = vmul.f32 %v2355, 0.5
        %v2362 = vmul.f32 %v2358, 0.5
        %v2363 = vmul.f32 %v2355, 0.70710677
        %v2364 = vmul.f32 %v2358, 0.70710677
        %v2365 = verf.f32.pop %v2363
        %v2366 = verf.f32.pop %v2364
        %v2367 = vadd.f32 %v2365, 1.0
        %v2368 = vadd.f32 %v2366, 1.0
        %v2369 = vmul.f32 %v2361, %v2367
        %v2370 = vmul.f32 %v2362, %v2368
        %v2371 = vpack.c.bf16 %v2370, %v2369
        %v2373 = vlaneseq
        %v2374 = vshrl.u32 %v2373, 7
        %v2375 = vsub.s32 0, %v2374
        %v2376 = vrot.slane %v773, %v2375
        %v2386 = vunpack.c.l.b16 %v754
        %v2387 = vunpack.c.l.b16 %v755
        %v2388 = vunpack.c.l.b16 %v756
        %v2389 = vunpack.c.l.b16 %v757
        %v2390 = vunpack.c.l.b16 %v758
        %v2391 = vunpack.c.l.b16 %v759
        %v2392 = vunpack.c.l.b16 %v760
        %v2393 = vunpack.c.l.b16 %v761
        %v2394 = vpack.c.b16 %v2387, %v2386
        %v2395 = vpack.c.b16 %v2389, %v2388
        %v2396 = vpack.c.b16 %v2391, %v2390
        %v2397 = vpack.c.b16 %v2393, %v2392
        %vm2402 = vcmask 523264
        %v2404 = vsel %vm2402, %v2371, 0
        %2406 = vmatprep.subr.bf16.mxu0 0
        %2407 = vmatpush1.bf16.msra.mxu0 0
        %2408 = vmatprep.subr.bf16.mxu0 0
        %2409 = vmatpush1.bf16.msra.mxu0 0
        %2410 = vmatprep.subr.bf16.mxu0 0
        %2411 = vmatpush1.bf16.msra.mxu0 0
        %2412 = vmatprep.subr.bf16.mxu0 0
        %2413 = vmatpush1.bf16.msra.mxu0 0
        %2414 = vmatprep.subr.bf16.mxu0 0
        %2415 = vmatpush1.bf16.msra.mxu0 %v2397
        %2416 = vmatprep.subr.bf16.mxu0 0
        %2417 = vmatpush1.bf16.msra.mxu0 %v2396
        %2418 = vmatprep.subr.bf16.mxu0 0
        %2419 = vmatpush1.bf16.msra.mxu0 %v2395
        %2420 = vmatprep.subr.bf16.mxu0 0
        %2421 = vmatpush1.bf16.msra.mxu0 %v2394
        %2422 = vmatprep.subr.bf16.mxu0 0
        %2423 = vmatpush2.bf16.msra.mxu0 0
        %2424 = vmatprep.subr.bf16.mxu0 0
        %2425 = vmatpush2.bf16.msra.mxu0 0
        %2426 = vmatprep.subr.bf16.mxu0 0
        %2427 = vmatpush2.bf16.msra.mxu0 0
        %2428 = vmatprep.subr.bf16.mxu0 0
        %2429 = vmatpush2.bf16.msra.mxu0 0
        %2430 = vmatprep.subr.bf16.mxu0 0
        %2431 = vmatpush2.bf16.msra.mxu0 0
        %2432 = vmatprep.subr.bf16.mxu0 0
        %2433 = vmatpush2.bf16.msra.mxu0 0
        %2434 = vmatprep.subr.bf16.mxu0 0
        %2435 = vmatpush2.bf16.msra.mxu0 0
        %2436 = vmatprep.subr.bf16.mxu0 0
        %2437 = vmatpush2.bf16.msra.mxu0 0
        %2438 = vmatprep.mubr.bf16.mxu0 0
        %2439 = vmatmul.mubr.bf16.gmra.mxu0 %v2404
        %v2440 = vpop.f32.mrf.mxu0
        %v2441 = vadd.f32 %v2376, %v2440
        %v2442 = vpop.f32.mrf.mxu0
        %v2443 = vpop.f32.mrf.mxu0
        %v2444 = vadd.f32 %v2376, %v2443
        %v2445 = vpop.f32.mrf.mxu0
        %2446 = vdwg.mxu0
        %v2447 = vadd.f32 %v2441, %v2296
        %v2448 = vadd.f32 %v2444, %v2297
        %v2449 = vsel %vm801, %v2447, 0.0
        %2450 = vadd.xlane.f32.xlu0 %v2449
        %v2451 = vpop.xlane.xlu0 %2450
        %v2452 = vsel %vm801, %v2448, 0.0
        %2453 = vadd.xlane.f32.xlu0 %v2452
        %v2454 = vpop.xlane.xlu0 %2453
        %v2455 = vmul.f32 %v2451, %v2261
        %v2456 = vmul.f32 %v2454, %v2261
        %v2457 = vsub.f32 %v2447, %v2455
        %v2458 = vsub.f32 %v2448, %v2456
        %v2459 = vmul.f32 %v2457, %v2457
        %v2460 = vmul.f32 %v2458, %v2458
        %v2461 = vsel %vm801, %v2459, 0.0
        %2462 = vadd.xlane.f32.xlu0 %v2461
        %v2463 = vpop.xlane.xlu0 %2462
        %v2464 = vsel %vm801, %v2460, 0.0
        %2465 = vadd.xlane.f32.xlu0 %v2464
        %v2466 = vpop.xlane.xlu0 %2465
        %v2467 = vmul.f32 %v2463, %v2261
        %v2468 = vmul.f32 %v2466, %v2261
        %v2469 = vadd.f32 %v2467, 1e-12
        %v2470 = vadd.f32 %v2468, 1e-12
        %v2471 = vrsqrt.pop %v2469
        %v2472 = vrsqrt.pop %v2470
        %v2473 = vmul.f32 %v2457, %v2471
        %v2474 = vmul.f32 %v2458, %v2472
        %v2476 = vlaneseq
        %v2477 = vshrl.u32 %v2476, 7
        %v2478 = vsub.s32 0, %v2477
        %v2479 = vrot.slane %v779, %v2478
        %v2481 = vmul.f32 %v2473, %v2479
        %v2482 = vmul.f32 %v2474, %v2479
        %v2484 = vlaneseq
        %v2485 = vshrl.u32 %v2484, 7
        %v2486 = vsub.s32 0, %v2485
        %v2487 = vrot.slane %v781, %v2486
        %v2489 = vadd.f32 %v2481, %v2487
        %v2490 = vadd.f32 %v2482, %v2487
        %2491 = vst.msk [vmem:[#allocation2] sm:$0xff] %vm801, %v2489
        %2492 = vst.msk [vmem:[#allocation2 + $0x8] sm:$0xff] %vm801, %v2490
        %2493 = vst.msk [vmem:[%s683] sm:$0xff] %vm801, %v2489
        %2494 = vst.msk [vmem:[%s683 + $0x8] sm:$0xff] %vm801, %v2490
        %s2495 = sand.u32 %s472, 1
        %s2496 = scalar_lea.sflag [#allocation5], %s2495
        %s2497 = sand.u32 %s472, 1
        %s2498 = smul.addr %s2497, 16
        %s2499 = scalar_lea.vmem [#allocation11], %s2498
        // Predicated region
        $region117: #{tpu_custom_call.1} parent=95 // pred_check
          %p2500 = pneg %p482
        $region118: #{tpu_custom_call.1} parent=95 // pred_check_branch
          %2502 = sbr.rel (%p2500) target = $region120
        $region119: #{tpu_custom_call.1} parent=95 // pred_region
          %s2503 = smul.u32 2, %s40
          %s2505 = ssub.s32 256, 256
          %2506 = vsyncadd %s2496, %s2505
          %s2507 = smul.addr %s41, 2
          %s2508 = sadd.s32 %s2503, %s2507
          %s2509 = smul.addr %s2508, 128
          %s2510 = scalar_lea.hbm %s19, %s2509
          %s2511 = sshll.u32 %s2499, 4
          %s2512 = int_to_ptr.vmem [resolvable:$true] %s2511
          %2517 = dma.vmem_to_hbm [thread:$0]  %s2512, 256, %s2510, %s2496, 128, 128, 8
        $region120: #{tpu_custom_call.1} parent=95 // pred_fallthru
          _
      $region96: #{tpu_custom_call.1} parent=5 // pred_fallthru
        _
      %p2518 = scmp.le.s32.totalorder 2, %s31
      // Predicated region
      $region121: #{tpu_custom_call.1} parent=5 // pred_check
        %p2519 = pneg %p2518
      $region122: #{tpu_custom_call.1} parent=5 // pred_check_branch
        %2521 = sbr.rel (%p2519) target = $region124
      $region123: #{tpu_custom_call.1} parent=5 // pred_region
        %s2522 = ssub.s32 %s31, 2
        // Predicated region
        $region125: #{tpu_custom_call.1} parent=123 // pred_check
          %p2523 = pneg %p488
        $region126: #{tpu_custom_call.1} parent=123 // pred_check_branch
          %2525 = sbr.rel (%p2523) target = $region128
        $region127: #{tpu_custom_call.1} parent=123 // pred_region
          %s2526 = sand.u32 %s473, 1
          %s2527 = scalar_lea.sflag [#allocation5], %s2526
          %s2528 = sand.u32 %s473, 1
          %s2529 = smul.addr %s2528, 16
          %s2530 = scalar_lea.vmem [#allocation11], %s2529
          %2531 = dma.done %s2527, 256
        $region128: #{tpu_custom_call.1} parent=123 // pred_fallthru
          _
      $region124: #{tpu_custom_call.1} parent=5 // pred_fallthru
        _
    $region6: #{tpu_custom_call.1} parent=1 // loop_footer
      %s35 = sadd.s32 1, %s31
    $region7: #{tpu_custom_call.1} parent=1 // loop_footer_branch
      %30 = sbr.rel target = $region3
    $region8: #{tpu_custom_call.1} parent=1 // loop_exit
      _
    %2532 = vsyncpa [#allocation4], 1
    %s2533 = scalar_lea.sflag [#allocation4], 1
    %2534 = vsyncpa %s2533, 1
    %2535 = vsyncpa [#allocation7], 1
    %2536 = vsyncpa [#allocation10], 1
    %2537 = vsyncpa [#allocation5], 1
    %s2538 = scalar_lea.sflag [#allocation5], 1
    %2539 = vsyncpa %s2538, 1

</llo_original>
